<compile_context>
chip_gen: v7x
topology: tpu7x:2x2x1
jax: 0.10.0
libtpu: 0.0.40
codegen_flags: <defaults>
</compile_context>

<pallas_src>
import functools
import math

import jax
import jax.numpy as jnp
from jax.experimental import pallas as pl
from jax.experimental.pallas import tpu as pltpu


# Per-step (double-buffered) block working-set budget, and the ceiling we are
# willing to raise the scoped VMEM limit to (fits v7x's 64 MiB physical VMEM
# with headroom; v5e/v6e have 128 MiB).
_VMEM_BUDGET = 20 * 1024 * 1024
_VMEM_LIMIT = 48 * 1024 * 1024
_MBSTD_PAD = 8                      # mbstd channel padded 1 -> 8 (8-aligned Cin)

FIR = (1.0 / 8.0, 3.0 / 8.0, 3.0 / 8.0, 1.0 / 8.0)   # normalized [1,3,3,1]


# ------------------------------ small helpers -------------------------------

def _round_up(x, m):
    return (x + m - 1) // m * m


def _pad_axis(x, axis, target):
    if x.shape[axis] == target:
        return x
    widths = [(0, 0)] * x.ndim
    widths[axis] = (0, target - x.shape[axis])
    return jnp.pad(x, widths)


def _lrelu_gain(act):
    return math.sqrt(2.0) if act == 'lrelu' else 1.0


# --------------------- Kernel 1: implicit-GEMM conv (s=1) -------------------
# x_ref : (Nb, Th, Wp, Cin)     bf16   Nb pre-padded row windows
# w_ref : (kh*kw, Cin, cot)     bf16   gains / FIR / equalized-LR pre-folded
# b_ref : (1, cot)              f32
# r_ref : (Nb, tr*wo, cot)      f32    optional fused resnet skip
# o_ref : (Nb, tr*wo, cot)
# The im2col matrix never exists in HBM: per column tap one W-shifted flatten
# of the VMEM tile; the kh row taps are sublane-aligned row slices of it.

def _conv_kernel(x_ref, w_ref, b_ref, *rest, kh, kw, wo, slope, use_act,
                 has_residual):
    if has_residual:
        r_ref, o_ref = rest
    else:
        (o_ref,) = rest
    nb, mt, cot = o_ref.shape                   # images/blk, out rows*wo, C tile
    cin = x_ref.shape[-1]
    for b in range(nb):
        x = x_ref[b]                                            # (Th, Wp, Cin)
        acc = jnp.zeros((mt, cot), jnp.float32)
        for j in range(kw):
            # One W-shifted flatten per column tap (no-op when kw == 1).
            xj = (x[:, j:j + wo, :].reshape(-1, cin) if kw > 1
                  else x.reshape(-1, cin))
            for i in range(kh):
                acc = acc + jnp.dot(xj[i * wo:i * wo + mt, :],
                                    w_ref[i * kw + j],
                                    preferred_element_type=jnp.float32)
        acc = acc + b_ref[...]
        if use_act:
            acc = jnp.where(acc >= 0.0, acc, acc * slope)
        if has_residual:
            acc = acc + r_ref[b].astype(jnp.float32)
        o_ref[b] = acc.astype(o_ref.dtype)


def conv2d(x_nhwc, w_taps, bias, *, kh, kw, use_act, residual=None,
           slope=0.2, out_dtype=jnp.bfloat16, row_tile=None):
    """Implicit-GEMM conv on a pre-padded NHWC input.  Grid = (Cout tiles
    [slow], image/row-window blocks [fast]) so each weight tile is fetched
    once per Cout tile and revisited across the whole batch and all row
    tiles.  Returns (N, Ho*Wo, Cout)."""
    N, Hp, Wp, Cin = x_nhwc.shape
    T, Cin_w, Cout = w_taps.shape
    assert T == kh * kw and Cin_w == Cin
    ho, wo = Hp - kh + 1, Wp - kw + 1

    # Output-channel tile: 256 to fill the 256-wide MXUs of v6e/v7x on wide
    # layers; back off to 128 if the folded weight tile alone eats the budget.
    cot = 256 if Cout >= 256 else (128 if Cout >= 128 else Cout)
    while cot > 128 and 2 * T * Cin * cot * 2 > _VMEM_BUDGET // 2:
        cot //= 2
    n_co = pl.cdiv(Cout, cot)
    Cout_p = n_co * cot

    out_isz = jnp.dtype(out_dtype).itemsize
    res_isz = 0 if residual is None else jnp.dtype(residual.dtype).itemsize

    def step_bytes(nb, tr):                    # double-buffered working set
        th = tr + kh - 1
        return (2 * (nb * th * Wp * Cin * 2              # x window
                     + T * Cin * cot * 2                 # weight tile
                     + nb * tr * wo * cot * out_isz      # output tile
                     + nb * tr * wo * cot * res_isz      # fused residual
                     + cot * 4)                          # bias
                + nb * tr * wo * cot * 4)                # f32 accumulator

    # Output-row tile: largest power-of-two divisor of ho within the budget.
    tr = ho if row_tile is None else row_tile
    assert ho % tr == 0
    while row_tile is None and tr % 2 == 0 and step_bytes(1, tr) > _VMEM_BUDGET:
        tr //= 2
    n_rt = ho // tr
    Th = tr + kh - 1

    # Images / row windows per grid step: amortize per-step overhead, keep
    # >=2 parallel steps for the 2 TensorCores of v7x when possible.
    M_img = N * n_rt
    nb = 1
    for cand in range(min(8, M_img), 0, -1):
        if M_img % cand:
            continue
        if step_bytes(cand, tr) > _VMEM_BUDGET:
            continue
        if M_img >= 2 and M_img // cand < 2:
            continue
        nb = cand
        break

    x_nhwc = x_nhwc.astype(jnp.bfloat16)
    if n_rt == 1:
        xw = x_nhwc
    else:
        # TODO(synk): the halo'd row windows are materialized in HBM
        # (~(Th/tr)x activation traffic); an in-kernel halo DMA
        # (memory_space=pl.ANY + make_async_copy) would remove this copy.
        xw = jnp.stack([x_nhwc[:, r * tr:r * tr + Th] for r in range(n_rt)],
                       axis=1).reshape(M_img, Th, Wp, Cin)

    w_taps = _pad_axis(w_taps, 2, Cout_p).astype(jnp.bfloat16)
    b2 = _pad_axis(bias.reshape(1, Cout).astype(jnp.float32), 1, Cout_p)

    in_specs = [
        pl.BlockSpec((nb, Th, Wp, Cin), lambda co, ib: (ib, 0, 0, 0)),
        pl.BlockSpec((T, Cin, cot), lambda co, ib: (0, 0, co)),
        pl.BlockSpec((1, cot), lambda co, ib: (0, co)),
    ]
    args = [xw, w_taps, b2]
    if residual is not None:
        residual = _pad_axis(residual, 2, Cout_p).reshape(M_img, tr * wo, Cout_p)
        in_specs.append(pl.BlockSpec((nb, tr * wo, cot),
                                     lambda co, ib: (ib, 0, co)))
        args.append(residual)

    # Raise the scoped VMEM limit only when the budgeted working set actually
    # needs more than the conservative per-chip defaults.
    need = step_bytes(nb, tr)
    cparams = dict(dimension_semantics=("arbitrary", "parallel"))
    if need > 14 * 1024 * 1024:
        cparams['vmem_limit_bytes'] = min(_VMEM_LIMIT,
                                          _round_up(need + need // 4, 1 << 20))

    kern = functools.partial(_conv_kernel, kh=kh, kw=kw, wo=wo, slope=slope,
                             use_act=use_act,
                             has_residual=residual is not None)
    out = pl.pallas_call(
        kern,
        out_shape=jax.ShapeDtypeStruct((M_img, tr * wo, Cout_p), out_dtype),
        grid=(n_co, M_img // nb),
        in_specs=in_specs,
        out_specs=pl.BlockSpec((nb, tr * wo, cot), lambda co, ib: (ib, 0, co)),
        compiler_params=pltpu.CompilerParams(**cparams),
    )(*args)
    out = out.reshape(N, ho * wo, Cout_p)
    if Cout_p != Cout:
        out = out[:, :, :Cout]
    return out


# ----------------- Kernel 2: fused FC epilogue (fc + out) -------------------
# One K-tiled GEMM with an f32 accumulator; the epilogue applies the lrelu
# (gains pre-folded) and the 1-wide output projection in the same kernel.

def _fc2_kernel(x_ref, w1_ref, b1_ref, w2_ref, b2_ref, o_ref, acc_ref, *,
                slope):
    @pl.when(pl.program_id(0) == 0)
    def _():
        acc_ref[...] = jnp.zeros_like(acc_ref)
    acc_ref[...] += jnp.dot(x_ref[...], w1_ref[...],
                            preferred_element_type=jnp.float32)

    @pl.when(pl.program_id(0) == pl.num_programs(0) - 1)
    def _():
        h = acc_ref[...] + b1_ref[...]
        h = jnp.where(h >= 0.0, h, h * slope)
        o_ref[...] = (jnp.sum(h * w2_ref[...], axis=-1, keepdims=True)
                      + b2_ref[...]).astype(o_ref.dtype)


def fc2(x, w1, b1, w2, b2, *, slope=0.2, tk=1024):
    """logits = (lrelu(x @ w1 + b1)) @ w2 + b2, fused in one pallas_call."""
    M, K = x.shape
    Kw, Nh = w1.shape
    assert Kw == K and w2.shape == (Nh, 1)
    tk = min(tk, _round_up(K, 128))
    Kp = _round_up(K, tk)
    x = _pad_axis(x, 1, Kp).astype(jnp.bfloat16)
    w1 = _pad_axis(w1, 0, Kp).astype(jnp.bfloat16)
    b1 = b1.reshape(1, Nh).astype(jnp.float32)
    w2t = w2.reshape(1, Nh).astype(jnp.float32)
    b2 = b2.reshape(1, 1).astype(jnp.float32)

    kern = functools.partial(_fc2_kernel, slope=slope)
    return pl.pallas_call(
        kern,
        out_shape=jax.ShapeDtypeStruct((M, 1), jnp.float32),
        grid=(Kp // tk,),
        in_specs=[pl.BlockSpec((M, tk), lambda k: (0, k)),
                  pl.BlockSpec((tk, Nh), lambda k: (k, 0)),
                  pl.BlockSpec((1, Nh), lambda k: (0, 0)),
                  pl.BlockSpec((1, Nh), lambda k: (0, 0)),
                  pl.BlockSpec((1, 1), lambda k: (0, 0))],
        out_specs=pl.BlockSpec((M, 1), lambda k: (0, 0)),
        scratch_shapes=[pltpu.VMEM((M, Nh), jnp.float32)],
        compiler_params=pltpu.CompilerParams(
            dimension_semantics=("arbitrary",)),
    )(x, w1, b1, w2t, b2)


# ----------------- parameter prep (gains / FIR folded once) -----------------

def _prep_conv_s1(w, b, *, act='lrelu', gain=1.0):
    """Stride-1 Conv2dLayer -> (kh*kw, Cin, Cout) bf16 taps + f32 bias."""
    O, I, kh, kw = w.shape
    g_out = gain * _lrelu_gain(act)            # lrelu(g*z) == g*lrelu(z), g>0
    g_w = g_out / math.sqrt(I * kh * kw)       # equalized-LR weight gain
    wt = (jnp.transpose(w, (2, 3, 1, 0)) * g_w).reshape(kh * kw, I, O)
    bv = jnp.zeros((O,), jnp.float32) if b is None else b.astype(jnp.float32)
    return dict(w=wt.astype(jnp.bfloat16), b=bv * g_out,
                kh=kh, kw=kw, pad=kh // 2, act=act, down=1)


def _prep_conv_down2(w, b, *, act='lrelu', gain=1.0):
    """down=2 conv: fold the [1,3,3,1] FIR into the weights (-> (kh+3)^2 taps)
    and regroup them for a stride-1 conv over a 2x2 space-to-depth input."""
    O, I, kh, kw = w.shape
    g_out = gain * _lrelu_gain(act)
    g_w = g_out / math.sqrt(I * kh * kw)
    wt = jnp.transpose(w, (2, 3, 1, 0)) * g_w            # (kh, kw, I, O)
    K = kh + 3
    wc = jnp.zeros((K, K, I, O), jnp.float32)
    for a in range(4):
        for c in range(4):
            wc = wc.at[a:a + kh, c:c + kw].add(FIR[a] * FIR[c] * wt)
    m = K // 2
    ws = wc.reshape(m, 2, m, 2, I, O).transpose(0, 2, 1, 3, 4, 5)
    ws = ws.reshape(m * m, 4 * I, O)
    bv = jnp.zeros((O,), jnp.float32) if b is None else b.astype(jnp.float32)
    return dict(w=ws.astype(jnp.bfloat16), b=bv * g_out,
                kh=m, kw=m, pad=kh // 2 + 1, act=act, down=2)


def apply_conv(x, layer, *, residual=None, out_dtype=jnp.bfloat16):
    """x: (N, H, W, C) NHWC (unpadded).  Returns (N, Ho*Wo, Cout)."""
    p = layer['pad']
    # TODO(synk): the zero-pad and the 2x2 space-to-depth below are XLA passes
    # over the activation; folding them into the kernel (halo DMA + parity tap
    # offsets) would remove ~1x activation HBM traffic per conv.
    xp = jnp.pad(x, ((0, 0), (p, p), (p, p), (0, 0))) if p > 0 else x
    if layer['down'] == 2:                     # stride-2 -> stride-1 via s2d
        Nn, Hp, Wp, Cc = xp.shape
        xp = xp.reshape(Nn, Hp // 2, 2, Wp // 2, 2, Cc)
        xp = xp.transpose(0, 1, 3, 2, 4, 5).reshape(Nn, Hp // 2, Wp // 2, 4 * Cc)
    return conv2d(xp, layer['w'], layer['b'], kh=layer['kh'], kw=layer['kw'],
                  use_act=(layer['act'] == 'lrelu'), residual=residual,
                  out_dtype=out_dtype)


# ------------------------------ Discriminator -------------------------------

def init_discriminator_params(key, *, img_resolution=16, img_channels=3,
                              channel_base=1.0 / 64, channel_max=512):
    log2 = int(math.log2(img_resolution))
    block_res = [2 ** i for i in range(log2, 2, -1)]
    cb = int(channel_base * 32768)
    ch = {r: min(cb // r, channel_max) for r in block_res + [4]}

    def nrm(k, shape):
        return jax.random.normal(k, shape, jnp.float32)

    kit = iter(jax.random.split(key, 64))
    blocks = {}
    for res in block_res:
        in_c = ch[res] if res < img_resolution else 0
        tmp_c, out_c = ch[res], ch[res // 2]
        blk = {'in_channels': in_c}
        if in_c == 0:
            blk['fromrgb'] = _prep_conv_s1(
                nrm(next(kit), (tmp_c, img_channels, 1, 1)),
                jnp.zeros((tmp_c,), jnp.float32), act='lrelu')
        blk['conv0'] = _prep_conv_s1(nrm(next(kit), (tmp_c, tmp_c, 3, 3)),
                                     jnp.zeros((tmp_c,), jnp.float32),
                                     act='lrelu')
        blk['conv1'] = _prep_conv_down2(nrm(next(kit), (out_c, tmp_c, 3, 3)),
                                        jnp.zeros((out_c,), jnp.float32),
                                        act='lrelu', gain=math.sqrt(0.5))
        blk['skip'] = _prep_conv_down2(nrm(next(kit), (out_c, tmp_c, 1, 1)),
                                       None, act='linear', gain=math.sqrt(0.5))
        blocks[res] = blk

    c4 = ch[4]
    # Epilogue conv has Cin = c4 + 1 (mbstd channel); zero-pad its Cin to
    # c4 + 8 so the in-kernel contraction is 8-aligned.
    ep_conv = _prep_conv_s1(nrm(next(kit), (c4, c4 + 1, 3, 3)),
                            jnp.zeros((c4,), jnp.float32), act='lrelu')
    ep_conv['w'] = _pad_axis(ep_conv['w'], 1, c4 + _MBSTD_PAD)
    # fc weight is defined in PyTorch's NCHW-flatten order; permute once to
    # the (H,W,C) order our conv outputs use; fold equalized-LR + lrelu gain.
    fc_w_raw = nrm(next(kit), (c4, c4 * 4 * 4))
    fc_w = fc_w_raw.reshape(c4, c4, 4, 4).transpose(0, 2, 3, 1).reshape(c4, c4 * 16)
    g_fc = _lrelu_gain('lrelu')
    fc_w = fc_w.T * (g_fc / math.sqrt(c4 * 16))
    fc_b = jnp.zeros((c4,), jnp.float32)
    out_w = nrm(next(kit), (1, c4)).T * (1.0 / math.sqrt(c4))   # (c4, 1)
    out_b = jnp.zeros((1,), jnp.float32)

    return {'block_res': block_res, 'channels': ch, 'blocks': blocks,
            'img_resolution': img_resolution, 'img_channels': img_channels,
            'b4': {'conv': ep_conv, 'fc_w': fc_w, 'fc_b': fc_b,
                   'out_w': out_w, 'out_b': out_b}}


def discriminator_forward(params, img_nchw):
    """Forward of Discriminator (resnet arch, c_dim=0).  Returns logits (N,1)."""
    img = jnp.transpose(img_nchw, (0, 2, 3, 1)).astype(jnp.bfloat16)  # ->NHWC
    N = img.shape[0]
    x = None
    # TODO(synk): progressive alpha-blending / camera prediction / dual
    # discriminator / MappingNetwork branches are inactive for this config.
    for res in params['block_res']:
        blk = params['blocks'][res]
        if blk['in_channels'] == 0:
            y = apply_conv(img, blk['fromrgb'])              # (N, res*res, C)
            x = y if x is None else x + y
            img = None                                       # resnet arch
        xs = x.reshape(N, res, res, -1)
        skip = apply_conv(xs, blk['skip'], out_dtype=jnp.float32)  # f32 skip
        h = apply_conv(xs, blk['conv0']).reshape(N, res, res, -1)
        x = apply_conv(h, blk['conv1'], residual=skip)       # conv1+skip fused

    # ----------------- DiscriminatorEpilogue (b4), cmap_dim == 0 ------------
    ep = params['b4']
    C = x.shape[-1]
    H = W = 4
    G = min(4, N)                                            # mbstd group = 4
    while N % G != 0:                                        # guard only
        G -= 1
    ng = N // G
    # Minibatch-std in plain JAX (tiny stat, no dedicated kernel launch).
    xf = x.reshape(N, -1).astype(jnp.float32)
    yg = xf.reshape(G, ng, -1)                               # G is the slow dim
    mu = jnp.mean(yg, axis=0, keepdims=True)
    std = jnp.sqrt(jnp.mean((yg - mu) ** 2, axis=0) + 1e-8)  # (ng, D)
    stat = jnp.tile(jnp.mean(std, axis=1), (G,))             # (N,) ; n -> n%ng
    std_map = jnp.broadcast_to(stat.reshape(N, 1, 1, 1),
                               (N, H, W, 1)).astype(jnp.bfloat16)
    pad_ch = jnp.zeros((N, H, W, _MBSTD_PAD - 1), jnp.bfloat16)
    xe = jnp.concatenate([x.reshape(N, H, W, C), std_map, pad_ch], axis=-1)

    h4 = apply_conv(xe, ep['conv'])                          # (N, 16, C4)
    hf = h4.reshape(N, -1)                                   # (H,W,C) flatten
    logits = fc2(hf, ep['fc_w'], ep['fc_b'], ep['out_w'], ep['out_b'])
    return logits


if __name__ == "__main__":
    key = jax.random.PRNGKey(0)
    kp, kx, k1, k2, k3 = jax.random.split(key, 5)

    # Sanity: the row-tiled / batch-blocked conv path matches the single-block
    # path (same taps, same accumulation order -> same bf16 rounding).
    xc = jax.random.normal(k1, (4, 18, 18, 32), jnp.float32) * 0.5
    wt = jax.random.normal(k2, (9, 32, 64), jnp.float32) * 0.1
    bb = jax.random.normal(k3, (64,), jnp.float32) * 0.1
    full = conv2d(xc, wt, bb, kh=3, kw=3, use_act=True)
    tiled = conv2d(xc, wt, bb, kh=3, kw=3, use_act=True, row_tile=4)
    assert jnp.allclose(full.astype(jnp.float32), tiled.astype(jnp.float32),
                        atol=2e-2, rtol=2e-2)

    # Small config: img_resolution=16, img_channels=3 -> blocks b16, b8, b4.
    # channel_base=1/64 -> channels {16:32, 8:64, 4:128}.
    params = init_discriminator_params(kp, img_resolution=16, img_channels=3,
                                       channel_base=1.0 / 64, channel_max=512)
    img = jax.random.normal(kx, (4, 3, 16, 16), jnp.float32)   # NCHW like torch
    fwd = jax.jit(lambda im: discriminator_forward(params, im))
    logits = fwd(img)
    jax.block_until_ready(logits)
    assert logits.shape == (4, 1), logits.shape
    assert bool(jnp.all(jnp.isfinite(logits)))
    print("KERNEL_OK")
</pallas_src>

<mosaic_0001>
module attributes {stable_mosaic.version = 11 : i64} {
  func.func @_conv_kernel(%arg0: i32, %arg1: i32, %arg2: memref<2x18x18x32xbf16, #tpu.memory_space<vmem>>, %arg3: memref<9x32x64xbf16, #tpu.memory_space<vmem>>, %arg4: memref<1x64xf32, #tpu.memory_space<vmem>>, %arg5: memref<2x256x64xbf16, #tpu.memory_space<vmem>>) attributes {dimension_semantics = [#tpu.dimension_semantics<arbitrary>, #tpu.dimension_semantics<parallel>], iteration_bounds = array<i64: 1, 2>, scalar_prefetch = 0 : i64, scratch_operands = 0 : i64, tpu.core_type = #tpu.core_type<tc>, window_params = [{transform_indices = @transform_0, window_bounds = array<i64: 2, 18, 18, 32>}, {transform_indices = @transform_1, window_bounds = array<i64: 9, 32, 64>}, {transform_indices = @transform_2, window_bounds = array<i64: 1, 64>}, {transform_indices = @transform_3, window_bounds = array<i64: 2, 256, 64>}]} {
    %c0 = arith.constant 0 : index
    %c0_0 = arith.constant 0 : index
    %c0_1 = arith.constant 0 : index
    %c0_2 = arith.constant 0 : index
    %0 = vector.load %arg2[%c0, %c0_0, %c0_1, %c0_2] : memref<2x18x18x32xbf16, #tpu.memory_space<vmem>>, vector<1x18x18x32xbf16>
    %1 = vector.shape_cast %0 : vector<1x18x18x32xbf16> to vector<18x18x32xbf16>
    %cst = arith.constant 0.000000e+00 : f32
    %2 = vector.broadcast %cst : f32 to vector<256x64xf32>
    %3 = vector.extract_strided_slice %1 {offsets = [0, 0, 0], sizes = [18, 16, 32], strides = [1, 1, 1]} : vector<18x18x32xbf16> to vector<18x16x32xbf16>
    %4 = vector.shape_cast %3 : vector<18x16x32xbf16> to vector<288x32xbf16>
    %5 = vector.extract_strided_slice %4 {offsets = [0, 0], sizes = [256, 32], strides = [1, 1]} : vector<288x32xbf16> to vector<256x32xbf16>
    %c0_3 = arith.constant 0 : index
    %c0_4 = arith.constant 0 : index
    %c0_5 = arith.constant 0 : index
    %6 = vector.load %arg3[%c0_3, %c0_4, %c0_5] : memref<9x32x64xbf16, #tpu.memory_space<vmem>>, vector<1x32x64xbf16>
    %7 = vector.shape_cast %6 : vector<1x32x64xbf16> to vector<32x64xbf16>
    %cst_6 = arith.constant dense<0.000000e+00> : vector<256x64xf32>
    %8 = tpu.matmul %5, %7, %cst_6 {dimension_numbers = #tpu.dot_dimension_numbers<[1], [0], [0], [1], [0, 0, 1, 1], [], []>} : vector<256x32xbf16>, vector<32x64xbf16>, vector<256x64xf32> -> vector<256x64xf32>
    %9 = arith.addf %2, %8 : vector<256x64xf32>
    %10 = vector.extract_strided_slice %4 {offsets = [16, 0], sizes = [256, 32], strides = [1, 1]} : vector<288x32xbf16> to vector<256x32xbf16>
    %c3 = arith.constant 3 : index
    %c0_7 = arith.constant 0 : index
    %c0_8 = arith.constant 0 : index
    %11 = vector.load %arg3[%c3, %c0_7, %c0_8] : memref<9x32x64xbf16, #tpu.memory_space<vmem>>, vector<1x32x64xbf16>
    %12 = vector.shape_cast %11 : vector<1x32x64xbf16> to vector<32x64xbf16>
    %cst_9 = arith.constant dense<0.000000e+00> : vector<256x64xf32>
    %13 = tpu.matmul %10, %12, %cst_9 {dimension_numbers = #tpu.dot_dimension_numbers<[1], [0], [0], [1], [0, 0, 1, 1], [], []>} : vector<256x32xbf16>, vector<32x64xbf16>, vector<256x64xf32> -> vector<256x64xf32>
    %14 = arith.addf %9, %13 : vector<256x64xf32>
    %15 = vector.extract_strided_slice %4 {offsets = [32, 0], sizes = [256, 32], strides = [1, 1]} : vector<288x32xbf16> to vector<256x32xbf16>
    %c6 = arith.constant 6 : index
    %c0_10 = arith.constant 0 : index
    %c0_11 = arith.constant 0 : index
    %16 = vector.load %arg3[%c6, %c0_10, %c0_11] : memref<9x32x64xbf16, #tpu.memory_space<vmem>>, vector<1x32x64xbf16>
    %17 = vector.shape_cast %16 : vector<1x32x64xbf16> to vector<32x64xbf16>
    %cst_12 = arith.constant dense<0.000000e+00> : vector<256x64xf32>
    %18 = tpu.matmul %15, %17, %cst_12 {dimension_numbers = #tpu.dot_dimension_numbers<[1], [0], [0], [1], [0, 0, 1, 1], [], []>} : vector<256x32xbf16>, vector<32x64xbf16>, vector<256x64xf32> -> vector<256x64xf32>
    %19 = arith.addf %14, %18 : vector<256x64xf32>
    %20 = vector.extract_strided_slice %1 {offsets = [0, 1, 0], sizes = [18, 16, 32], strides = [1, 1, 1]} : vector<18x18x32xbf16> to vector<18x16x32xbf16>
    %21 = vector.shape_cast %20 : vector<18x16x32xbf16> to vector<288x32xbf16>
    %22 = vector.extract_strided_slice %21 {offsets = [0, 0], sizes = [256, 32], strides = [1, 1]} : vector<288x32xbf16> to vector<256x32xbf16>
    %c1 = arith.constant 1 : index
    %c0_13 = arith.constant 0 : index
    %c0_14 = arith.constant 0 : index
    %23 = vector.load %arg3[%c1, %c0_13, %c0_14] : memref<9x32x64xbf16, #tpu.memory_space<vmem>>, vector<1x32x64xbf16>
    %24 = vector.shape_cast %23 : vector<1x32x64xbf16> to vector<32x64xbf16>
    %cst_15 = arith.constant dense<0.000000e+00> : vector<256x64xf32>
    %25 = tpu.matmul %22, %24, %cst_15 {dimension_numbers = #tpu.dot_dimension_numbers<[1], [0], [0], [1], [0, 0, 1, 1], [], []>} : vector<256x32xbf16>, vector<32x64xbf16>, vector<256x64xf32> -> vector<256x64xf32>
    %26 = arith.addf %19, %25 : vector<256x64xf32>
    %27 = vector.extract_strided_slice %21 {offsets = [16, 0], sizes = [256, 32], strides = [1, 1]} : vector<288x32xbf16> to vector<256x32xbf16>
    %c4 = arith.constant 4 : index
    %c0_16 = arith.constant 0 : index
    %c0_17 = arith.constant 0 : index
    %28 = vector.load %arg3[%c4, %c0_16, %c0_17] : memref<9x32x64xbf16, #tpu.memory_space<vmem>>, vector<1x32x64xbf16>
    %29 = vector.shape_cast %28 : vector<1x32x64xbf16> to vector<32x64xbf16>
    %cst_18 = arith.constant dense<0.000000e+00> : vector<256x64xf32>
    %30 = tpu.matmul %27, %29, %cst_18 {dimension_numbers = #tpu.dot_dimension_numbers<[1], [0], [0], [1], [0, 0, 1, 1], [], []>} : vector<256x32xbf16>, vector<32x64xbf16>, vector<256x64xf32> -> vector<256x64xf32>
    %31 = arith.addf %26, %30 : vector<256x64xf32>
    %32 = vector.extract_strided_slice %21 {offsets = [32, 0], sizes = [256, 32], strides = [1, 1]} : vector<288x32xbf16> to vector<256x32xbf16>
    %c7 = arith.constant 7 : index
    %c0_19 = arith.constant 0 : index
    %c0_20 = arith.constant 0 : index
    %33 = vector.load %arg3[%c7, %c0_19, %c0_20] : memref<9x32x64xbf16, #tpu.memory_space<vmem>>, vector<1x32x64xbf16>
    %34 = vector.shape_cast %33 : vector<1x32x64xbf16> to vector<32x64xbf16>
    %cst_21 = arith.constant dense<0.000000e+00> : vector<256x64xf32>
    %35 = tpu.matmul %32, %34, %cst_21 {dimension_numbers = #tpu.dot_dimension_numbers<[1], [0], [0], [1], [0, 0, 1, 1], [], []>} : vector<256x32xbf16>, vector<32x64xbf16>, vector<256x64xf32> -> vector<256x64xf32>
    %36 = arith.addf %31, %35 : vector<256x64xf32>
    %37 = vector.extract_strided_slice %1 {offsets = [0, 2, 0], sizes = [18, 16, 32], strides = [1, 1, 1]} : vector<18x18x32xbf16> to vector<18x16x32xbf16>
    %38 = vector.shape_cast %37 : vector<18x16x32xbf16> to vector<288x32xbf16>
    %39 = vector.extract_strided_slice %38 {offsets = [0, 0], sizes = [256, 32], strides = [1, 1]} : vector<288x32xbf16> to vector<256x32xbf16>
    %c2 = arith.constant 2 : index
    %c0_22 = arith.constant 0 : index
    %c0_23 = arith.constant 0 : index
    %40 = vector.load %arg3[%c2, %c0_22, %c0_23] : memref<9x32x64xbf16, #tpu.memory_space<vmem>>, vector<1x32x64xbf16>
    %41 = vector.shape_cast %40 : vector<1x32x64xbf16> to vector<32x64xbf16>
    %cst_24 = arith.constant dense<0.000000e+00> : vector<256x64xf32>
    %42 = tpu.matmul %39, %41, %cst_24 {dimension_numbers = #tpu.dot_dimension_numbers<[1], [0], [0], [1], [0, 0, 1, 1], [], []>} : vector<256x32xbf16>, vector<32x64xbf16>, vector<256x64xf32> -> vector<256x64xf32>
    %43 = arith.addf %36, %42 : vector<256x64xf32>
    %44 = vector.extract_strided_slice %38 {offsets = [16, 0], sizes = [256, 32], strides = [1, 1]} : vector<288x32xbf16> to vector<256x32xbf16>
    %c5 = arith.constant 5 : index
    %c0_25 = arith.constant 0 : index
    %c0_26 = arith.constant 0 : index
    %45 = vector.load %arg3[%c5, %c0_25, %c0_26] : memref<9x32x64xbf16, #tpu.memory_space<vmem>>, vector<1x32x64xbf16>
    %46 = vector.shape_cast %45 : vector<1x32x64xbf16> to vector<32x64xbf16>
    %cst_27 = arith.constant dense<0.000000e+00> : vector<256x64xf32>
    %47 = tpu.matmul %44, %46, %cst_27 {dimension_numbers = #tpu.dot_dimension_numbers<[1], [0], [0], [1], [0, 0, 1, 1], [], []>} : vector<256x32xbf16>, vector<32x64xbf16>, vector<256x64xf32> -> vector<256x64xf32>
    %48 = arith.addf %43, %47 : vector<256x64xf32>
    %49 = vector.extract_strided_slice %38 {offsets = [32, 0], sizes = [256, 32], strides = [1, 1]} : vector<288x32xbf16> to vector<256x32xbf16>
    %c8 = arith.constant 8 : index
    %c0_28 = arith.constant 0 : index
    %c0_29 = arith.constant 0 : index
    %50 = vector.load %arg3[%c8, %c0_28, %c0_29] : memref<9x32x64xbf16, #tpu.memory_space<vmem>>, vector<1x32x64xbf16>
    %51 = vector.shape_cast %50 : vector<1x32x64xbf16> to vector<32x64xbf16>
    %cst_30 = arith.constant dense<0.000000e+00> : vector<256x64xf32>
    %52 = tpu.matmul %49, %51, %cst_30 {dimension_numbers = #tpu.dot_dimension_numbers<[1], [0], [0], [1], [0, 0, 1, 1], [], []>} : vector<256x32xbf16>, vector<32x64xbf16>, vector<256x64xf32> -> vector<256x64xf32>
    %53 = arith.addf %48, %52 : vector<256x64xf32>
    %c0_31 = arith.constant 0 : index
    %c0_32 = arith.constant 0 : index
    %54 = vector.load %arg4[%c0_31, %c0_32] : memref<1x64xf32, #tpu.memory_space<vmem>>, vector<1x64xf32>
    %55 = vector.broadcast %54 : vector<1x64xf32> to vector<256x64xf32>
    %56 = arith.addf %53, %55 : vector<256x64xf32>
    %cst_33 = arith.constant 0.000000e+00 : f32
    %57 = vector.broadcast %cst_33 : f32 to vector<256x64xf32>
    %58 = arith.cmpf oge, %56, %57 : vector<256x64xf32>
    %cst_34 = arith.constant 2.000000e-01 : f32
    %59 = vector.broadcast %cst_34 : f32 to vector<256x64xf32>
    %60 = arith.mulf %56, %59 : vector<256x64xf32>
    %61 = arith.select %58, %56, %60 : vector<256x64xi1>, vector<256x64xf32>
    %62 = arith.truncf %61 : vector<256x64xf32> to vector<256x64xbf16>
    %c0_35 = arith.constant 0 : index
    %c0_36 = arith.constant 0 : index
    %c0_37 = arith.constant 0 : index
    %63 = vector.load %arg5[%c0_35, %c0_36, %c0_37] : memref<2x256x64xbf16, #tpu.memory_space<vmem>>, vector<1x256x64xbf16>
    %64 = vector.shape_cast %63 : vector<1x256x64xbf16> to vector<256x64xbf16>
    %65 = vector.shape_cast %62 : vector<256x64xbf16> to vector<1x256x64xbf16>
    tpu.vector_store %arg5[%c0_35, %c0_36, %c0_37], %65 {strides = array<i32>} : memref<2x256x64xbf16, #tpu.memory_space<vmem>>, vector<1x256x64xbf16>,
    %c1_38 = arith.constant 1 : index
    %c0_39 = arith.constant 0 : index
    %c0_40 = arith.constant 0 : index
    %c0_41 = arith.constant 0 : index
    %66 = vector.load %arg2[%c1_38, %c0_39, %c0_40, %c0_41] : memref<2x18x18x32xbf16, #tpu.memory_space<vmem>>, vector<1x18x18x32xbf16>
    %67 = vector.shape_cast %66 : vector<1x18x18x32xbf16> to vector<18x18x32xbf16>
    %cst_42 = arith.constant 0.000000e+00 : f32
    %68 = vector.broadcast %cst_42 : f32 to vector<256x64xf32>
    %69 = vector.extract_strided_slice %67 {offsets = [0, 0, 0], sizes = [18, 16, 32], strides = [1, 1, 1]} : vector<18x18x32xbf16> to vector<18x16x32xbf16>
    %70 = vector.shape_cast %69 : vector<18x16x32xbf16> to vector<288x32xbf16>
    %71 = vector.extract_strided_slice %70 {offsets = [0, 0], sizes = [256, 32], strides = [1, 1]} : vector<288x32xbf16> to vector<256x32xbf16>
    %c0_43 = arith.constant 0 : index
    %c0_44 = arith.constant 0 : index
    %c0_45 = arith.constant 0 : index
    %72 = vector.load %arg3[%c0_43, %c0_44, %c0_45] : memref<9x32x64xbf16, #tpu.memory_space<vmem>>, vector<1x32x64xbf16>
    %73 = vector.shape_cast %72 : vector<1x32x64xbf16> to vector<32x64xbf16>
    %cst_46 = arith.constant dense<0.000000e+00> : vector<256x64xf32>
    %74 = tpu.matmul %71, %73, %cst_46 {dimension_numbers = #tpu.dot_dimension_numbers<[1], [0], [0], [1], [0, 0, 1, 1], [], []>} : vector<256x32xbf16>, vector<32x64xbf16>, vector<256x64xf32> -> vector<256x64xf32>
    %75 = arith.addf %68, %74 : vector<256x64xf32>
    %76 = vector.extract_strided_slice %70 {offsets = [16, 0], sizes = [256, 32], strides = [1, 1]} : vector<288x32xbf16> to vector<256x32xbf16>
    %c3_47 = arith.constant 3 : index
    %c0_48 = arith.constant 0 : index
    %c0_49 = arith.constant 0 : index
    %77 = vector.load %arg3[%c3_47, %c0_48, %c0_49] : memref<9x32x64xbf16, #tpu.memory_space<vmem>>, vector<1x32x64xbf16>
    %78 = vector.shape_cast %77 : vector<1x32x64xbf16> to vector<32x64xbf16>
    %cst_50 = arith.constant dense<0.000000e+00> : vector<256x64xf32>
    %79 = tpu.matmul %76, %78, %cst_50 {dimension_numbers = #tpu.dot_dimension_numbers<[1], [0], [0], [1], [0, 0, 1, 1], [], []>} : vector<256x32xbf16>, vector<32x64xbf16>, vector<256x64xf32> -> vector<256x64xf32>
    %80 = arith.addf %75, %79 : vector<256x64xf32>
    %81 = vector.extract_strided_slice %70 {offsets = [32, 0], sizes = [256, 32], strides = [1, 1]} : vector<288x32xbf16> to vector<256x32xbf16>
    %c6_51 = arith.constant 6 : index
    %c0_52 = arith.constant 0 : index
    %c0_53 = arith.constant 0 : index
    %82 = vector.load %arg3[%c6_51, %c0_52, %c0_53] : memref<9x32x64xbf16, #tpu.memory_space<vmem>>, vector<1x32x64xbf16>
    %83 = vector.shape_cast %82 : vector<1x32x64xbf16> to vector<32x64xbf16>
    %cst_54 = arith.constant dense<0.000000e+00> : vector<256x64xf32>
    %84 = tpu.matmul %81, %83, %cst_54 {dimension_numbers = #tpu.dot_dimension_numbers<[1], [0], [0], [1], [0, 0, 1, 1], [], []>} : vector<256x32xbf16>, vector<32x64xbf16>, vector<256x64xf32> -> vector<256x64xf32>
    %85 = arith.addf %80, %84 : vector<256x64xf32>
    %86 = vector.extract_strided_slice %67 {offsets = [0, 1, 0], sizes = [18, 16, 32], strides = [1, 1, 1]} : vector<18x18x32xbf16> to vector<18x16x32xbf16>
    %87 = vector.shape_cast %86 : vector<18x16x32xbf16> to vector<288x32xbf16>
    %88 = vector.extract_strided_slice %87 {offsets = [0, 0], sizes = [256, 32], strides = [1, 1]} : vector<288x32xbf16> to vector<256x32xbf16>
    %c1_55 = arith.constant 1 : index
    %c0_56 = arith.constant 0 : index
    %c0_57 = arith.constant 0 : index
    %89 = vector.load %arg3[%c1_55, %c0_56, %c0_57] : memref<9x32x64xbf16, #tpu.memory_space<vmem>>, vector<1x32x64xbf16>
    %90 = vector.shape_cast %89 : vector<1x32x64xbf16> to vector<32x64xbf16>
    %cst_58 = arith.constant dense<0.000000e+00> : vector<256x64xf32>
    %91 = tpu.matmul %88, %90, %cst_58 {dimension_numbers = #tpu.dot_dimension_numbers<[1], [0], [0], [1], [0, 0, 1, 1], [], []>} : vector<256x32xbf16>, vector<32x64xbf16>, vector<256x64xf32> -> vector<256x64xf32>
    %92 = arith.addf %85, %91 : vector<256x64xf32>
    %93 = vector.extract_strided_slice %87 {offsets = [16, 0], sizes = [256, 32], strides = [1, 1]} : vector<288x32xbf16> to vector<256x32xbf16>
    %c4_59 = arith.constant 4 : index
    %c0_60 = arith.constant 0 : index
    %c0_61 = arith.constant 0 : index
    %94 = vector.load %arg3[%c4_59, %c0_60, %c0_61] : memref<9x32x64xbf16, #tpu.memory_space<vmem>>, vector<1x32x64xbf16>
    %95 = vector.shape_cast %94 : vector<1x32x64xbf16> to vector<32x64xbf16>
    %cst_62 = arith.constant dense<0.000000e+00> : vector<256x64xf32>
    %96 = tpu.matmul %93, %95, %cst_62 {dimension_numbers = #tpu.dot_dimension_numbers<[1], [0], [0], [1], [0, 0, 1, 1], [], []>} : vector<256x32xbf16>, vector<32x64xbf16>, vector<256x64xf32> -> vector<256x64xf32>
    %97 = arith.addf %92, %96 : vector<256x64xf32>
    %98 = vector.extract_strided_slice %87 {offsets = [32, 0], sizes = [256, 32], strides = [1, 1]} : vector<288x32xbf16> to vector<256x32xbf16>
    %c7_63 = arith.constant 7 : index
    %c0_64 = arith.constant 0 : index
    %c0_65 = arith.constant 0 : index
    %99 = vector.load %arg3[%c7_63, %c0_64, %c0_65] : memref<9x32x64xbf16, #tpu.memory_space<vmem>>, vector<1x32x64xbf16>
    %100 = vector.shape_cast %99 : vector<1x32x64xbf16> to vector<32x64xbf16>
    %cst_66 = arith.constant dense<0.000000e+00> : vector<256x64xf32>
    %101 = tpu.matmul %98, %100, %cst_66 {dimension_numbers = #tpu.dot_dimension_numbers<[1], [0], [0], [1], [0, 0, 1, 1], [], []>} : vector<256x32xbf16>, vector<32x64xbf16>, vector<256x64xf32> -> vector<256x64xf32>
    %102 = arith.addf %97, %101 : vector<256x64xf32>
    %103 = vector.extract_strided_slice %67 {offsets = [0, 2, 0], sizes = [18, 16, 32], strides = [1, 1, 1]} : vector<18x18x32xbf16> to vector<18x16x32xbf16>
    %104 = vector.shape_cast %103 : vector<18x16x32xbf16> to vector<288x32xbf16>
    %105 = vector.extract_strided_slice %104 {offsets = [0, 0], sizes = [256, 32], strides = [1, 1]} : vector<288x32xbf16> to vector<256x32xbf16>
    %c2_67 = arith.constant 2 : index
    %c0_68 = arith.constant 0 : index
    %c0_69 = arith.constant 0 : index
    %106 = vector.load %arg3[%c2_67, %c0_68, %c0_69] : memref<9x32x64xbf16, #tpu.memory_space<vmem>>, vector<1x32x64xbf16>
    %107 = vector.shape_cast %106 : vector<1x32x64xbf16> to vector<32x64xbf16>
    %cst_70 = arith.constant dense<0.000000e+00> : vector<256x64xf32>
    %108 = tpu.matmul %105, %107, %cst_70 {dimension_numbers = #tpu.dot_dimension_numbers<[1], [0], [0], [1], [0, 0, 1, 1], [], []>} : vector<256x32xbf16>, vector<32x64xbf16>, vector<256x64xf32> -> vector<256x64xf32>
    %109 = arith.addf %102, %108 : vector<256x64xf32>
    %110 = vector.extract_strided_slice %104 {offsets = [16, 0], sizes = [256, 32], strides = [1, 1]} : vector<288x32xbf16> to vector<256x32xbf16>
    %c5_71 = arith.constant 5 : index
    %c0_72 = arith.constant 0 : index
    %c0_73 = arith.constant 0 : index
    %111 = vector.load %arg3[%c5_71, %c0_72, %c0_73] : memref<9x32x64xbf16, #tpu.memory_space<vmem>>, vector<1x32x64xbf16>
    %112 = vector.shape_cast %111 : vector<1x32x64xbf16> to vector<32x64xbf16>
    %cst_74 = arith.constant dense<0.000000e+00> : vector<256x64xf32>
    %113 = tpu.matmul %110, %112, %cst_74 {dimension_numbers = #tpu.dot_dimension_numbers<[1], [0], [0], [1], [0, 0, 1, 1], [], []>} : vector<256x32xbf16>, vector<32x64xbf16>, vector<256x64xf32> -> vector<256x64xf32>
    %114 = arith.addf %109, %113 : vector<256x64xf32>
    %115 = vector.extract_strided_slice %104 {offsets = [32, 0], sizes = [256, 32], strides = [1, 1]} : vector<288x32xbf16> to vector<256x32xbf16>
    %c8_75 = arith.constant 8 : index
    %c0_76 = arith.constant 0 : index
    %c0_77 = arith.constant 0 : index
    %116 = vector.load %arg3[%c8_75, %c0_76, %c0_77] : memref<9x32x64xbf16, #tpu.memory_space<vmem>>, vector<1x32x64xbf16>
    %117 = vector.shape_cast %116 : vector<1x32x64xbf16> to vector<32x64xbf16>
    %cst_78 = arith.constant dense<0.000000e+00> : vector<256x64xf32>
    %118 = tpu.matmul %115, %117, %cst_78 {dimension_numbers = #tpu.dot_dimension_numbers<[1], [0], [0], [1], [0, 0, 1, 1], [], []>} : vector<256x32xbf16>, vector<32x64xbf16>, vector<256x64xf32> -> vector<256x64xf32>
    %119 = arith.addf %114, %118 : vector<256x64xf32>
    %c0_79 = arith.constant 0 : index
    %c0_80 = arith.constant 0 : index
    %120 = vector.load %arg4[%c0_79, %c0_80] : memref<1x64xf32, #tpu.memory_space<vmem>>, vector<1x64xf32>
    %121 = vector.broadcast %120 : vector<1x64xf32> to vector<256x64xf32>
    %122 = arith.addf %119, %121 : vector<256x64xf32>
    %cst_81 = arith.constant 0.000000e+00 : f32
    %123 = vector.broadcast %cst_81 : f32 to vector<256x64xf32>
    %124 = arith.cmpf oge, %122, %123 : vector<256x64xf32>
    %cst_82 = arith.constant 2.000000e-01 : f32
    %125 = vector.broadcast %cst_82 : f32 to vector<256x64xf32>
    %126 = arith.mulf %122, %125 : vector<256x64xf32>
    %127 = arith.select %124, %122, %126 : vector<256x64xi1>, vector<256x64xf32>
    %128 = arith.truncf %127 : vector<256x64xf32> to vector<256x64xbf16>
    %c1_83 = arith.constant 1 : index
    %c0_84 = arith.constant 0 : index
    %c0_85 = arith.constant 0 : index
    %129 = vector.load %arg5[%c1_83, %c0_84, %c0_85] : memref<2x256x64xbf16, #tpu.memory_space<vmem>>, vector<1x256x64xbf16>
    %130 = vector.shape_cast %129 : vector<1x256x64xbf16> to vector<256x64xbf16>
    %131 = vector.shape_cast %128 : vector<256x64xbf16> to vector<1x256x64xbf16>
    tpu.vector_store %arg5[%c1_83, %c0_84, %c0_85], %131 {strides = array<i32>} : memref<2x256x64xbf16, #tpu.memory_space<vmem>>, vector<1x256x64xbf16>,
    return
  }
  func.func @transform_0(%arg0: i32, %arg1: i32) -> (i32, i32, i32, i32) {
    %c0_i32 = arith.constant 0 : i32
    %c0_i32_0 = arith.constant 0 : i32
    %c0_i32_1 = arith.constant 0 : i32
    %c0_i32_2 = arith.constant 0 : i32
    return %arg1, %c0_i32, %c0_i32_0, %c0_i32_1 : i32, i32, i32, i32
  }
  func.func @transform_1(%arg0: i32, %arg1: i32) -> (i32, i32, i32) {
    %c0_i32 = arith.constant 0 : i32
    %c0_i32_0 = arith.constant 0 : i32
    %c0_i32_1 = arith.constant 0 : i32
    return %c0_i32, %c0_i32_0, %arg0 : i32, i32, i32
  }
  func.func @transform_2(%arg0: i32, %arg1: i32) -> (i32, i32) {
    %c0_i32 = arith.constant 0 : i32
    %c0_i32_0 = arith.constant 0 : i32
    return %c0_i32, %arg0 : i32, i32
  }
  func.func @transform_3(%arg0: i32, %arg1: i32) -> (i32, i32, i32) {
    %c0_i32 = arith.constant 0 : i32
    %c0_i32_0 = arith.constant 0 : i32
    return %arg1, %c0_i32, %arg0 : i32, i32, i32
  }
}

</mosaic_0001>

<llo_original>
// kernel: tpu_custom_call.1
$region0: #{tpu_custom_call.1}
  #allocation0 [shape = 'u32[]', space=smem, size = 0x4, offset = 0x4, fixed_abs, tag = 'smem constant byte address 0x4 - core index']
  #allocation1 [shape = 'u32[144,128]{1,0:T(1,128)}', space=vmem, size = 0x12000, scoped, tag = 'internal scratch']
  %s0 = inlined_call_operand.vmem [shape: bf16[4,18,18,32], index: 0, kind: input, shape index: {}]
  %s1 = inlined_call_operand.vmem [shape: bf16[9,32,64], index: 1, kind: input, shape index: {}]
  %s2 = inlined_call_operand.vmem [shape: f32[1,64], index: 2, kind: input, shape index: {}]
  %s3 = inlined_call_operand.vmem [shape: bf16[4,256,64], index: 3, kind: output, shape index: {}]
  %s4 = sld [smem:[#allocation0]]
  $region45: #{tpu_custom_call.1} parent=0
    _
  %s6 = ssub.s32 1, %s4
  %s7 = scalar_select 0, %s6, %s4
  loop: start=0, step=1, limit=4
  $region2: #{tpu_custom_call.1} parent=0 // loop_pre_header
    _
  $region3: #{tpu_custom_call.1} parent=0 // loop_header
    %s9 = sphi 0, %s13
    %p10 = scmp.ge.s32.totalorder %s9, 4
    %s16 = sphi 0, %s28
    %s17 = sphi 0, %s24
    %s18 = sphi 0, %s16
    %s19 = sphi 0, %s17
    %s20 = sphi 0, %s18
    %s21 = sphi 0, %s19
    %s31 = sphi 0, %s33
    %s34 = sphi 0, %s31
    %s35 = sphi 0, %s34
    %s51 = sphi 0, %s35
    %s57 = sphi 0, %s59
    %s60 = sphi 0, %s57
    %s61 = sphi 0, %s60
    %s77 = sphi 0, %s61
    %s83 = sphi 0, %s85
    %s86 = sphi 0, %s83
    %s87 = sphi 0, %s86
    %s103 = sphi 0, %s87
    %s111 = sphi 0, %s113
    %s114 = sphi 0, %s111
    %s115 = sphi 0, %s114
    %s131 = sphi 0, %s115
  $region4: #{tpu_custom_call.1} parent=0 // loop_header_branch
    %12 = sbr.rel (%p10) target = $region8
  $region5: #{tpu_custom_call.1} parent=0 // loop_body
    %s14 = ssub.s32 %s9, 1
    %s15 = ssub.s32 %s9, 2
    %s22 = sadd.s32 1, %s17
    %p23 = scmp.ge.s32.totalorder %s22, 2
    %s24 = scalar_select %p23, 0, %s22
    %s25 = sadd.s32 1, %s16
    %s26 = scalar_select %p23, %s25, %s16
    %p27 = scmp.ge.s32.totalorder %s26, 1
    %s28 = scalar_select %p27, 0, %s26
    %s29 = ssub.s32 %s17, %s24
    %p30 = scmp.eq.s32.totalorder %s29, 0
    %s32 = sadd.s32 %s31, 1
    %s33 = scalar_select %p30, %s31, %s32
    %p36 = pneg %p30
    %p37 = scmp.eq.s32.totalorder %s9, 1
    %p38 = por %p36, %p37
    %p39 = scmp.ne.s32.totalorder %s31, %s34
    %p40 = scmp.eq.s32.totalorder %s9, 0
    %p41 = por %p39, %p40
    %p42 = scmp.ne.s32.totalorder %s31, %s34
    %p43 = scmp.eq.s32.totalorder %s14, 1
    %p44 = por %p42, %p43
    %p45 = scmp.ne.s32.totalorder %s34, %s35
    %p46 = scmp.eq.s32.totalorder %s14, 0
    %p47 = por %p45, %p46
    %p48 = scmp.ne.s32.totalorder %s34, %s35
    %p49 = scmp.eq.s32.totalorder %s15, 1
    %p50 = por %p48, %p49
    %p52 = scmp.ne.s32.totalorder %s35, %s51
    %p53 = scmp.eq.s32.totalorder %s15, 0
    %p54 = por %p52, %p53
    %s55 = ssub.s32 %s16, %s28
    %p56 = scmp.eq.s32.totalorder %s55, 0
    %s58 = sadd.s32 %s57, 1
    %s59 = scalar_select %p56, %s57, %s58
    %p62 = pneg %p56
    %p63 = scmp.eq.s32.totalorder %s9, 1
    %p64 = por %p62, %p63
    %p65 = scmp.ne.s32.totalorder %s57, %s60
    %p66 = scmp.eq.s32.totalorder %s9, 0
    %p67 = por %p65, %p66
    %p68 = scmp.ne.s32.totalorder %s57, %s60
    %p69 = scmp.eq.s32.totalorder %s14, 1
    %p70 = por %p68, %p69
    %p71 = scmp.ne.s32.totalorder %s60, %s61
    %p72 = scmp.eq.s32.totalorder %s14, 0
    %p73 = por %p71, %p72
    %p74 = scmp.ne.s32.totalorder %s60, %s61
    %p75 = scmp.eq.s32.totalorder %s15, 1
    %p76 = por %p74, %p75
    %p78 = scmp.ne.s32.totalorder %s61, %s77
    %p79 = scmp.eq.s32.totalorder %s15, 0
    %p80 = por %p78, %p79
    %s81 = ssub.s32 %s16, %s28
    %p82 = scmp.eq.s32.totalorder %s81, 0
    %s84 = sadd.s32 %s83, 1
    %s85 = scalar_select %p82, %s83, %s84
    %p88 = pneg %p82
    %p89 = scmp.eq.s32.totalorder %s9, 1
    %p90 = por %p88, %p89
    %p91 = scmp.ne.s32.totalorder %s83, %s86
    %p92 = scmp.eq.s32.totalorder %s9, 0
    %p93 = por %p91, %p92
    %p94 = scmp.ne.s32.totalorder %s83, %s86
    %p95 = scmp.eq.s32.totalorder %s14, 1
    %p96 = por %p94, %p95
    %p97 = scmp.ne.s32.totalorder %s86, %s87
    %p98 = scmp.eq.s32.totalorder %s14, 0
    %p99 = por %p97, %p98
    %p100 = scmp.ne.s32.totalorder %s86, %s87
    %p101 = scmp.eq.s32.totalorder %s15, 1
    %p102 = por %p100, %p101
    %p104 = scmp.ne.s32.totalorder %s87, %s103
    %p105 = scmp.eq.s32.totalorder %s15, 0
    %p106 = por %p104, %p105
    %s107 = ssub.s32 %s17, %s24
    %s108 = ssub.s32 %s16, %s28
    %s109 = sor.u32 %s107, %s108
    %p110 = scmp.eq.s32.totalorder %s109, 0
    %s112 = sadd.s32 %s111, 1
    %s113 = scalar_select %p110, %s111, %s112
    %p116 = pneg %p110
    %p117 = scmp.eq.s32.totalorder %s9, 1
    %p118 = por %p116, %p117
    %p119 = scmp.ne.s32.totalorder %s111, %s114
    %p120 = scmp.eq.s32.totalorder %s9, 0
    %p121 = por %p119, %p120
    %p122 = scmp.ne.s32.totalorder %s111, %s114
    %p123 = scmp.eq.s32.totalorder %s14, 1
    %p124 = por %p122, %p123
    %p125 = scmp.ne.s32.totalorder %s114, %s115
    %p126 = scmp.eq.s32.totalorder %s14, 0
    %p127 = por %p125, %p126
    %p128 = scmp.ne.s32.totalorder %s114, %s115
    %p129 = scmp.eq.s32.totalorder %s15, 1
    %p130 = por %p128, %p129
    %p132 = scmp.ne.s32.totalorder %s115, %s131
    %p133 = scmp.eq.s32.totalorder %s15, 0
    %p134 = por %p132, %p133
    %p135 = scmp.le.s32.totalorder 1, %s9
    %p136 = scmp.lt.s32.totalorder %s9, 3
    %p137 = pnand %p135, %p136
    %p138 = pneg %p137
    // Predicated region
    $region9: #{tpu_custom_call.1} parent=5 // pred_check
      _
    $region10: #{tpu_custom_call.1} parent=5 // pred_check_branch
      %140 = sbr.rel (%p137) target = $region12
    $region11: #{tpu_custom_call.1} parent=5 // pred_region
      %s141 = ssub.s32 %s9, 1
      // Predicated region
      $region13: #{tpu_custom_call.1} parent=11 // pred_check
        %p142 = pneg %p73
      $region14: #{tpu_custom_call.1} parent=11 // pred_check_branch
        %144 = sbr.rel (%p142) target = $region16
      $region15: #{tpu_custom_call.1} parent=11 // pred_region
        %p145 = scmp.lt.s32.totalorder %s18, 0
        %s146 = scalar_select %p145, %s18, 0
        %s147 = smul.addr %s146, 4
        %s148 = scalar_lea.vmem %s1, %s147
      $region16: #{tpu_custom_call.1} parent=11 // pred_fallthru
        _
      // Predicated region
      $region17: #{tpu_custom_call.1} parent=11 // pred_check
        %p149 = pneg %p99
      $region18: #{tpu_custom_call.1} parent=11 // pred_check_branch
        %151 = sbr.rel (%p149) target = $region20
      $region19: #{tpu_custom_call.1} parent=11 // pred_region
        %p152 = scmp.lt.s32.totalorder %s18, 0
        %s153 = scalar_select %p152, %s18, 0
        %s154 = scalar_lea.vmem %s2, %s153
      $region20: #{tpu_custom_call.1} parent=11 // pred_fallthru
        _
    $region12: #{tpu_custom_call.1} parent=5 // pred_fallthru
      _
    %p155 = scmp.lt.s32.totalorder %s9, 2
    // Predicated region
    $region21: #{tpu_custom_call.1} parent=5 // pred_check
      %p156 = pneg %p155
    $region22: #{tpu_custom_call.1} parent=5 // pred_check_branch
      %158 = sbr.rel (%p156) target = $region24
    $region23: #{tpu_custom_call.1} parent=5 // pred_region
      // Predicated region
      $region25: #{tpu_custom_call.1} parent=23 // pred_check
        %p159 = pneg %p41
      $region26: #{tpu_custom_call.1} parent=23 // pred_check_branch
        %161 = sbr.rel (%p159) target = $region28
      $region27: #{tpu_custom_call.1} parent=23 // pred_region
        %s162 = smul.u32 2, %s17
        %p163 = scmp.lt.s32.totalorder %s162, 3
        %s164 = scalar_select %p163, %s162, 3
        %s165 = smul.addr %s164, 54
        %s166 = smul.addr %s165, 4
        %s167 = scalar_lea.vmem %s0, %s166
        %s168 = smul.u32 2, %s17
      $region28: #{tpu_custom_call.1} parent=23 // pred_fallthru
        _
    $region24: #{tpu_custom_call.1} parent=5 // pred_fallthru
      _
    %p169 = scmp.le.s32.totalorder 1, %s9
    %p170 = scmp.lt.s32.totalorder %s9, 3
    %p171 = pnand %p169, %p170
    %p172 = pneg %p171
    // Predicated region
    $region29: #{tpu_custom_call.1} parent=5 // pred_check
      _
    $region30: #{tpu_custom_call.1} parent=5 // pred_check_branch
      %174 = sbr.rel (%p171) target = $region32
    $region31: #{tpu_custom_call.1} parent=5 // pred_region
      %s175 = ssub.s32 %s9, 1
      %s176 = smul.u32 2, %s19
      %p177 = scmp.lt.s32.totalorder %s176, 3
      %s178 = scalar_select %p177, %s176, 3
      %s179 = smul.addr %s178, 54
      %s180 = smul.addr %s179, 4
      %s181 = scalar_lea.vmem %s0, %s180
      %p182 = pneg %p47
      %p183 = pneg %p44
      %p184 = scmp.lt.s32.totalorder %s18, 0
      %s185 = scalar_select %p184, %s18, 0
      %s186 = smul.addr %s185, 4
      %s187 = scalar_lea.vmem %s1, %s186
      %p188 = pneg %p73
      %p189 = pneg %p70
      %p190 = scmp.lt.s32.totalorder %s18, 0
      %s191 = scalar_select %p190, %s18, 0
      %s192 = scalar_lea.vmem %s2, %s191
      %p193 = pneg %p99
      %p194 = pneg %p96
      %p195 = pneg %p127
      %p196 = pneg %p124
      %s197 = smul.u32 2, %s19
      %p198 = scmp.lt.s32.totalorder %s197, 3
      %s199 = scalar_select %p198, %s197, 3
      %p200 = scmp.lt.s32.totalorder %s18, 0
      %s201 = scalar_select %p200, %s18, 0
      %s202 = smul.addr %s199, 32
      %s203 = sadd.s32 %s201, %s202
      %s204 = smul.addr %s203, 4
      %s205 = scalar_lea.vmem %s3, %s204
      %s206 = smul.u32 2, %s19
      %p207 = scmp.lt.s32.totalorder %s206, 3
      %s208 = scalar_select %p207, %s206, 3
      %s209 = smul.addr %s208, 54
      %s210 = smul.addr %s209, 4
      %s211 = scalar_lea.vmem %s0, %s210
      %s212 = smul.u32 2, %s19
      %p213 = scmp.lt.s32.totalorder %s18, 0
      %s214 = scalar_select %p213, %s18, 0
      %s215 = smul.addr %s214, 4
      %s216 = scalar_lea.vmem %s1, %s215
      %p217 = scmp.lt.s32.totalorder %s18, 0
      %s218 = scalar_select %p217, %s18, 0
      %s219 = scalar_lea.vmem %s2, %s218
      %s220 = smul.u32 2, %s19
      %p221 = scmp.lt.s32.totalorder %s220, 3
      %s222 = scalar_select %p221, %s220, 3
      %p223 = scmp.lt.s32.totalorder %s18, 0
      %s224 = scalar_select %p223, %s18, 0
      %s225 = smul.addr %s222, 32
      %s226 = sadd.s32 %s224, %s225
      %s227 = smul.addr %s226, 4
      %s228 = scalar_lea.vmem %s3, %s227
      %s229 = smul.u32 2, %s19
      %v231 = vld [vmem:[%s211] sm:$0xf]
      %v232 = vld [vmem:[%s211 + $0x4] sm:$0xf]
      %v233 = vld [vmem:[%s211 + $0x8] sm:$0x1]
      %v234 = vld [vmem:[%s211 + $0xc] sm:$0xf]
      %v235 = vld [vmem:[%s211 + $0x10] sm:$0xf]
      %v236 = vld [vmem:[%s211 + $0x14] sm:$0x1]
      %v237 = vld [vmem:[%s211 + $0x18] sm:$0xf]
      %v238 = vld [vmem:[%s211 + $0x1c] sm:$0xf]
      %v239 = vld [vmem:[%s211 + $0x20] sm:$0x1]
      %v240 = vld [vmem:[%s211 + $0x24] sm:$0xf]
      %v241 = vld [vmem:[%s211 + $0x28] sm:$0xf]
      %v242 = vld [vmem:[%s211 + $0x2c] sm:$0x1]
      %v243 = vld [vmem:[%s211 + $0x30] sm:$0xf]
      %v244 = vld [vmem:[%s211 + $0x34] sm:$0xf]
      %v245 = vld [vmem:[%s211 + $0x38] sm:$0x1]
      %v246 = vld [vmem:[%s211 + $0x3c] sm:$0xf]
      %v247 = vld [vmem:[%s211 + $0x40] sm:$0xf]
      %v248 = vld [vmem:[%s211 + $0x44] sm:$0x1]
      %v249 = vld [vmem:[%s211 + $0x48] sm:$0xf]
      %v250 = vld [vmem:[%s211 + $0x4c] sm:$0xf]
      %v251 = vld [vmem:[%s211 + $0x50] sm:$0x1]
      %v252 = vld [vmem:[%s211 + $0x54] sm:$0xf]
      %v253 = vld [vmem:[%s211 + $0x58] sm:$0xf]
      %v254 = vld [vmem:[%s211 + $0x5c] sm:$0x1]
      %v255 = vld [vmem:[%s211 + $0x60] sm:$0xf]
      %v256 = vld [vmem:[%s211 + $0x64] sm:$0xf]
      %v257 = vld [vmem:[%s211 + $0x68] sm:$0x1]
      %v258 = vld [vmem:[%s211 + $0x6c] sm:$0xf]
      %v259 = vld [vmem:[%s211 + $0x70] sm:$0xf]
      %v260 = vld [vmem:[%s211 + $0x74] sm:$0x1]
      %v261 = vld [vmem:[%s211 + $0x78] sm:$0xf]
      %v262 = vld [vmem:[%s211 + $0x7c] sm:$0xf]
      %v263 = vld [vmem:[%s211 + $0x80] sm:$0x1]
      %v264 = vld [vmem:[%s211 + $0x84] sm:$0xf]
      %v265 = vld [vmem:[%s211 + $0x88] sm:$0xf]
      %v266 = vld [vmem:[%s211 + $0x8c] sm:$0x1]
      %v267 = vld [vmem:[%s211 + $0x90] sm:$0xf]
      %v268 = vld [vmem:[%s211 + $0x94] sm:$0xf]
      %v269 = vld [vmem:[%s211 + $0x98] sm:$0x1]
      %v270 = vld [vmem:[%s211 + $0x9c] sm:$0xf]
      %v271 = vld [vmem:[%s211 + $0xa0] sm:$0xf]
      %v272 = vld [vmem:[%s211 + $0xa4] sm:$0x1]
      %v273 = vld [vmem:[%s211 + $0xa8] sm:$0xf]
      %v274 = vld [vmem:[%s211 + $0xac] sm:$0xf]
      %v275 = vld [vmem:[%s211 + $0xb0] sm:$0x1]
      %v276 = vld [vmem:[%s211 + $0xb4] sm:$0xf]
      %v277 = vld [vmem:[%s211 + $0xb8] sm:$0xf]
      %v278 = vld [vmem:[%s211 + $0xbc] sm:$0x1]
      %v279 = vld [vmem:[%s211 + $0xc0] sm:$0xf]
      %v280 = vld [vmem:[%s211 + $0xc4] sm:$0xf]
      %v281 = vld [vmem:[%s211 + $0xc8] sm:$0x1]
      %v282 = vld [vmem:[%s211 + $0xcc] sm:$0xf]
      %v283 = vld [vmem:[%s211 + $0xd0] sm:$0xf]
      %v284 = vld [vmem:[%s211 + $0xd4] sm:$0x1]
      %v285 = vld [vmem:[%s216] sm:$0xf]
      %v286 = vld [vmem:[%s216 + $0x4] sm:$0xf]
      %v287 = vld [vmem:[%s216 + $0x8] sm:$0xf]
      %v288 = vld [vmem:[%s216 + $0xc] sm:$0xf]
      %s289 = scalar_lea.vmem %s216, 48
      %v290 = vld [vmem:[%s289] sm:$0xf]
      %v291 = vld [vmem:[%s289 + $0x4] sm:$0xf]
      %v292 = vld [vmem:[%s289 + $0x8] sm:$0xf]
      %v293 = vld [vmem:[%s289 + $0xc] sm:$0xf]
      %v326 = vunpack.c.l.b16 %v234
      %v327 = vunpack.c.l.b16 %v235
      %v328 = vunpack.c.l.b16 %v237
      %v329 = vunpack.c.l.b16 %v238
      %v330 = vunpack.c.l.b16 %v240
      %v331 = vunpack.c.l.b16 %v241
      %v332 = vunpack.c.l.b16 %v243
      %v333 = vunpack.c.l.b16 %v244
      %v334 = vunpack.c.l.b16 %v246
      %v335 = vunpack.c.l.b16 %v247
      %v336 = vunpack.c.l.b16 %v249
      %v337 = vunpack.c.l.b16 %v250
      %v338 = vunpack.c.l.b16 %v252
      %v339 = vunpack.c.l.b16 %v253
      %v340 = vunpack.c.l.b16 %v255
      %v341 = vunpack.c.l.b16 %v256
      %v342 = vunpack.c.l.b16 %v258
      %v343 = vunpack.c.l.b16 %v259
      %v344 = vunpack.c.l.b16 %v261
      %v345 = vunpack.c.l.b16 %v262
      %v346 = vunpack.c.l.b16 %v264
      %v347 = vunpack.c.l.b16 %v265
      %v348 = vunpack.c.l.b16 %v267
      %v349 = vunpack.c.l.b16 %v268
      %v350 = vunpack.c.l.b16 %v270
      %v351 = vunpack.c.l.b16 %v271
      %v352 = vunpack.c.l.b16 %v273
      %v353 = vunpack.c.l.b16 %v274
      %v354 = vunpack.c.l.b16 %v276
      %v355 = vunpack.c.l.b16 %v277
      %v356 = vunpack.c.l.b16 %v279
      %v357 = vunpack.c.l.b16 %v280
      %v358 = vpack.c.b16 %v327, %v326
      %v359 = vpack.c.b16 %v329, %v328
      %v360 = vpack.c.b16 %v331, %v330
      %v361 = vpack.c.b16 %v333, %v332
      %v362 = vpack.c.b16 %v335, %v334
      %v363 = vpack.c.b16 %v337, %v336
      %v364 = vpack.c.b16 %v339, %v338
      %v365 = vpack.c.b16 %v341, %v340
      %v366 = vpack.c.b16 %v343, %v342
      %v367 = vpack.c.b16 %v345, %v344
      %v368 = vpack.c.b16 %v347, %v346
      %v369 = vpack.c.b16 %v349, %v348
      %v370 = vpack.c.b16 %v351, %v350
      %v371 = vpack.c.b16 %v353, %v352
      %v372 = vpack.c.b16 %v355, %v354
      %v373 = vpack.c.b16 %v357, %v356
      %v378 = vunpack.c.l.b16 %v290
      %v379 = vunpack.c.l.b16 %v291
      %v380 = vunpack.c.l.b16 %v292
      %v381 = vunpack.c.l.b16 %v293
      %v382 = vpack.c.b16 %v379, %v378
      %v383 = vpack.c.b16 %v381, %v380
      %vm386 = vcmask 261120
      %v388 = vsel %vm386, %v358, 0
      %v391 = vsel %vm386, %v359, 0
      %v394 = vsel %vm386, %v360, 0
      %v397 = vsel %vm386, %v361, 0
      %v400 = vsel %vm386, %v362, 0
      %v403 = vsel %vm386, %v363, 0
      %v406 = vsel %vm386, %v364, 0
      %v409 = vsel %vm386, %v365, 0
      %v412 = vsel %vm386, %v366, 0
      %v415 = vsel %vm386, %v367, 0
      %v418 = vsel %vm386, %v368, 0
      %v421 = vsel %vm386, %v369, 0
      %v424 = vsel %vm386, %v370, 0
      %v427 = vsel %vm386, %v371, 0
      %v430 = vsel %vm386, %v372, 0
      %v433 = vsel %vm386, %v373, 0
      %435 = vmatprep.subr.bf16.mxu0 0
      %436 = vmatpush1.bf16.msra.mxu0 %v382
      %437 = vmatprep.subr.bf16.mxu0 0
      %438 = vmatpush1.bf16.msra.mxu0 %v383
      %439 = vmatprep.subr.bf16.mxu0 0
      %440 = vmatpush1.bf16.msra.mxu0 0
      %441 = vmatprep.subr.bf16.mxu0 0
      %442 = vmatpush1.bf16.msra.mxu0 0
      %443 = vmatprep.subr.bf16.mxu0 0
      %444 = vmatpush1.bf16.msra.mxu0 0
      %445 = vmatprep.subr.bf16.mxu0 0
      %446 = vmatpush1.bf16.msra.mxu0 0
      %447 = vmatprep.subr.bf16.mxu0 0
      %448 = vmatpush1.bf16.msra.mxu0 0
      %449 = vmatprep.subr.bf16.mxu0 0
      %450 = vmatpush1.bf16.msra.mxu0 0
      %451 = vmatprep.subr.bf16.mxu0 0
      %452 = vmatpush1.bf16.msra.mxu0 0
      %453 = vmatprep.subr.bf16.mxu0 0
      %454 = vmatpush1.bf16.msra.mxu0 0
      %455 = vmatprep.subr.bf16.mxu0 0
      %456 = vmatpush1.bf16.msra.mxu0 0
      %457 = vmatprep.subr.bf16.mxu0 0
      %458 = vmatpush1.bf16.msra.mxu0 0
      %459 = vmatprep.subr.bf16.mxu0 0
      %460 = vmatpush1.bf16.msra.mxu0 0
      %461 = vmatprep.subr.bf16.mxu0 0
      %462 = vmatpush1.bf16.msra.mxu0 0
      %463 = vmatprep.subr.bf16.mxu0 0
      %464 = vmatpush1.bf16.msra.mxu0 0
      %465 = vmatprep.subr.bf16.mxu0 0
      %466 = vmatpush1.bf16.msra.mxu0 0
      %467 = vmatprep.mubr.bf16.mxu0 0
      %468 = vmatmul.mubr.bf16.gmra.mrb[0].mxu0 %v388
      %v469 = vpop.f32.mrb[0].mxu0
      %v470 = vadd.f32 0.0, %v469
      %v471 = vpop.f32.mrb[0].mxu0
      %v472 = vpop.f32.mrb[0].mxu0
      %v473 = vadd.f32 0.0, %v472
      %v474 = vpop.f32.mrb[0].mxu0
      %475 = vmatprep.mubr.bf16.mxu0 0
      %476 = vmatmul.mubr.bf16.gmra.mrb[0].mxu0 %v391
      %v477 = vpop.f32.mrb[0].mxu0
      %v478 = vadd.f32 0.0, %v477
      %v479 = vpop.f32.mrb[0].mxu0
      %v480 = vpop.f32.mrb[0].mxu0
      %v481 = vadd.f32 0.0, %v480
      %v482 = vpop.f32.mrb[0].mxu0
      %483 = vmatprep.mubr.bf16.mxu0 0
      %484 = vmatmul.mubr.bf16.gmra.mrb[0].mxu0 %v394
      %v485 = vpop.f32.mrb[0].mxu0
      %v486 = vadd.f32 0.0, %v485
      %v487 = vpop.f32.mrb[0].mxu0
      %v488 = vpop.f32.mrb[0].mxu0
      %v489 = vadd.f32 0.0, %v488
      %v490 = vpop.f32.mrb[0].mxu0
      %491 = vmatprep.mubr.bf16.mxu0 0
      %492 = vmatmul.mubr.bf16.gmra.mrb[0].mxu0 %v397
      %v493 = vpop.f32.mrb[0].mxu0
      %v494 = vadd.f32 0.0, %v493
      %v495 = vpop.f32.mrb[0].mxu0
      %v496 = vpop.f32.mrb[0].mxu0
      %v497 = vadd.f32 0.0, %v496
      %v498 = vpop.f32.mrb[0].mxu0
      %499 = vmatprep.mubr.bf16.mxu0 0
      %500 = vmatmul.mubr.bf16.gmra.mrb[0].mxu0 %v400
      %v501 = vpop.f32.mrb[0].mxu0
      %v502 = vadd.f32 0.0, %v501
      %v503 = vpop.f32.mrb[0].mxu0
      %v504 = vpop.f32.mrb[0].mxu0
      %v505 = vadd.f32 0.0, %v504
      %v506 = vpop.f32.mrb[0].mxu0
      %507 = vmatprep.mubr.bf16.mxu0 0
      %508 = vmatmul.mubr.bf16.gmra.mrb[0].mxu0 %v403
      %v509 = vpop.f32.mrb[0].mxu0
      %v510 = vadd.f32 0.0, %v509
      %v511 = vpop.f32.mrb[0].mxu0
      %v512 = vpop.f32.mrb[0].mxu0
      %v513 = vadd.f32 0.0, %v512
      %v514 = vpop.f32.mrb[0].mxu0
      %515 = vmatprep.mubr.bf16.mxu0 0
      %516 = vmatmul.mubr.bf16.gmra.mrb[0].mxu0 %v406
      %v517 = vpop.f32.mrb[0].mxu0
      %v518 = vadd.f32 0.0, %v517
      %v519 = vpop.f32.mrb[0].mxu0
      %v520 = vpop.f32.mrb[0].mxu0
      %v521 = vadd.f32 0.0, %v520
      %v522 = vpop.f32.mrb[0].mxu0
      %523 = vmatprep.mubr.bf16.mxu0 0
      %524 = vmatmul.mubr.bf16.gmra.mrb[0].mxu0 %v409
      %v525 = vpop.f32.mrb[0].mxu0
      %v526 = vadd.f32 0.0, %v525
      %v527 = vpop.f32.mrb[0].mxu0
      %v528 = vpop.f32.mrb[0].mxu0
      %v529 = vadd.f32 0.0, %v528
      %v530 = vpop.f32.mrb[0].mxu0
      %531 = vmatprep.mubr.bf16.mxu0 0
      %532 = vmatmul.mubr.bf16.gmra.mrb[0].mxu0 %v412
      %v533 = vpop.f32.mrb[0].mxu0
      %v534 = vadd.f32 0.0, %v533
      %v535 = vpop.f32.mrb[0].mxu0
      %v536 = vpop.f32.mrb[0].mxu0
      %v537 = vadd.f32 0.0, %v536
      %v538 = vpop.f32.mrb[0].mxu0
      %539 = vmatprep.mubr.bf16.mxu0 0
      %540 = vmatmul.mubr.bf16.gmra.mrb[0].mxu0 %v415
      %v541 = vpop.f32.mrb[0].mxu0
      %v542 = vadd.f32 0.0, %v541
      %v543 = vpop.f32.mrb[0].mxu0
      %v544 = vpop.f32.mrb[0].mxu0
      %v545 = vadd.f32 0.0, %v544
      %v546 = vpop.f32.mrb[0].mxu0
      %547 = vmatprep.mubr.bf16.mxu0 0
      %548 = vmatmul.mubr.bf16.gmra.mrb[0].mxu0 %v418
      %v549 = vpop.f32.mrb[0].mxu0
      %v550 = vadd.f32 0.0, %v549
      %v551 = vpop.f32.mrb[0].mxu0
      %v552 = vpop.f32.mrb[0].mxu0
      %v553 = vadd.f32 0.0, %v552
      %v554 = vpop.f32.mrb[0].mxu0
      %555 = vmatprep.mubr.bf16.mxu0 0
      %556 = vmatmul.mubr.bf16.gmra.mrb[0].mxu0 %v421
      %v557 = vpop.f32.mrb[0].mxu0
      %v558 = vadd.f32 0.0, %v557
      %v559 = vpop.f32.mrb[0].mxu0
      %v560 = vpop.f32.mrb[0].mxu0
      %v561 = vadd.f32 0.0, %v560
      %v562 = vpop.f32.mrb[0].mxu0
      %563 = vmatprep.mubr.bf16.mxu0 0
      %564 = vmatmul.mubr.bf16.gmra.mrb[0].mxu0 %v424
      %v565 = vpop.f32.mrb[0].mxu0
      %v566 = vadd.f32 0.0, %v565
      %v567 = vpop.f32.mrb[0].mxu0
      %v568 = vpop.f32.mrb[0].mxu0
      %v569 = vadd.f32 0.0, %v568
      %v570 = vpop.f32.mrb[0].mxu0
      %571 = vmatprep.mubr.bf16.mxu0 0
      %572 = vmatmul.mubr.bf16.gmra.mrb[0].mxu0 %v427
      %v573 = vpop.f32.mrb[0].mxu0
      %v574 = vadd.f32 0.0, %v573
      %v575 = vpop.f32.mrb[0].mxu0
      %v576 = vpop.f32.mrb[0].mxu0
      %v577 = vadd.f32 0.0, %v576
      %v578 = vpop.f32.mrb[0].mxu0
      %579 = vmatprep.mubr.bf16.mxu0 0
      %580 = vmatmul.mubr.bf16.gmra.mrb[0].mxu0 %v430
      %v581 = vpop.f32.mrb[0].mxu0
      %v582 = vadd.f32 0.0, %v581
      %v583 = vpop.f32.mrb[0].mxu0
      %v584 = vpop.f32.mrb[0].mxu0
      %v585 = vadd.f32 0.0, %v584
      %v586 = vpop.f32.mrb[0].mxu0
      %587 = vmatprep.mubr.bf16.mxu0 0
      %588 = vmatmul.mubr.bf16.gmra.mrb[0].mxu0 %v433
      %v589 = vpop.f32.mrb[0].mxu0
      %v590 = vadd.f32 0.0, %v589
      %v591 = vpop.f32.mrb[0].mxu0
      %v592 = vpop.f32.mrb[0].mxu0
      %v593 = vadd.f32 0.0, %v592
      %v594 = vpop.f32.mrb[0].mxu0
      %595 = vdwg.mxu0
      %v598 = vunpack.c.l.b16 %v231
      %v599 = vunpack.c.l.b16 %v232
      %v600 = vpack.c.b16 %v599, %v598
      %v605 = vunpack.c.l.b16 %v285
      %v606 = vunpack.c.l.b16 %v286
      %v607 = vunpack.c.l.b16 %v287
      %v608 = vunpack.c.l.b16 %v288
      %v609 = vpack.c.b16 %v606, %v605
      %v610 = vpack.c.b16 %v608, %v607
      %v614 = vsel %vm386, %v600, 0
      %616 = vmatprep.subr.bf16.mxu0 0
      %617 = vmatpush1.bf16.msra.mxu0 %v609
      %618 = vmatprep.subr.bf16.mxu0 0
      %619 = vmatpush1.bf16.msra.mxu0 %v610
      %620 = vmatprep.subr.bf16.mxu0 0
      %621 = vmatpush1.bf16.msra.mxu0 0
      %622 = vmatprep.subr.bf16.mxu0 0
      %623 = vmatpush1.bf16.msra.mxu0 0
      %624 = vmatprep.subr.bf16.mxu0 0
      %625 = vmatpush1.bf16.msra.mxu0 0
      %626 = vmatprep.subr.bf16.mxu0 0
      %627 = vmatpush1.bf16.msra.mxu0 0
      %628 = vmatprep.subr.bf16.mxu0 0
      %629 = vmatpush1.bf16.msra.mxu0 0
      %630 = vmatprep.subr.bf16.mxu0 0
      %631 = vmatpush1.bf16.msra.mxu0 0
      %632 = vmatprep.subr.bf16.mxu0 0
      %633 = vmatpush1.bf16.msra.mxu0 0
      %634 = vmatprep.subr.bf16.mxu0 0
      %635 = vmatpush1.bf16.msra.mxu0 0
      %636 = vmatprep.subr.bf16.mxu0 0
      %637 = vmatpush1.bf16.msra.mxu0 0
      %638 = vmatprep.subr.bf16.mxu0 0
      %639 = vmatpush1.bf16.msra.mxu0 0
      %640 = vmatprep.subr.bf16.mxu0 0
      %641 = vmatpush1.bf16.msra.mxu0 0
      %642 = vmatprep.subr.bf16.mxu0 0
      %643 = vmatpush1.bf16.msra.mxu0 0
      %644 = vmatprep.subr.bf16.mxu0 0
      %645 = vmatpush1.bf16.msra.mxu0 0
      %646 = vmatprep.subr.bf16.mxu0 0
      %647 = vmatpush1.bf16.msra.mxu0 0
      %648 = vmatprep.mubr.bf16.mxu0 0
      %649 = vmatmul.mubr.bf16.gmra.mrb[0].mxu0 %v614
      %v650 = vpop.f32.mrb[0].mxu0
      %v651 = vadd.f32 %v470, %v650
      %v652 = vpop.f32.mrb[0].mxu0
      %v653 = vpop.f32.mrb[0].mxu0
      %v654 = vadd.f32 %v473, %v653
      %v655 = vpop.f32.mrb[0].mxu0
      %656 = vmatprep.mubr.bf16.mxu0 0
      %657 = vmatmul.mubr.bf16.gmra.mrb[0].mxu0 %v388
      %v658 = vpop.f32.mrb[0].mxu0
      %v659 = vadd.f32 %v478, %v658
      %v660 = vpop.f32.mrb[0].mxu0
      %v661 = vpop.f32.mrb[0].mxu0
      %v662 = vadd.f32 %v481, %v661
      %v663 = vpop.f32.mrb[0].mxu0
      %664 = vmatprep.mubr.bf16.mxu0 0
      %665 = vmatmul.mubr.bf16.gmra.mrb[0].mxu0 %v391
      %v666 = vpop.f32.mrb[0].mxu0
      %v667 = vadd.f32 %v486, %v666
      %v668 = vpop.f32.mrb[0].mxu0
      %v669 = vpop.f32.mrb[0].mxu0
      %v670 = vadd.f32 %v489, %v669
      %v671 = vpop.f32.mrb[0].mxu0
      %672 = vmatprep.mubr.bf16.mxu0 0
      %673 = vmatmul.mubr.bf16.gmra.mrb[0].mxu0 %v394
      %v674 = vpop.f32.mrb[0].mxu0
      %v675 = vadd.f32 %v494, %v674
      %v676 = vpop.f32.mrb[0].mxu0
      %v677 = vpop.f32.mrb[0].mxu0
      %v678 = vadd.f32 %v497, %v677
      %v679 = vpop.f32.mrb[0].mxu0
      %680 = vmatprep.mubr.bf16.mxu0 0
      %681 = vmatmul.mubr.bf16.gmra.mrb[0].mxu0 %v397
      %v682 = vpop.f32.mrb[0].mxu0
      %v683 = vadd.f32 %v502, %v682
      %v684 = vpop.f32.mrb[0].mxu0
      %v685 = vpop.f32.mrb[0].mxu0
      %v686 = vadd.f32 %v505, %v685
      %v687 = vpop.f32.mrb[0].mxu0
      %688 = vmatprep.mubr.bf16.mxu0 0
      %689 = vmatmul.mubr.bf16.gmra.mrb[0].mxu0 %v400
      %v690 = vpop.f32.mrb[0].mxu0
      %v691 = vadd.f32 %v510, %v690
      %v692 = vpop.f32.mrb[0].mxu0
      %v693 = vpop.f32.mrb[0].mxu0
      %v694 = vadd.f32 %v513, %v693
      %v695 = vpop.f32.mrb[0].mxu0
      %696 = vmatprep.mubr.bf16.mxu0 0
      %697 = vmatmul.mubr.bf16.gmra.mrb[0].mxu0 %v403
      %v698 = vpop.f32.mrb[0].mxu0
      %v699 = vadd.f32 %v518, %v698
      %v700 = vpop.f32.mrb[0].mxu0
      %v701 = vpop.f32.mrb[0].mxu0
      %v702 = vadd.f32 %v521, %v701
      %v703 = vpop.f32.mrb[0].mxu0
      %704 = vmatprep.mubr.bf16.mxu0 0
      %705 = vmatmul.mubr.bf16.gmra.mrb[0].mxu0 %v406
      %v706 = vpop.f32.mrb[0].mxu0
      %v707 = vadd.f32 %v526, %v706
      %v708 = vpop.f32.mrb[0].mxu0
      %v709 = vpop.f32.mrb[0].mxu0
      %v710 = vadd.f32 %v529, %v709
      %v711 = vpop.f32.mrb[0].mxu0
      %712 = vmatprep.mubr.bf16.mxu0 0
      %713 = vmatmul.mubr.bf16.gmra.mrb[0].mxu0 %v409
      %v714 = vpop.f32.mrb[0].mxu0
      %v715 = vadd.f32 %v534, %v714
      %v716 = vpop.f32.mrb[0].mxu0
      %v717 = vpop.f32.mrb[0].mxu0
      %v718 = vadd.f32 %v537, %v717
      %v719 = vpop.f32.mrb[0].mxu0
      %720 = vmatprep.mubr.bf16.mxu0 0
      %721 = vmatmul.mubr.bf16.gmra.mrb[0].mxu0 %v412
      %v722 = vpop.f32.mrb[0].mxu0
      %v723 = vadd.f32 %v542, %v722
      %v724 = vpop.f32.mrb[0].mxu0
      %v725 = vpop.f32.mrb[0].mxu0
      %v726 = vadd.f32 %v545, %v725
      %v727 = vpop.f32.mrb[0].mxu0
      %728 = vmatprep.mubr.bf16.mxu0 0
      %729 = vmatmul.mubr.bf16.gmra.mrb[0].mxu0 %v415
      %v730 = vpop.f32.mrb[0].mxu0
      %v731 = vadd.f32 %v550, %v730
      %v732 = vpop.f32.mrb[0].mxu0
      %v733 = vpop.f32.mrb[0].mxu0
      %v734 = vadd.f32 %v553, %v733
      %v735 = vpop.f32.mrb[0].mxu0
      %736 = vmatprep.mubr.bf16.mxu0 0
      %737 = vmatmul.mubr.bf16.gmra.mrb[0].mxu0 %v418
      %v738 = vpop.f32.mrb[0].mxu0
      %v739 = vadd.f32 %v558, %v738
      %v740 = vpop.f32.mrb[0].mxu0
      %v741 = vpop.f32.mrb[0].mxu0
      %v742 = vadd.f32 %v561, %v741
      %v743 = vpop.f32.mrb[0].mxu0
      %744 = vmatprep.mubr.bf16.mxu0 0
      %745 = vmatmul.mubr.bf16.gmra.mrb[0].mxu0 %v421
      %v746 = vpop.f32.mrb[0].mxu0
      %v747 = vadd.f32 %v566, %v746
      %v748 = vpop.f32.mrb[0].mxu0
      %v749 = vpop.f32.mrb[0].mxu0
      %v750 = vadd.f32 %v569, %v749
      %v751 = vpop.f32.mrb[0].mxu0
      %752 = vmatprep.mubr.bf16.mxu0 0
      %753 = vmatmul.mubr.bf16.gmra.mrb[0].mxu0 %v424
      %v754 = vpop.f32.mrb[0].mxu0
      %v755 = vadd.f32 %v574, %v754
      %v756 = vpop.f32.mrb[0].mxu0
      %v757 = vpop.f32.mrb[0].mxu0
      %v758 = vadd.f32 %v577, %v757
      %v759 = vpop.f32.mrb[0].mxu0
      %760 = vmatprep.mubr.bf16.mxu0 0
      %761 = vmatmul.mubr.bf16.gmra.mrb[0].mxu0 %v427
      %v762 = vpop.f32.mrb[0].mxu0
      %v763 = vadd.f32 %v582, %v762
      %v764 = vpop.f32.mrb[0].mxu0
      %v765 = vpop.f32.mrb[0].mxu0
      %v766 = vadd.f32 %v585, %v765
      %v767 = vpop.f32.mrb[0].mxu0
      %768 = vmatprep.mubr.bf16.mxu0 0
      %769 = vmatmul.mubr.bf16.gmra.mrb[0].mxu0 %v430
      %v770 = vpop.f32.mrb[0].mxu0
      %v771 = vadd.f32 %v590, %v770
      %v772 = vpop.f32.mrb[0].mxu0
      %v773 = vpop.f32.mrb[0].mxu0
      %v774 = vadd.f32 %v593, %v773
      %v775 = vpop.f32.mrb[0].mxu0
      %776 = vdwg.mxu0
      %s777 = scalar_lea.vmem %s216, 96
      %v778 = vld [vmem:[%s777] sm:$0xf]
      %v779 = vld [vmem:[%s777 + $0x4] sm:$0xf]
      %v780 = vld [vmem:[%s777 + $0x8] sm:$0xf]
      %v781 = vld [vmem:[%s777 + $0xc] sm:$0xf]
      %v784 = vunpack.c.l.b16 %v282
      %v785 = vunpack.c.l.b16 %v283
      %v786 = vpack.c.b16 %v785, %v784
      %v791 = vunpack.c.l.b16 %v778
      %v792 = vunpack.c.l.b16 %v779
      %v793 = vunpack.c.l.b16 %v780
      %v794 = vunpack.c.l.b16 %v781
      %v795 = vpack.c.b16 %v792, %v791
      %v796 = vpack.c.b16 %v794, %v793
      %v800 = vsel %vm386, %v786, 0
      %802 = vmatprep.subr.bf16.mxu0 0
      %803 = vmatpush1.bf16.msra.mxu0 %v795
      %804 = vmatprep.subr.bf16.mxu0 0
      %805 = vmatpush1.bf16.msra.mxu0 %v796
      %806 = vmatprep.subr.bf16.mxu0 0
      %807 = vmatpush1.bf16.msra.mxu0 0
      %808 = vmatprep.subr.bf16.mxu0 0
      %809 = vmatpush1.bf16.msra.mxu0 0
      %810 = vmatprep.subr.bf16.mxu0 0
      %811 = vmatpush1.bf16.msra.mxu0 0
      %812 = vmatprep.subr.bf16.mxu0 0
      %813 = vmatpush1.bf16.msra.mxu0 0
      %814 = vmatprep.subr.bf16.mxu0 0
      %815 = vmatpush1.bf16.msra.mxu0 0
      %816 = vmatprep.subr.bf16.mxu0 0
      %817 = vmatpush1.bf16.msra.mxu0 0
      %818 = vmatprep.subr.bf16.mxu0 0
      %819 = vmatpush1.bf16.msra.mxu0 0
      %820 = vmatprep.subr.bf16.mxu0 0
      %821 = vmatpush1.bf16.msra.mxu0 0
      %822 = vmatprep.subr.bf16.mxu0 0
      %823 = vmatpush1.bf16.msra.mxu0 0
      %824 = vmatprep.subr.bf16.mxu0 0
      %825 = vmatpush1.bf16.msra.mxu0 0
      %826 = vmatprep.subr.bf16.mxu0 0
      %827 = vmatpush1.bf16.msra.mxu0 0
      %828 = vmatprep.subr.bf16.mxu0 0
      %829 = vmatpush1.bf16.msra.mxu0 0
      %830 = vmatprep.subr.bf16.mxu0 0
      %831 = vmatpush1.bf16.msra.mxu0 0
      %832 = vmatprep.subr.bf16.mxu0 0
      %833 = vmatpush1.bf16.msra.mxu0 0
      %834 = vmatprep.mubr.bf16.mxu0 0
      %835 = vmatmul.mubr.bf16.gmra.mrb[0].mxu0 %v391
      %v836 = vpop.f32.mrb[0].mxu0
      %v837 = vadd.f32 0.0, %v836
      %v838 = vpop.f32.mrb[0].mxu0
      %v839 = vpop.f32.mrb[0].mxu0
      %v840 = vadd.f32 0.0, %v839
      %v841 = vpop.f32.mrb[0].mxu0
      %842 = vmatprep.mubr.bf16.mxu0 0
      %843 = vmatmul.mubr.bf16.gmra.mrb[0].mxu0 %v394
      %v844 = vpop.f32.mrb[0].mxu0
      %v845 = vadd.f32 0.0, %v844
      %v846 = vpop.f32.mrb[0].mxu0
      %v847 = vpop.f32.mrb[0].mxu0
      %v848 = vadd.f32 0.0, %v847
      %v849 = vpop.f32.mrb[0].mxu0
      %850 = vmatprep.mubr.bf16.mxu0 0
      %851 = vmatmul.mubr.bf16.gmra.mrb[0].mxu0 %v397
      %v852 = vpop.f32.mrb[0].mxu0
      %v853 = vadd.f32 0.0, %v852
      %v854 = vpop.f32.mrb[0].mxu0
      %v855 = vpop.f32.mrb[0].mxu0
      %v856 = vadd.f32 0.0, %v855
      %v857 = vpop.f32.mrb[0].mxu0
      %858 = vmatprep.mubr.bf16.mxu0 0
      %859 = vmatmul.mubr.bf16.gmra.mrb[0].mxu0 %v400
      %v860 = vpop.f32.mrb[0].mxu0
      %v861 = vadd.f32 0.0, %v860
      %v862 = vpop.f32.mrb[0].mxu0
      %v863 = vpop.f32.mrb[0].mxu0
      %v864 = vadd.f32 0.0, %v863
      %v865 = vpop.f32.mrb[0].mxu0
      %866 = vmatprep.mubr.bf16.mxu0 0
      %867 = vmatmul.mubr.bf16.gmra.mrb[0].mxu0 %v403
      %v868 = vpop.f32.mrb[0].mxu0
      %v869 = vadd.f32 0.0, %v868
      %v870 = vpop.f32.mrb[0].mxu0
      %v871 = vpop.f32.mrb[0].mxu0
      %v872 = vadd.f32 0.0, %v871
      %v873 = vpop.f32.mrb[0].mxu0
      %874 = vmatprep.mubr.bf16.mxu0 0
      %875 = vmatmul.mubr.bf16.gmra.mrb[0].mxu0 %v406
      %v876 = vpop.f32.mrb[0].mxu0
      %v877 = vadd.f32 0.0, %v876
      %v878 = vpop.f32.mrb[0].mxu0
      %v879 = vpop.f32.mrb[0].mxu0
      %v880 = vadd.f32 0.0, %v879
      %v881 = vpop.f32.mrb[0].mxu0
      %882 = vmatprep.mubr.bf16.mxu0 0
      %883 = vmatmul.mubr.bf16.gmra.mrb[0].mxu0 %v409
      %v884 = vpop.f32.mrb[0].mxu0
      %v885 = vadd.f32 0.0, %v884
      %v886 = vpop.f32.mrb[0].mxu0
      %v887 = vpop.f32.mrb[0].mxu0
      %v888 = vadd.f32 0.0, %v887
      %v889 = vpop.f32.mrb[0].mxu0
      %890 = vmatprep.mubr.bf16.mxu0 0
      %891 = vmatmul.mubr.bf16.gmra.mrb[0].mxu0 %v412
      %v892 = vpop.f32.mrb[0].mxu0
      %v893 = vadd.f32 0.0, %v892
      %v894 = vpop.f32.mrb[0].mxu0
      %v895 = vpop.f32.mrb[0].mxu0
      %v896 = vadd.f32 0.0, %v895
      %v897 = vpop.f32.mrb[0].mxu0
      %898 = vmatprep.mubr.bf16.mxu0 0
      %899 = vmatmul.mubr.bf16.gmra.mrb[0].mxu0 %v415
      %v900 = vpop.f32.mrb[0].mxu0
      %v901 = vadd.f32 0.0, %v900
      %v902 = vpop.f32.mrb[0].mxu0
      %v903 = vpop.f32.mrb[0].mxu0
      %v904 = vadd.f32 0.0, %v903
      %v905 = vpop.f32.mrb[0].mxu0
      %906 = vmatprep.mubr.bf16.mxu0 0
      %907 = vmatmul.mubr.bf16.gmra.mrb[0].mxu0 %v418
      %v908 = vpop.f32.mrb[0].mxu0
      %v909 = vadd.f32 0.0, %v908
      %v910 = vpop.f32.mrb[0].mxu0
      %v911 = vpop.f32.mrb[0].mxu0
      %v912 = vadd.f32 0.0, %v911
      %v913 = vpop.f32.mrb[0].mxu0
      %914 = vmatprep.mubr.bf16.mxu0 0
      %915 = vmatmul.mubr.bf16.gmra.mrb[0].mxu0 %v421
      %v916 = vpop.f32.mrb[0].mxu0
      %v917 = vadd.f32 0.0, %v916
      %v918 = vpop.f32.mrb[0].mxu0
      %v919 = vpop.f32.mrb[0].mxu0
      %v920 = vadd.f32 0.0, %v919
      %v921 = vpop.f32.mrb[0].mxu0
      %922 = vmatprep.mubr.bf16.mxu0 0
      %923 = vmatmul.mubr.bf16.gmra.mrb[0].mxu0 %v424
      %v924 = vpop.f32.mrb[0].mxu0
      %v925 = vadd.f32 0.0, %v924
      %v926 = vpop.f32.mrb[0].mxu0
      %v927 = vpop.f32.mrb[0].mxu0
      %v928 = vadd.f32 0.0, %v927
      %v929 = vpop.f32.mrb[0].mxu0
      %930 = vmatprep.mubr.bf16.mxu0 0
      %931 = vmatmul.mubr.bf16.gmra.mrb[0].mxu0 %v427
      %v932 = vpop.f32.mrb[0].mxu0
      %v933 = vadd.f32 0.0, %v932
      %v934 = vpop.f32.mrb[0].mxu0
      %v935 = vpop.f32.mrb[0].mxu0
      %v936 = vadd.f32 0.0, %v935
      %v937 = vpop.f32.mrb[0].mxu0
      %938 = vmatprep.mubr.bf16.mxu0 0
      %939 = vmatmul.mubr.bf16.gmra.mrb[0].mxu0 %v430
      %v940 = vpop.f32.mrb[0].mxu0
      %v941 = vadd.f32 0.0, %v940
      %v942 = vpop.f32.mrb[0].mxu0
      %v943 = vpop.f32.mrb[0].mxu0
      %v944 = vadd.f32 0.0, %v943
      %v945 = vpop.f32.mrb[0].mxu0
      %946 = vmatprep.mubr.bf16.mxu0 0
      %947 = vmatmul.mubr.bf16.gmra.mrb[0].mxu0 %v433
      %v948 = vpop.f32.mrb[0].mxu0
      %v949 = vadd.f32 0.0, %v948
      %v950 = vpop.f32.mrb[0].mxu0
      %v951 = vpop.f32.mrb[0].mxu0
      %v952 = vadd.f32 0.0, %v951
      %v953 = vpop.f32.mrb[0].mxu0
      %954 = vmatprep.mubr.bf16.mxu0 0
      %955 = vmatmul.mubr.bf16.gmra.mrb[0].mxu0 %v800
      %v956 = vpop.f32.mrb[0].mxu0
      %v957 = vadd.f32 0.0, %v956
      %v958 = vpop.f32.mrb[0].mxu0
      %v959 = vpop.f32.mrb[0].mxu0
      %v960 = vadd.f32 0.0, %v959
      %v961 = vpop.f32.mrb[0].mxu0
      %962 = vdwg.mxu0
      %v963 = vadd.f32 %v651, %v837
      %v964 = vadd.f32 %v654, %v840
      %v965 = vadd.f32 %v659, %v845
      %v966 = vadd.f32 %v662, %v848
      %v967 = vadd.f32 %v667, %v853
      %v968 = vadd.f32 %v670, %v856
      %v969 = vadd.f32 %v675, %v861
      %v970 = vadd.f32 %v678, %v864
      %v971 = vadd.f32 %v683, %v869
      %v972 = vadd.f32 %v686, %v872
      %v973 = vadd.f32 %v691, %v877
      %v974 = vadd.f32 %v694, %v880
      %v975 = vadd.f32 %v699, %v885
      %v976 = vadd.f32 %v702, %v888
      %v977 = vadd.f32 %v707, %v893
      %v978 = vadd.f32 %v710, %v896
      %v979 = vadd.f32 %v715, %v901
      %v980 = vadd.f32 %v718, %v904
      %v981 = vadd.f32 %v723, %v909
      %v982 = vadd.f32 %v726, %v912
      %v983 = vadd.f32 %v731, %v917
      %v984 = vadd.f32 %v734, %v920
      %v985 = vadd.f32 %v739, %v925
      %v986 = vadd.f32 %v742, %v928
      %v987 = vadd.f32 %v747, %v933
      %v988 = vadd.f32 %v750, %v936
      %v989 = vadd.f32 %v755, %v941
      %v990 = vadd.f32 %v758, %v944
      %v991 = vadd.f32 %v763, %v949
      %v992 = vadd.f32 %v766, %v952
      %v993 = vadd.f32 %v771, %v957
      %v994 = vadd.f32 %v774, %v960
      %vm995 = vsmask.f32 3328
      %vm996 = vsmask.f32 7440
      %vm997 = vmor %vm995, %vm996
      %v999 = vshrl.u32 %v231, 16
      %v1001 = vrot.slane %v999, 4
      %v1002 = vshll.u32 %v231, 16
      %v1004 = vrot.slane %v1002, 5
      %v1005 = vor.u32 %v1001, %v1004
      %v1006 = vrot.slane %v1005, 4
      %v1008 = vshll.u32 %v232, 16
      %v1010 = vrot.slane %v1008, 5
      %v1011 = vsel %vm997, %v1006, %v1010
      %v1012 = vshrl.u32 %v232, 16
      %v1014 = vrot.slane %v1012, 4
      %v1015 = vor.u32 %v1014, %v1010
      %v1016 = vrot.slane %v1015, 4
      %v1018 = vshll.u32 %v233, 16
      %v1020 = vrot.slane %v1018, 5
      %v1021 = vsel %vm997, %v1016, %v1020
      %v1023 = vshrl.u32 %v234, 16
      %v1025 = vrot.slane %v1023, 4
      %v1026 = vshll.u32 %v234, 16
      %v1028 = vrot.slane %v1026, 5
      %v1029 = vor.u32 %v1025, %v1028
      %v1030 = vrot.slane %v1029, 4
      %v1032 = vshll.u32 %v235, 16
      %v1034 = vrot.slane %v1032, 5
      %v1035 = vsel %vm997, %v1030, %v1034
      %v1036 = vshrl.u32 %v235, 16
      %v1038 = vrot.slane %v1036, 4
      %v1039 = vor.u32 %v1038, %v1034
      %v1040 = vrot.slane %v1039, 4
      %v1042 = vshll.u32 %v236, 16
      %v1044 = vrot.slane %v1042, 5
      %v1045 = vsel %vm997, %v1040, %v1044
      %v1047 = vshrl.u32 %v237, 16
      %v1049 = vrot.slane %v1047, 4
      %v1050 = vshll.u32 %v237, 16
      %v1052 = vrot.slane %v1050, 5
      %v1053 = vor.u32 %v1049, %v1052
      %v1054 = vrot.slane %v1053, 4
      %v1056 = vshll.u32 %v238, 16
      %v1058 = vrot.slane %v1056, 5
      %v1059 = vsel %vm997, %v1054, %v1058
      %v1060 = vshrl.u32 %v238, 16
      %v1062 = vrot.slane %v1060, 4
      %v1063 = vor.u32 %v1062, %v1058
      %v1064 = vrot.slane %v1063, 4
      %v1066 = vshll.u32 %v239, 16
      %v1068 = vrot.slane %v1066, 5
      %v1069 = vsel %vm997, %v1064, %v1068
      %v1071 = vshrl.u32 %v240, 16
      %v1073 = vrot.slane %v1071, 4
      %v1074 = vshll.u32 %v240, 16
      %v1076 = vrot.slane %v1074, 5
      %v1077 = vor.u32 %v1073, %v1076
      %v1078 = vrot.slane %v1077, 4
      %v1080 = vshll.u32 %v241, 16
      %v1082 = vrot.slane %v1080, 5
      %v1083 = vsel %vm997, %v1078, %v1082
      %v1084 = vshrl.u32 %v241, 16
      %v1086 = vrot.slane %v1084, 4
      %v1087 = vor.u32 %v1086, %v1082
      %v1088 = vrot.slane %v1087, 4
      %v1090 = vshll.u32 %v242, 16
      %v1092 = vrot.slane %v1090, 5
      %v1093 = vsel %vm997, %v1088, %v1092
      %v1095 = vshrl.u32 %v243, 16
      %v1097 = vrot.slane %v1095, 4
      %v1098 = vshll.u32 %v243, 16
      %v1100 = vrot.slane %v1098, 5
      %v1101 = vor.u32 %v1097, %v1100
      %v1102 = vrot.slane %v1101, 4
      %v1104 = vshll.u32 %v244, 16
      %v1106 = vrot.slane %v1104, 5
      %v1107 = vsel %vm997, %v1102, %v1106
      %v1108 = vshrl.u32 %v244, 16
      %v1110 = vrot.slane %v1108, 4
      %v1111 = vor.u32 %v1110, %v1106
      %v1112 = vrot.slane %v1111, 4
      %v1114 = vshll.u32 %v245, 16
      %v1116 = vrot.slane %v1114, 5
      %v1117 = vsel %vm997, %v1112, %v1116
      %v1119 = vshrl.u32 %v246, 16
      %v1121 = vrot.slane %v1119, 4
      %v1122 = vshll.u32 %v246, 16
      %v1124 = vrot.slane %v1122, 5
      %v1125 = vor.u32 %v1121, %v1124
      %v1126 = vrot.slane %v1125, 4
      %v1128 = vshll.u32 %v247, 16
      %v1130 = vrot.slane %v1128, 5
      %v1131 = vsel %vm997, %v1126, %v1130
      %v1132 = vshrl.u32 %v247, 16
      %v1134 = vrot.slane %v1132, 4
      %v1135 = vor.u32 %v1134, %v1130
      %v1136 = vrot.slane %v1135, 4
      %v1138 = vshll.u32 %v248, 16
      %v1140 = vrot.slane %v1138, 5
      %v1141 = vsel %vm997, %v1136, %v1140
      %v1143 = vshrl.u32 %v249, 16
      %v1145 = vrot.slane %v1143, 4
      %v1146 = vshll.u32 %v249, 16
      %v1148 = vrot.slane %v1146, 5
      %v1149 = vor.u32 %v1145, %v1148
      %v1150 = vrot.slane %v1149, 4
      %v1152 = vshll.u32 %v250, 16
      %v1154 = vrot.slane %v1152, 5
      %v1155 = vsel %vm997, %v1150, %v1154
      %v1156 = vshrl.u32 %v250, 16
      %v1158 = vrot.slane %v1156, 4
      %v1159 = vor.u32 %v1158, %v1154
      %v1160 = vrot.slane %v1159, 4
      %v1162 = vshll.u32 %v251, 16
      %v1164 = vrot.slane %v1162, 5
      %v1165 = vsel %vm997, %v1160, %v1164
      %v1167 = vshrl.u32 %v252, 16
      %v1169 = vrot.slane %v1167, 4
      %v1170 = vshll.u32 %v252, 16
      %v1172 = vrot.slane %v1170, 5
      %v1173 = vor.u32 %v1169, %v1172
      %v1174 = vrot.slane %v1173, 4
      %v1176 = vshll.u32 %v253, 16
      %v1178 = vrot.slane %v1176, 5
      %v1179 = vsel %vm997, %v1174, %v1178
      %v1180 = vshrl.u32 %v253, 16
      %v1182 = vrot.slane %v1180, 4
      %v1183 = vor.u32 %v1182, %v1178
      %v1184 = vrot.slane %v1183, 4
      %v1186 = vshll.u32 %v254, 16
      %v1188 = vrot.slane %v1186, 5
      %v1189 = vsel %vm997, %v1184, %v1188
      %v1191 = vshrl.u32 %v255, 16
      %v1193 = vrot.slane %v1191, 4
      %v1194 = vshll.u32 %v255, 16
      %v1196 = vrot.slane %v1194, 5
      %v1197 = vor.u32 %v1193, %v1196
      %v1198 = vrot.slane %v1197, 4
      %v1200 = vshll.u32 %v256, 16
      %v1202 = vrot.slane %v1200, 5
      %v1203 = vsel %vm997, %v1198, %v1202
      %v1204 = vshrl.u32 %v256, 16
      %v1206 = vrot.slane %v1204, 4
      %v1207 = vor.u32 %v1206, %v1202
      %v1208 = vrot.slane %v1207, 4
      %v1210 = vshll.u32 %v257, 16
      %v1212 = vrot.slane %v1210, 5
      %v1213 = vsel %vm997, %v1208, %v1212
      %v1215 = vshrl.u32 %v258, 16
      %v1217 = vrot.slane %v1215, 4
      %v1218 = vshll.u32 %v258, 16
      %v1220 = vrot.slane %v1218, 5
      %v1221 = vor.u32 %v1217, %v1220
      %v1222 = vrot.slane %v1221, 4
      %v1224 = vshll.u32 %v259, 16
      %v1226 = vrot.slane %v1224, 5
      %v1227 = vsel %vm997, %v1222, %v1226
      %v1228 = vshrl.u32 %v259, 16
      %v1230 = vrot.slane %v1228, 4
      %v1231 = vor.u32 %v1230, %v1226
      %v1232 = vrot.slane %v1231, 4
      %v1234 = vshll.u32 %v260, 16
      %v1236 = vrot.slane %v1234, 5
      %v1237 = vsel %vm997, %v1232, %v1236
      %v1239 = vshrl.u32 %v261, 16
      %v1241 = vrot.slane %v1239, 4
      %v1242 = vshll.u32 %v261, 16
      %v1244 = vrot.slane %v1242, 5
      %v1245 = vor.u32 %v1241, %v1244
      %v1246 = vrot.slane %v1245, 4
      %v1248 = vshll.u32 %v262, 16
      %v1250 = vrot.slane %v1248, 5
      %v1251 = vsel %vm997, %v1246, %v1250
      %v1252 = vshrl.u32 %v262, 16
      %v1254 = vrot.slane %v1252, 4
      %v1255 = vor.u32 %v1254, %v1250
      %v1256 = vrot.slane %v1255, 4
      %v1258 = vshll.u32 %v263, 16
      %v1260 = vrot.slane %v1258, 5
      %v1261 = vsel %vm997, %v1256, %v1260
      %v1263 = vshrl.u32 %v264, 16
      %v1265 = vrot.slane %v1263, 4
      %v1266 = vshll.u32 %v264, 16
      %v1268 = vrot.slane %v1266, 5
      %v1269 = vor.u32 %v1265, %v1268
      %v1270 = vrot.slane %v1269, 4
      %v1272 = vshll.u32 %v265, 16
      %v1274 = vrot.slane %v1272, 5
      %v1275 = vsel %vm997, %v1270, %v1274
      %v1276 = vshrl.u32 %v265, 16
      %v1278 = vrot.slane %v1276, 4
      %v1279 = vor.u32 %v1278, %v1274
      %v1280 = vrot.slane %v1279, 4
      %v1282 = vshll.u32 %v266, 16
      %v1284 = vrot.slane %v1282, 5
      %v1285 = vsel %vm997, %v1280, %v1284
      %v1287 = vshrl.u32 %v267, 16
      %v1289 = vrot.slane %v1287, 4
      %v1290 = vshll.u32 %v267, 16
      %v1292 = vrot.slane %v1290, 5
      %v1293 = vor.u32 %v1289, %v1292
      %v1294 = vrot.slane %v1293, 4
      %v1296 = vshll.u32 %v268, 16
      %v1298 = vrot.slane %v1296, 5
      %v1299 = vsel %vm997, %v1294, %v1298
      %v1300 = vshrl.u32 %v268, 16
      %v1302 = vrot.slane %v1300, 4
      %v1303 = vor.u32 %v1302, %v1298
      %v1304 = vrot.slane %v1303, 4
      %v1306 = vshll.u32 %v269, 16
      %v1308 = vrot.slane %v1306, 5
      %v1309 = vsel %vm997, %v1304, %v1308
      %v1311 = vshrl.u32 %v270, 16
      %v1313 = vrot.slane %v1311, 4
      %v1314 = vshll.u32 %v270, 16
      %v1316 = vrot.slane %v1314, 5
      %v1317 = vor.u32 %v1313, %v1316
      %v1318 = vrot.slane %v1317, 4
      %v1320 = vshll.u32 %v271, 16
      %v1322 = vrot.slane %v1320, 5
      %v1323 = vsel %vm997, %v1318, %v1322
      %v1324 = vshrl.u32 %v271, 16
      %v1326 = vrot.slane %v1324, 4
      %v1327 = vor.u32 %v1326, %v1322
      %v1328 = vrot.slane %v1327, 4
      %v1330 = vshll.u32 %v272, 16
      %v1332 = vrot.slane %v1330, 5
      %v1333 = vsel %vm997, %v1328, %v1332
      %v1335 = vshrl.u32 %v273, 16
      %v1337 = vrot.slane %v1335, 4
      %v1338 = vshll.u32 %v273, 16
      %v1340 = vrot.slane %v1338, 5
      %v1341 = vor.u32 %v1337, %v1340
      %v1342 = vrot.slane %v1341, 4
      %v1344 = vshll.u32 %v274, 16
      %v1346 = vrot.slane %v1344, 5
      %v1347 = vsel %vm997, %v1342, %v1346
      %v1348 = vshrl.u32 %v274, 16
      %v1350 = vrot.slane %v1348, 4
      %v1351 = vor.u32 %v1350, %v1346
      %v1352 = vrot.slane %v1351, 4
      %v1354 = vshll.u32 %v275, 16
      %v1356 = vrot.slane %v1354, 5
      %v1357 = vsel %vm997, %v1352, %v1356
      %v1359 = vshrl.u32 %v276, 16
      %v1361 = vrot.slane %v1359, 4
      %v1362 = vshll.u32 %v276, 16
      %v1364 = vrot.slane %v1362, 5
      %v1365 = vor.u32 %v1361, %v1364
      %v1366 = vrot.slane %v1365, 4
      %v1368 = vshll.u32 %v277, 16
      %v1370 = vrot.slane %v1368, 5
      %v1371 = vsel %vm997, %v1366, %v1370
      %v1372 = vshrl.u32 %v277, 16
      %v1374 = vrot.slane %v1372, 4
      %v1375 = vor.u32 %v1374, %v1370
      %v1376 = vrot.slane %v1375, 4
      %v1378 = vshll.u32 %v278, 16
      %v1380 = vrot.slane %v1378, 5
      %v1381 = vsel %vm997, %v1376, %v1380
      %v1383 = vshrl.u32 %v279, 16
      %v1385 = vrot.slane %v1383, 4
      %v1386 = vshll.u32 %v279, 16
      %v1388 = vrot.slane %v1386, 5
      %v1389 = vor.u32 %v1385, %v1388
      %v1390 = vrot.slane %v1389, 4
      %v1392 = vshll.u32 %v280, 16
      %v1394 = vrot.slane %v1392, 5
      %v1395 = vsel %vm997, %v1390, %v1394
      %v1396 = vshrl.u32 %v280, 16
      %v1398 = vrot.slane %v1396, 4
      %v1399 = vor.u32 %v1398, %v1394
      %v1400 = vrot.slane %v1399, 4
      %v1402 = vshll.u32 %v281, 16
      %v1404 = vrot.slane %v1402, 5
      %v1405 = vsel %vm997, %v1400, %v1404
      %v1407 = vshrl.u32 %v282, 16
      %v1409 = vrot.slane %v1407, 4
      %v1410 = vshll.u32 %v282, 16
      %v1412 = vrot.slane %v1410, 5
      %v1413 = vor.u32 %v1409, %v1412
      %v1414 = vrot.slane %v1413, 4
      %v1416 = vshll.u32 %v283, 16
      %v1418 = vrot.slane %v1416, 5
      %v1419 = vsel %vm997, %v1414, %v1418
      %v1420 = vshrl.u32 %v283, 16
      %v1422 = vrot.slane %v1420, 4
      %v1423 = vor.u32 %v1422, %v1418
      %v1424 = vrot.slane %v1423, 4
      %v1426 = vshll.u32 %v284, 16
      %v1428 = vrot.slane %v1426, 5
      %v1429 = vsel %vm997, %v1424, %v1428
      %s1430 = scalar_lea.vmem %s216, 16
      %v1431 = vld [vmem:[%s1430] sm:$0xf]
      %v1432 = vld [vmem:[%s1430 + $0x4] sm:$0xf]
      %v1433 = vld [vmem:[%s1430 + $0x8] sm:$0xf]
      %v1434 = vld [vmem:[%s1430 + $0xc] sm:$0xf]
      %v1435 = vunpack.c.l.b16 %v1011
      %v1436 = vunpack.c.l.b16 %v1021
      %v1437 = vunpack.c.l.b16 %v1035
      %v1438 = vunpack.c.l.b16 %v1045
      %v1439 = vunpack.c.l.b16 %v1059
      %v1440 = vunpack.c.l.b16 %v1069
      %v1441 = vunpack.c.l.b16 %v1083
      %v1442 = vunpack.c.l.b16 %v1093
      %v1443 = vunpack.c.l.b16 %v1107
      %v1444 = vunpack.c.l.b16 %v1117
      %v1445 = vunpack.c.l.b16 %v1131
      %v1446 = vunpack.c.l.b16 %v1141
      %v1447 = vunpack.c.l.b16 %v1155
      %v1448 = vunpack.c.l.b16 %v1165
      %v1449 = vunpack.c.l.b16 %v1179
      %v1450 = vunpack.c.l.b16 %v1189
      %v1451 = vunpack.c.l.b16 %v1203
      %v1452 = vunpack.c.l.b16 %v1213
      %v1453 = vunpack.c.l.b16 %v1227
      %v1454 = vunpack.c.l.b16 %v1237
      %v1455 = vunpack.c.l.b16 %v1251
      %v1456 = vunpack.c.l.b16 %v1261
      %v1457 = vunpack.c.l.b16 %v1275
      %v1458 = vunpack.c.l.b16 %v1285
      %v1459 = vunpack.c.l.b16 %v1299
      %v1460 = vunpack.c.l.b16 %v1309
      %v1461 = vunpack.c.l.b16 %v1323
      %v1462 = vunpack.c.l.b16 %v1333
      %v1463 = vunpack.c.l.b16 %v1347
      %v1464 = vunpack.c.l.b16 %v1357
      %v1465 = vunpack.c.l.b16 %v1371
      %v1466 = vunpack.c.l.b16 %v1381
      %v1467 = vpack.c.b16 %v1436, %v1435
      %v1468 = vpack.c.b16 %v1438, %v1437
      %v1469 = vpack.c.b16 %v1440, %v1439
      %v1470 = vpack.c.b16 %v1442, %v1441
      %v1471 = vpack.c.b16 %v1444, %v1443
      %v1472 = vpack.c.b16 %v1446, %v1445
      %v1473 = vpack.c.b16 %v1448, %v1447
      %v1474 = vpack.c.b16 %v1450, %v1449
      %v1475 = vpack.c.b16 %v1452, %v1451
      %v1476 = vpack.c.b16 %v1454, %v1453
      %v1477 = vpack.c.b16 %v1456, %v1455
      %v1478 = vpack.c.b16 %v1458, %v1457
      %v1479 = vpack.c.b16 %v1460, %v1459
      %v1480 = vpack.c.b16 %v1462, %v1461
      %v1481 = vpack.c.b16 %v1464, %v1463
      %v1482 = vpack.c.b16 %v1466, %v1465
      %v1487 = vunpack.c.l.b16 %v1431
      %v1488 = vunpack.c.l.b16 %v1432
      %v1489 = vunpack.c.l.b16 %v1433
      %v1490 = vunpack.c.l.b16 %v1434
      %v1491 = vpack.c.b16 %v1488, %v1487
      %v1492 = vpack.c.b16 %v1490, %v1489
      %v1496 = vsel %vm386, %v1467, 0
      %v1499 = vsel %vm386, %v1468, 0
      %v1502 = vsel %vm386, %v1469, 0
      %v1505 = vsel %vm386, %v1470, 0
      %v1508 = vsel %vm386, %v1471, 0
      %v1511 = vsel %vm386, %v1472, 0
      %v1514 = vsel %vm386, %v1473, 0
      %v1517 = vsel %vm386, %v1474, 0
      %v1520 = vsel %vm386, %v1475, 0
      %v1523 = vsel %vm386, %v1476, 0
      %v1526 = vsel %vm386, %v1477, 0
      %v1529 = vsel %vm386, %v1478, 0
      %v1532 = vsel %vm386, %v1479, 0
      %v1535 = vsel %vm386, %v1480, 0
      %v1538 = vsel %vm386, %v1481, 0
      %v1541 = vsel %vm386, %v1482, 0
      %1543 = vmatprep.subr.bf16.mxu0 0
      %1544 = vmatpush1.bf16.msra.mxu0 %v1491
      %1545 = vmatprep.subr.bf16.mxu0 0
      %1546 = vmatpush1.bf16.msra.mxu0 %v1492
      %1547 = vmatprep.subr.bf16.mxu0 0
      %1548 = vmatpush1.bf16.msra.mxu0 0
      %1549 = vmatprep.subr.bf16.mxu0 0
      %1550 = vmatpush1.bf16.msra.mxu0 0
      %1551 = vmatprep.subr.bf16.mxu0 0
      %1552 = vmatpush1.bf16.msra.mxu0 0
      %1553 = vmatprep.subr.bf16.mxu0 0
      %1554 = vmatpush1.bf16.msra.mxu0 0
      %1555 = vmatprep.subr.bf16.mxu0 0
      %1556 = vmatpush1.bf16.msra.mxu0 0
      %1557 = vmatprep.subr.bf16.mxu0 0
      %1558 = vmatpush1.bf16.msra.mxu0 0
      %1559 = vmatprep.subr.bf16.mxu0 0
      %1560 = vmatpush1.bf16.msra.mxu0 0
      %1561 = vmatprep.subr.bf16.mxu0 0
      %1562 = vmatpush1.bf16.msra.mxu0 0
      %1563 = vmatprep.subr.bf16.mxu0 0
      %1564 = vmatpush1.bf16.msra.mxu0 0
      %1565 = vmatprep.subr.bf16.mxu0 0
      %1566 = vmatpush1.bf16.msra.mxu0 0
      %1567 = vmatprep.subr.bf16.mxu0 0
      %1568 = vmatpush1.bf16.msra.mxu0 0
      %1569 = vmatprep.subr.bf16.mxu0 0
      %1570 = vmatpush1.bf16.msra.mxu0 0
      %1571 = vmatprep.subr.bf16.mxu0 0
      %1572 = vmatpush1.bf16.msra.mxu0 0
      %1573 = vmatprep.subr.bf16.mxu0 0
      %1574 = vmatpush1.bf16.msra.mxu0 0
      %1575 = vmatprep.mubr.bf16.mxu0 0
      %1576 = vmatmul.mubr.bf16.gmra.mrb[0].mxu0 %v1496
      %v1577 = vpop.f32.mrb[0].mxu0
      %v1578 = vadd.f32 0.0, %v1577
      %v1579 = vpop.f32.mrb[0].mxu0
      %v1580 = vpop.f32.mrb[0].mxu0
      %v1581 = vadd.f32 0.0, %v1580
      %v1582 = vpop.f32.mrb[0].mxu0
      %1583 = vmatprep.mubr.bf16.mxu0 0
      %1584 = vmatmul.mubr.bf16.gmra.mrb[0].mxu0 %v1499
      %v1585 = vpop.f32.mrb[0].mxu0
      %v1586 = vadd.f32 0.0, %v1585
      %v1587 = vpop.f32.mrb[0].mxu0
      %v1588 = vpop.f32.mrb[0].mxu0
      %v1589 = vadd.f32 0.0, %v1588
      %v1590 = vpop.f32.mrb[0].mxu0
      %1591 = vmatprep.mubr.bf16.mxu0 0
      %1592 = vmatmul.mubr.bf16.gmra.mrb[0].mxu0 %v1502
      %v1593 = vpop.f32.mrb[0].mxu0
      %v1594 = vadd.f32 0.0, %v1593
      %v1595 = vpop.f32.mrb[0].mxu0
      %v1596 = vpop.f32.mrb[0].mxu0
      %v1597 = vadd.f32 0.0, %v1596
      %v1598 = vpop.f32.mrb[0].mxu0
      %1599 = vmatprep.mubr.bf16.mxu0 0
      %1600 = vmatmul.mubr.bf16.gmra.mrb[0].mxu0 %v1505
      %v1601 = vpop.f32.mrb[0].mxu0
      %v1602 = vadd.f32 0.0, %v1601
      %v1603 = vpop.f32.mrb[0].mxu0
      %v1604 = vpop.f32.mrb[0].mxu0
      %v1605 = vadd.f32 0.0, %v1604
      %v1606 = vpop.f32.mrb[0].mxu0
      %1607 = vmatprep.mubr.bf16.mxu0 0
      %1608 = vmatmul.mubr.bf16.gmra.mrb[0].mxu0 %v1508
      %v1609 = vpop.f32.mrb[0].mxu0
      %v1610 = vadd.f32 0.0, %v1609
      %v1611 = vpop.f32.mrb[0].mxu0
      %v1612 = vpop.f32.mrb[0].mxu0
      %v1613 = vadd.f32 0.0, %v1612
      %v1614 = vpop.f32.mrb[0].mxu0
      %1615 = vmatprep.mubr.bf16.mxu0 0
      %1616 = vmatmul.mubr.bf16.gmra.mrb[0].mxu0 %v1511
      %v1617 = vpop.f32.mrb[0].mxu0
      %v1618 = vadd.f32 0.0, %v1617
      %v1619 = vpop.f32.mrb[0].mxu0
      %v1620 = vpop.f32.mrb[0].mxu0
      %v1621 = vadd.f32 0.0, %v1620
      %v1622 = vpop.f32.mrb[0].mxu0
      %1623 = vmatprep.mubr.bf16.mxu0 0
      %1624 = vmatmul.mubr.bf16.gmra.mrb[0].mxu0 %v1514
      %v1625 = vpop.f32.mrb[0].mxu0
      %v1626 = vadd.f32 0.0, %v1625
      %v1627 = vpop.f32.mrb[0].mxu0
      %v1628 = vpop.f32.mrb[0].mxu0
      %v1629 = vadd.f32 0.0, %v1628
      %v1630 = vpop.f32.mrb[0].mxu0
      %1631 = vmatprep.mubr.bf16.mxu0 0
      %1632 = vmatmul.mubr.bf16.gmra.mrb[0].mxu0 %v1517
      %v1633 = vpop.f32.mrb[0].mxu0
      %v1634 = vadd.f32 0.0, %v1633
      %v1635 = vpop.f32.mrb[0].mxu0
      %v1636 = vpop.f32.mrb[0].mxu0
      %v1637 = vadd.f32 0.0, %v1636
      %v1638 = vpop.f32.mrb[0].mxu0
      %1639 = vmatprep.mubr.bf16.mxu0 0
      %1640 = vmatmul.mubr.bf16.gmra.mrb[0].mxu0 %v1520
      %v1641 = vpop.f32.mrb[0].mxu0
      %v1642 = vadd.f32 0.0, %v1641
      %v1643 = vpop.f32.mrb[0].mxu0
      %v1644 = vpop.f32.mrb[0].mxu0
      %v1645 = vadd.f32 0.0, %v1644
      %v1646 = vpop.f32.mrb[0].mxu0
      %1647 = vmatprep.mubr.bf16.mxu0 0
      %1648 = vmatmul.mubr.bf16.gmra.mrb[0].mxu0 %v1523
      %v1649 = vpop.f32.mrb[0].mxu0
      %v1650 = vadd.f32 0.0, %v1649
      %v1651 = vpop.f32.mrb[0].mxu0
      %v1652 = vpop.f32.mrb[0].mxu0
      %v1653 = vadd.f32 0.0, %v1652
      %v1654 = vpop.f32.mrb[0].mxu0
      %1655 = vmatprep.mubr.bf16.mxu0 0
      %1656 = vmatmul.mubr.bf16.gmra.mrb[0].mxu0 %v1526
      %v1657 = vpop.f32.mrb[0].mxu0
      %v1658 = vadd.f32 0.0, %v1657
      %v1659 = vpop.f32.mrb[0].mxu0
      %v1660 = vpop.f32.mrb[0].mxu0
      %v1661 = vadd.f32 0.0, %v1660
      %v1662 = vpop.f32.mrb[0].mxu0
      %1663 = vmatprep.mubr.bf16.mxu0 0
      %1664 = vmatmul.mubr.bf16.gmra.mrb[0].mxu0 %v1529
      %v1665 = vpop.f32.mrb[0].mxu0
      %v1666 = vadd.f32 0.0, %v1665
      %v1667 = vpop.f32.mrb[0].mxu0
      %v1668 = vpop.f32.mrb[0].mxu0
      %v1669 = vadd.f32 0.0, %v1668
      %v1670 = vpop.f32.mrb[0].mxu0
      %1671 = vmatprep.mubr.bf16.mxu0 0
      %1672 = vmatmul.mubr.bf16.gmra.mrb[0].mxu0 %v1532
      %v1673 = vpop.f32.mrb[0].mxu0
      %v1674 = vadd.f32 0.0, %v1673
      %v1675 = vpop.f32.mrb[0].mxu0
      %v1676 = vpop.f32.mrb[0].mxu0
      %v1677 = vadd.f32 0.0, %v1676
      %v1678 = vpop.f32.mrb[0].mxu0
      %1679 = vmatprep.mubr.bf16.mxu0 0
      %1680 = vmatmul.mubr.bf16.gmra.mrb[0].mxu0 %v1535
      %v1681 = vpop.f32.mrb[0].mxu0
      %v1682 = vadd.f32 0.0, %v1681
      %v1683 = vpop.f32.mrb[0].mxu0
      %v1684 = vpop.f32.mrb[0].mxu0
      %v1685 = vadd.f32 0.0, %v1684
      %v1686 = vpop.f32.mrb[0].mxu0
      %1687 = vmatprep.mubr.bf16.mxu0 0
      %1688 = vmatmul.mubr.bf16.gmra.mrb[0].mxu0 %v1538
      %v1689 = vpop.f32.mrb[0].mxu0
      %v1690 = vadd.f32 0.0, %v1689
      %v1691 = vpop.f32.mrb[0].mxu0
      %v1692 = vpop.f32.mrb[0].mxu0
      %v1693 = vadd.f32 0.0, %v1692
      %v1694 = vpop.f32.mrb[0].mxu0
      %1695 = vmatprep.mubr.bf16.mxu0 0
      %1696 = vmatmul.mubr.bf16.gmra.mrb[0].mxu0 %v1541
      %v1697 = vpop.f32.mrb[0].mxu0
      %v1698 = vadd.f32 0.0, %v1697
      %v1699 = vpop.f32.mrb[0].mxu0
      %v1700 = vpop.f32.mrb[0].mxu0
      %v1701 = vadd.f32 0.0, %v1700
      %v1702 = vpop.f32.mrb[0].mxu0
      %1703 = vdwg.mxu0
      %v1704 = vadd.f32 %v963, %v1578
      %v1705 = vadd.f32 %v964, %v1581
      %v1706 = vadd.f32 %v965, %v1586
      %v1707 = vadd.f32 %v966, %v1589
      %v1708 = vadd.f32 %v967, %v1594
      %v1709 = vadd.f32 %v968, %v1597
      %v1710 = vadd.f32 %v969, %v1602
      %v1711 = vadd.f32 %v970, %v1605
      %v1712 = vadd.f32 %v971, %v1610
      %v1713 = vadd.f32 %v972, %v1613
      %v1714 = vadd.f32 %v973, %v1618
      %v1715 = vadd.f32 %v974, %v1621
      %v1716 = vadd.f32 %v975, %v1626
      %v1717 = vadd.f32 %v976, %v1629
      %v1718 = vadd.f32 %v977, %v1634
      %v1719 = vadd.f32 %v978, %v1637
      %v1720 = vadd.f32 %v979, %v1642
      %v1721 = vadd.f32 %v980, %v1645
      %v1722 = vadd.f32 %v981, %v1650
      %v1723 = vadd.f32 %v982, %v1653
      %v1724 = vadd.f32 %v983, %v1658
      %v1725 = vadd.f32 %v984, %v1661
      %v1726 = vadd.f32 %v985, %v1666
      %v1727 = vadd.f32 %v986, %v1669
      %v1728 = vadd.f32 %v987, %v1674
      %v1729 = vadd.f32 %v988, %v1677
      %v1730 = vadd.f32 %v989, %v1682
      %v1731 = vadd.f32 %v990, %v1685
      %v1732 = vadd.f32 %v991, %v1690
      %v1733 = vadd.f32 %v992, %v1693
      %v1734 = vadd.f32 %v993, %v1698
      %v1735 = vadd.f32 %v994, %v1701
      %s1736 = scalar_lea.vmem %s216, 64
      %v1737 = vld [vmem:[%s1736] sm:$0xf]
      %v1738 = vld [vmem:[%s1736 + $0x4] sm:$0xf]
      %v1739 = vld [vmem:[%s1736 + $0x8] sm:$0xf]
      %v1740 = vld [vmem:[%s1736 + $0xc] sm:$0xf]
      %v1741 = vunpack.c.l.b16 %v1395
      %v1742 = vunpack.c.l.b16 %v1405
      %v1743 = vpack.c.b16 %v1742, %v1741
      %v1748 = vunpack.c.l.b16 %v1737
      %v1749 = vunpack.c.l.b16 %v1738
      %v1750 = vunpack.c.l.b16 %v1739
      %v1751 = vunpack.c.l.b16 %v1740
      %v1752 = vpack.c.b16 %v1749, %v1748
      %v1753 = vpack.c.b16 %v1751, %v1750
      %v1757 = vsel %vm386, %v1743, 0
      %1759 = vmatprep.subr.bf16.mxu0 0
      %1760 = vmatpush1.bf16.msra.mxu0 %v1752
      %1761 = vmatprep.subr.bf16.mxu0 0
      %1762 = vmatpush1.bf16.msra.mxu0 %v1753
      %1763 = vmatprep.subr.bf16.mxu0 0
      %1764 = vmatpush1.bf16.msra.mxu0 0
      %1765 = vmatprep.subr.bf16.mxu0 0
      %1766 = vmatpush1.bf16.msra.mxu0 0
      %1767 = vmatprep.subr.bf16.mxu0 0
      %1768 = vmatpush1.bf16.msra.mxu0 0
      %1769 = vmatprep.subr.bf16.mxu0 0
      %1770 = vmatpush1.bf16.msra.mxu0 0
      %1771 = vmatprep.subr.bf16.mxu0 0
      %1772 = vmatpush1.bf16.msra.mxu0 0
      %1773 = vmatprep.subr.bf16.mxu0 0
      %1774 = vmatpush1.bf16.msra.mxu0 0
      %1775 = vmatprep.subr.bf16.mxu0 0
      %1776 = vmatpush1.bf16.msra.mxu0 0
      %1777 = vmatprep.subr.bf16.mxu0 0
      %1778 = vmatpush1.bf16.msra.mxu0 0
      %1779 = vmatprep.subr.bf16.mxu0 0
      %1780 = vmatpush1.bf16.msra.mxu0 0
      %1781 = vmatprep.subr.bf16.mxu0 0
      %1782 = vmatpush1.bf16.msra.mxu0 0
      %1783 = vmatprep.subr.bf16.mxu0 0
      %1784 = vmatpush1.bf16.msra.mxu0 0
      %1785 = vmatprep.subr.bf16.mxu0 0
      %1786 = vmatpush1.bf16.msra.mxu0 0
      %1787 = vmatprep.subr.bf16.mxu0 0
      %1788 = vmatpush1.bf16.msra.mxu0 0
      %1789 = vmatprep.subr.bf16.mxu0 0
      %1790 = vmatpush1.bf16.msra.mxu0 0
      %1791 = vmatprep.mubr.bf16.mxu0 0
      %1792 = vmatmul.mubr.bf16.gmra.mrb[0].mxu0 %v1499
      %v1793 = vpop.f32.mrb[0].mxu0
      %v1794 = vadd.f32 0.0, %v1793
      %v1795 = vpop.f32.mrb[0].mxu0
      %v1796 = vpop.f32.mrb[0].mxu0
      %v1797 = vadd.f32 0.0, %v1796
      %v1798 = vpop.f32.mrb[0].mxu0
      %1799 = vmatprep.mubr.bf16.mxu0 0
      %1800 = vmatmul.mubr.bf16.gmra.mrb[0].mxu0 %v1502
      %v1801 = vpop.f32.mrb[0].mxu0
      %v1802 = vadd.f32 0.0, %v1801
      %v1803 = vpop.f32.mrb[0].mxu0
      %v1804 = vpop.f32.mrb[0].mxu0
      %v1805 = vadd.f32 0.0, %v1804
      %v1806 = vpop.f32.mrb[0].mxu0
      %1807 = vmatprep.mubr.bf16.mxu0 0
      %1808 = vmatmul.mubr.bf16.gmra.mrb[0].mxu0 %v1505
      %v1809 = vpop.f32.mrb[0].mxu0
      %v1810 = vadd.f32 0.0, %v1809
      %v1811 = vpop.f32.mrb[0].mxu0
      %v1812 = vpop.f32.mrb[0].mxu0
      %v1813 = vadd.f32 0.0, %v1812
      %v1814 = vpop.f32.mrb[0].mxu0
      %1815 = vmatprep.mubr.bf16.mxu0 0
      %1816 = vmatmul.mubr.bf16.gmra.mrb[0].mxu0 %v1508
      %v1817 = vpop.f32.mrb[0].mxu0
      %v1818 = vadd.f32 0.0, %v1817
      %v1819 = vpop.f32.mrb[0].mxu0
      %v1820 = vpop.f32.mrb[0].mxu0
      %v1821 = vadd.f32 0.0, %v1820
      %v1822 = vpop.f32.mrb[0].mxu0
      %1823 = vmatprep.mubr.bf16.mxu0 0
      %1824 = vmatmul.mubr.bf16.gmra.mrb[0].mxu0 %v1511
      %v1825 = vpop.f32.mrb[0].mxu0
      %v1826 = vadd.f32 0.0, %v1825
      %v1827 = vpop.f32.mrb[0].mxu0
      %v1828 = vpop.f32.mrb[0].mxu0
      %v1829 = vadd.f32 0.0, %v1828
      %v1830 = vpop.f32.mrb[0].mxu0
      %1831 = vmatprep.mubr.bf16.mxu0 0
      %1832 = vmatmul.mubr.bf16.gmra.mrb[0].mxu0 %v1514
      %v1833 = vpop.f32.mrb[0].mxu0
      %v1834 = vadd.f32 0.0, %v1833
      %v1835 = vpop.f32.mrb[0].mxu0
      %v1836 = vpop.f32.mrb[0].mxu0
      %v1837 = vadd.f32 0.0, %v1836
      %v1838 = vpop.f32.mrb[0].mxu0
      %1839 = vmatprep.mubr.bf16.mxu0 0
      %1840 = vmatmul.mubr.bf16.gmra.mrb[0].mxu0 %v1517
      %v1841 = vpop.f32.mrb[0].mxu0
      %v1842 = vadd.f32 0.0, %v1841
      %v1843 = vpop.f32.mrb[0].mxu0
      %v1844 = vpop.f32.mrb[0].mxu0
      %v1845 = vadd.f32 0.0, %v1844
      %v1846 = vpop.f32.mrb[0].mxu0
      %1847 = vmatprep.mubr.bf16.mxu0 0
      %1848 = vmatmul.mubr.bf16.gmra.mrb[0].mxu0 %v1520
      %v1849 = vpop.f32.mrb[0].mxu0
      %v1850 = vadd.f32 0.0, %v1849
      %v1851 = vpop.f32.mrb[0].mxu0
      %v1852 = vpop.f32.mrb[0].mxu0
      %v1853 = vadd.f32 0.0, %v1852
      %v1854 = vpop.f32.mrb[0].mxu0
      %1855 = vmatprep.mubr.bf16.mxu0 0
      %1856 = vmatmul.mubr.bf16.gmra.mrb[0].mxu0 %v1523
      %v1857 = vpop.f32.mrb[0].mxu0
      %v1858 = vadd.f32 0.0, %v1857
      %v1859 = vpop.f32.mrb[0].mxu0
      %v1860 = vpop.f32.mrb[0].mxu0
      %v1861 = vadd.f32 0.0, %v1860
      %v1862 = vpop.f32.mrb[0].mxu0
      %1863 = vmatprep.mubr.bf16.mxu0 0
      %1864 = vmatmul.mubr.bf16.gmra.mrb[0].mxu0 %v1526
      %v1865 = vpop.f32.mrb[0].mxu0
      %v1866 = vadd.f32 0.0, %v1865
      %v1867 = vpop.f32.mrb[0].mxu0
      %v1868 = vpop.f32.mrb[0].mxu0
      %v1869 = vadd.f32 0.0, %v1868
      %v1870 = vpop.f32.mrb[0].mxu0
      %1871 = vmatprep.mubr.bf16.mxu0 0
      %1872 = vmatmul.mubr.bf16.gmra.mrb[0].mxu0 %v1529
      %v1873 = vpop.f32.mrb[0].mxu0
      %v1874 = vadd.f32 0.0, %v1873
      %v1875 = vpop.f32.mrb[0].mxu0
      %v1876 = vpop.f32.mrb[0].mxu0
      %v1877 = vadd.f32 0.0, %v1876
      %v1878 = vpop.f32.mrb[0].mxu0
      %1879 = vmatprep.mubr.bf16.mxu0 0
      %1880 = vmatmul.mubr.bf16.gmra.mrb[0].mxu0 %v1532
      %v1881 = vpop.f32.mrb[0].mxu0
      %v1882 = vadd.f32 0.0, %v1881
      %v1883 = vpop.f32.mrb[0].mxu0
      %v1884 = vpop.f32.mrb[0].mxu0
      %v1885 = vadd.f32 0.0, %v1884
      %v1886 = vpop.f32.mrb[0].mxu0
      %1887 = vmatprep.mubr.bf16.mxu0 0
      %1888 = vmatmul.mubr.bf16.gmra.mrb[0].mxu0 %v1535
      %v1889 = vpop.f32.mrb[0].mxu0
      %v1890 = vadd.f32 0.0, %v1889
      %v1891 = vpop.f32.mrb[0].mxu0
      %v1892 = vpop.f32.mrb[0].mxu0
      %v1893 = vadd.f32 0.0, %v1892
      %v1894 = vpop.f32.mrb[0].mxu0
      %1895 = vmatprep.mubr.bf16.mxu0 0
      %1896 = vmatmul.mubr.bf16.gmra.mrb[0].mxu0 %v1538
      %v1897 = vpop.f32.mrb[0].mxu0
      %v1898 = vadd.f32 0.0, %v1897
      %v1899 = vpop.f32.mrb[0].mxu0
      %v1900 = vpop.f32.mrb[0].mxu0
      %v1901 = vadd.f32 0.0, %v1900
      %v1902 = vpop.f32.mrb[0].mxu0
      %1903 = vmatprep.mubr.bf16.mxu0 0
      %1904 = vmatmul.mubr.bf16.gmra.mrb[0].mxu0 %v1541
      %v1905 = vpop.f32.mrb[0].mxu0
      %v1906 = vadd.f32 0.0, %v1905
      %v1907 = vpop.f32.mrb[0].mxu0
      %v1908 = vpop.f32.mrb[0].mxu0
      %v1909 = vadd.f32 0.0, %v1908
      %v1910 = vpop.f32.mrb[0].mxu0
      %1911 = vmatprep.mubr.bf16.mxu0 0
      %1912 = vmatmul.mubr.bf16.gmra.mrb[0].mxu0 %v1757
      %v1913 = vpop.f32.mrb[0].mxu0
      %v1914 = vadd.f32 0.0, %v1913
      %v1915 = vpop.f32.mrb[0].mxu0
      %v1916 = vpop.f32.mrb[0].mxu0
      %v1917 = vadd.f32 0.0, %v1916
      %v1918 = vpop.f32.mrb[0].mxu0
      %1919 = vdwg.mxu0
      %v1920 = vadd.f32 %v1704, %v1794
      %v1921 = vadd.f32 %v1705, %v1797
      %v1922 = vadd.f32 %v1706, %v1802
      %v1923 = vadd.f32 %v1707, %v1805
      %v1924 = vadd.f32 %v1708, %v1810
      %v1925 = vadd.f32 %v1709, %v1813
      %v1926 = vadd.f32 %v1710, %v1818
      %v1927 = vadd.f32 %v1711, %v1821
      %v1928 = vadd.f32 %v1712, %v1826
      %v1929 = vadd.f32 %v1713, %v1829
      %v1930 = vadd.f32 %v1714, %v1834
      %v1931 = vadd.f32 %v1715, %v1837
      %v1932 = vadd.f32 %v1716, %v1842
      %v1933 = vadd.f32 %v1717, %v1845
      %v1934 = vadd.f32 %v1718, %v1850
      %v1935 = vadd.f32 %v1719, %v1853
      %v1936 = vadd.f32 %v1720, %v1858
      %v1937 = vadd.f32 %v1721, %v1861
      %v1938 = vadd.f32 %v1722, %v1866
      %v1939 = vadd.f32 %v1723, %v1869
      %v1940 = vadd.f32 %v1724, %v1874
      %v1941 = vadd.f32 %v1725, %v1877
      %v1942 = vadd.f32 %v1726, %v1882
      %v1943 = vadd.f32 %v1727, %v1885
      %v1944 = vadd.f32 %v1728, %v1890
      %v1945 = vadd.f32 %v1729, %v1893
      %v1946 = vadd.f32 %v1730, %v1898
      %v1947 = vadd.f32 %v1731, %v1901
      %v1948 = vadd.f32 %v1732, %v1906
      %v1949 = vadd.f32 %v1733, %v1909
      %v1950 = vadd.f32 %v1734, %v1914
      %v1951 = vadd.f32 %v1735, %v1917
      %s1952 = scalar_lea.vmem %s216, 112
      %v1953 = vld [vmem:[%s1952] sm:$0xf]
      %v1954 = vld [vmem:[%s1952 + $0x4] sm:$0xf]
      %v1955 = vld [vmem:[%s1952 + $0x8] sm:$0xf]
      %v1956 = vld [vmem:[%s1952 + $0xc] sm:$0xf]
      %v1957 = vunpack.c.l.b16 %v1419
      %v1958 = vunpack.c.l.b16 %v1429
      %v1959 = vpack.c.b16 %v1958, %v1957
      %v1964 = vunpack.c.l.b16 %v1953
      %v1965 = vunpack.c.l.b16 %v1954
      %v1966 = vunpack.c.l.b16 %v1955
      %v1967 = vunpack.c.l.b16 %v1956
      %v1968 = vpack.c.b16 %v1965, %v1964
      %v1969 = vpack.c.b16 %v1967, %v1966
      %v1973 = vsel %vm386, %v1959, 0
      %1975 = vmatprep.subr.bf16.mxu0 0
      %1976 = vmatpush1.bf16.msra.mxu0 %v1968
      %1977 = vmatprep.subr.bf16.mxu0 0
      %1978 = vmatpush1.bf16.msra.mxu0 %v1969
      %1979 = vmatprep.subr.bf16.mxu0 0
      %1980 = vmatpush1.bf16.msra.mxu0 0
      %1981 = vmatprep.subr.bf16.mxu0 0
      %1982 = vmatpush1.bf16.msra.mxu0 0
      %1983 = vmatprep.subr.bf16.mxu0 0
      %1984 = vmatpush1.bf16.msra.mxu0 0
      %1985 = vmatprep.subr.bf16.mxu0 0
      %1986 = vmatpush1.bf16.msra.mxu0 0
      %1987 = vmatprep.subr.bf16.mxu0 0
      %1988 = vmatpush1.bf16.msra.mxu0 0
      %1989 = vmatprep.subr.bf16.mxu0 0
      %1990 = vmatpush1.bf16.msra.mxu0 0
      %1991 = vmatprep.subr.bf16.mxu0 0
      %1992 = vmatpush1.bf16.msra.mxu0 0
      %1993 = vmatprep.subr.bf16.mxu0 0
      %1994 = vmatpush1.bf16.msra.mxu0 0
      %1995 = vmatprep.subr.bf16.mxu0 0
      %1996 = vmatpush1.bf16.msra.mxu0 0
      %1997 = vmatprep.subr.bf16.mxu0 0
      %1998 = vmatpush1.bf16.msra.mxu0 0
      %1999 = vmatprep.subr.bf16.mxu0 0
      %2000 = vmatpush1.bf16.msra.mxu0 0
      %2001 = vmatprep.subr.bf16.mxu0 0
      %2002 = vmatpush1.bf16.msra.mxu0 0
      %2003 = vmatprep.subr.bf16.mxu0 0
      %2004 = vmatpush1.bf16.msra.mxu0 0
      %2005 = vmatprep.subr.bf16.mxu0 0
      %2006 = vmatpush1.bf16.msra.mxu0 0
      %2007 = vmatprep.mubr.bf16.mxu0 0
      %2008 = vmatmul.mubr.bf16.gmra.mrb[0].mxu0 %v1502
      %v2009 = vpop.f32.mrb[0].mxu0
      %v2010 = vadd.f32 0.0, %v2009
      %v2011 = vpop.f32.mrb[0].mxu0
      %v2012 = vpop.f32.mrb[0].mxu0
      %v2013 = vadd.f32 0.0, %v2012
      %v2014 = vpop.f32.mrb[0].mxu0
      %2015 = vmatprep.mubr.bf16.mxu0 0
      %2016 = vmatmul.mubr.bf16.gmra.mrb[0].mxu0 %v1505
      %v2017 = vpop.f32.mrb[0].mxu0
      %v2018 = vadd.f32 0.0, %v2017
      %v2019 = vpop.f32.mrb[0].mxu0
      %v2020 = vpop.f32.mrb[0].mxu0
      %v2021 = vadd.f32 0.0, %v2020
      %v2022 = vpop.f32.mrb[0].mxu0
      %2023 = vmatprep.mubr.bf16.mxu0 0
      %2024 = vmatmul.mubr.bf16.gmra.mrb[0].mxu0 %v1508
      %v2025 = vpop.f32.mrb[0].mxu0
      %v2026 = vadd.f32 0.0, %v2025
      %v2027 = vpop.f32.mrb[0].mxu0
      %v2028 = vpop.f32.mrb[0].mxu0
      %v2029 = vadd.f32 0.0, %v2028
      %v2030 = vpop.f32.mrb[0].mxu0
      %2031 = vmatprep.mubr.bf16.mxu0 0
      %2032 = vmatmul.mubr.bf16.gmra.mrb[0].mxu0 %v1511
      %v2033 = vpop.f32.mrb[0].mxu0
      %v2034 = vadd.f32 0.0, %v2033
      %v2035 = vpop.f32.mrb[0].mxu0
      %v2036 = vpop.f32.mrb[0].mxu0
      %v2037 = vadd.f32 0.0, %v2036
      %v2038 = vpop.f32.mrb[0].mxu0
      %2039 = vmatprep.mubr.bf16.mxu0 0
      %2040 = vmatmul.mubr.bf16.gmra.mrb[0].mxu0 %v1514
      %v2041 = vpop.f32.mrb[0].mxu0
      %v2042 = vadd.f32 0.0, %v2041
      %v2043 = vpop.f32.mrb[0].mxu0
      %v2044 = vpop.f32.mrb[0].mxu0
      %v2045 = vadd.f32 0.0, %v2044
      %v2046 = vpop.f32.mrb[0].mxu0
      %2047 = vmatprep.mubr.bf16.mxu0 0
      %2048 = vmatmul.mubr.bf16.gmra.mrb[0].mxu0 %v1517
      %v2049 = vpop.f32.mrb[0].mxu0
      %v2050 = vadd.f32 0.0, %v2049
      %v2051 = vpop.f32.mrb[0].mxu0
      %v2052 = vpop.f32.mrb[0].mxu0
      %v2053 = vadd.f32 0.0, %v2052
      %v2054 = vpop.f32.mrb[0].mxu0
      %2055 = vmatprep.mubr.bf16.mxu0 0
      %2056 = vmatmul.mubr.bf16.gmra.mrb[0].mxu0 %v1520
      %v2057 = vpop.f32.mrb[0].mxu0
      %v2058 = vadd.f32 0.0, %v2057
      %v2059 = vpop.f32.mrb[0].mxu0
      %v2060 = vpop.f32.mrb[0].mxu0
      %v2061 = vadd.f32 0.0, %v2060
      %v2062 = vpop.f32.mrb[0].mxu0
      %2063 = vmatprep.mubr.bf16.mxu0 0
      %2064 = vmatmul.mubr.bf16.gmra.mrb[0].mxu0 %v1523
      %v2065 = vpop.f32.mrb[0].mxu0
      %v2066 = vadd.f32 0.0, %v2065
      %v2067 = vpop.f32.mrb[0].mxu0
      %v2068 = vpop.f32.mrb[0].mxu0
      %v2069 = vadd.f32 0.0, %v2068
      %v2070 = vpop.f32.mrb[0].mxu0
      %2071 = vmatprep.mubr.bf16.mxu0 0
      %2072 = vmatmul.mubr.bf16.gmra.mrb[0].mxu0 %v1526
      %v2073 = vpop.f32.mrb[0].mxu0
      %v2074 = vadd.f32 0.0, %v2073
      %v2075 = vpop.f32.mrb[0].mxu0
      %v2076 = vpop.f32.mrb[0].mxu0
      %v2077 = vadd.f32 0.0, %v2076
      %v2078 = vpop.f32.mrb[0].mxu0
      %2079 = vmatprep.mubr.bf16.mxu0 0
      %2080 = vmatmul.mubr.bf16.gmra.mrb[0].mxu0 %v1529
      %v2081 = vpop.f32.mrb[0].mxu0
      %v2082 = vadd.f32 0.0, %v2081
      %v2083 = vpop.f32.mrb[0].mxu0
      %v2084 = vpop.f32.mrb[0].mxu0
      %v2085 = vadd.f32 0.0, %v2084
      %v2086 = vpop.f32.mrb[0].mxu0
      %2087 = vmatprep.mubr.bf16.mxu0 0
      %2088 = vmatmul.mubr.bf16.gmra.mrb[0].mxu0 %v1532
      %v2089 = vpop.f32.mrb[0].mxu0
      %v2090 = vadd.f32 0.0, %v2089
      %v2091 = vpop.f32.mrb[0].mxu0
      %v2092 = vpop.f32.mrb[0].mxu0
      %v2093 = vadd.f32 0.0, %v2092
      %v2094 = vpop.f32.mrb[0].mxu0
      %2095 = vmatprep.mubr.bf16.mxu0 0
      %2096 = vmatmul.mubr.bf16.gmra.mrb[0].mxu0 %v1535
      %v2097 = vpop.f32.mrb[0].mxu0
      %v2098 = vadd.f32 0.0, %v2097
      %v2099 = vpop.f32.mrb[0].mxu0
      %v2100 = vpop.f32.mrb[0].mxu0
      %v2101 = vadd.f32 0.0, %v2100
      %v2102 = vpop.f32.mrb[0].mxu0
      %2103 = vmatprep.mubr.bf16.mxu0 0
      %2104 = vmatmul.mubr.bf16.gmra.mrb[0].mxu0 %v1538
      %v2105 = vpop.f32.mrb[0].mxu0
      %v2106 = vadd.f32 0.0, %v2105
      %v2107 = vpop.f32.mrb[0].mxu0
      %v2108 = vpop.f32.mrb[0].mxu0
      %v2109 = vadd.f32 0.0, %v2108
      %v2110 = vpop.f32.mrb[0].mxu0
      %2111 = vmatprep.mubr.bf16.mxu0 0
      %2112 = vmatmul.mubr.bf16.gmra.mrb[0].mxu0 %v1541
      %v2113 = vpop.f32.mrb[0].mxu0
      %v2114 = vadd.f32 0.0, %v2113
      %v2115 = vpop.f32.mrb[0].mxu0
      %v2116 = vpop.f32.mrb[0].mxu0
      %v2117 = vadd.f32 0.0, %v2116
      %v2118 = vpop.f32.mrb[0].mxu0
      %2119 = vmatprep.mubr.bf16.mxu0 0
      %2120 = vmatmul.mubr.bf16.gmra.mrb[0].mxu0 %v1757
      %v2121 = vpop.f32.mrb[0].mxu0
      %v2122 = vadd.f32 0.0, %v2121
      %v2123 = vpop.f32.mrb[0].mxu0
      %v2124 = vpop.f32.mrb[0].mxu0
      %v2125 = vadd.f32 0.0, %v2124
      %v2126 = vpop.f32.mrb[0].mxu0
      %2127 = vmatprep.mubr.bf16.mxu0 0
      %2128 = vmatmul.mubr.bf16.gmra.mrb[0].mxu0 %v1973
      %v2129 = vpop.f32.mrb[0].mxu0
      %v2130 = vadd.f32 0.0, %v2129
      %v2131 = vpop.f32.mrb[0].mxu0
      %v2132 = vpop.f32.mrb[0].mxu0
      %v2133 = vadd.f32 0.0, %v2132
      %v2134 = vpop.f32.mrb[0].mxu0
      %2135 = vdwg.mxu0
      %v2136 = vadd.f32 %v1920, %v2010
      %v2137 = vadd.f32 %v1921, %v2013
      %v2138 = vadd.f32 %v1922, %v2018
      %v2139 = vadd.f32 %v1923, %v2021
      %v2140 = vadd.f32 %v1924, %v2026
      %v2141 = vadd.f32 %v1925, %v2029
      %v2142 = vadd.f32 %v1926, %v2034
      %v2143 = vadd.f32 %v1927, %v2037
      %v2144 = vadd.f32 %v1928, %v2042
      %v2145 = vadd.f32 %v1929, %v2045
      %v2146 = vadd.f32 %v1930, %v2050
      %v2147 = vadd.f32 %v1931, %v2053
      %v2148 = vadd.f32 %v1932, %v2058
      %v2149 = vadd.f32 %v1933, %v2061
      %v2150 = vadd.f32 %v1934, %v2066
      %v2151 = vadd.f32 %v1935, %v2069
      %v2152 = vadd.f32 %v1936, %v2074
      %v2153 = vadd.f32 %v1937, %v2077
      %v2154 = vadd.f32 %v1938, %v2082
      %v2155 = vadd.f32 %v1939, %v2085
      %v2156 = vadd.f32 %v1940, %v2090
      %v2157 = vadd.f32 %v1941, %v2093
      %v2158 = vadd.f32 %v1942, %v2098
      %v2159 = vadd.f32 %v1943, %v2101
      %v2160 = vadd.f32 %v1944, %v2106
      %v2161 = vadd.f32 %v1945, %v2109
      %v2162 = vadd.f32 %v1946, %v2114
      %v2163 = vadd.f32 %v1947, %v2117
      %v2164 = vadd.f32 %v1948, %v2122
      %v2165 = vadd.f32 %v1949, %v2125
      %v2166 = vadd.f32 %v1950, %v2130
      %v2167 = vadd.f32 %v1951, %v2133
      %vm2186 = vcmask 1042432
      %vm2187 = vcmask 1046532
      %vm2188 = vmor %vm2186, %vm2187
      %v2189 = vrot.slane %v231, 5
      %v2190 = vrot.slane %v2189, 4
      %v2191 = vrot.slane %v232, 5
      %v2192 = vsel %vm2188, %v2190, %v2191
      %v2193 = vrot.slane %v2191, 4
      %v2194 = vrot.slane %v233, 5
      %v2195 = vsel %vm2188, %v2193, %v2194
      %v2196 = vrot.slane %v234, 5
      %v2197 = vrot.slane %v2196, 4
      %v2198 = vrot.slane %v235, 5
      %v2199 = vsel %vm2188, %v2197, %v2198
      %v2200 = vrot.slane %v2198, 4
      %v2201 = vrot.slane %v236, 5
      %v2202 = vsel %vm2188, %v2200, %v2201
      %v2203 = vrot.slane %v237, 5
      %v2204 = vrot.slane %v2203, 4
      %v2205 = vrot.slane %v238, 5
      %v2206 = vsel %vm2188, %v2204, %v2205
      %v2207 = vrot.slane %v2205, 4
      %v2208 = vrot.slane %v239, 5
      %v2209 = vsel %vm2188, %v2207, %v2208
      %v2210 = vrot.slane %v240, 5
      %v2211 = vrot.slane %v2210, 4
      %v2212 = vrot.slane %v241, 5
      %v2213 = vsel %vm2188, %v2211, %v2212
      %v2214 = vrot.slane %v2212, 4
      %v2215 = vrot.slane %v242, 5
      %v2216 = vsel %vm2188, %v2214, %v2215
      %v2217 = vrot.slane %v243, 5
      %v2218 = vrot.slane %v2217, 4
      %v2219 = vrot.slane %v244, 5
      %v2220 = vsel %vm2188, %v2218, %v2219
      %v2221 = vrot.slane %v2219, 4
      %v2222 = vrot.slane %v245, 5
      %v2223 = vsel %vm2188, %v2221, %v2222
      %v2224 = vrot.slane %v246, 5
      %v2225 = vrot.slane %v2224, 4
      %v2226 = vrot.slane %v247, 5
      %v2227 = vsel %vm2188, %v2225, %v2226
      %v2228 = vrot.slane %v2226, 4
      %v2229 = vrot.slane %v248, 5
      %v2230 = vsel %vm2188, %v2228, %v2229
      %v2231 = vrot.slane %v249, 5
      %v2232 = vrot.slane %v2231, 4
      %v2233 = vrot.slane %v250, 5
      %v2234 = vsel %vm2188, %v2232, %v2233
      %v2235 = vrot.slane %v2233, 4
      %v2236 = vrot.slane %v251, 5
      %v2237 = vsel %vm2188, %v2235, %v2236
      %v2238 = vrot.slane %v252, 5
      %v2239 = vrot.slane %v2238, 4
      %v2240 = vrot.slane %v253, 5
      %v2241 = vsel %vm2188, %v2239, %v2240
      %v2242 = vrot.slane %v2240, 4
      %v2243 = vrot.slane %v254, 5
      %v2244 = vsel %vm2188, %v2242, %v2243
      %v2245 = vrot.slane %v255, 5
      %v2246 = vrot.slane %v2245, 4
      %v2247 = vrot.slane %v256, 5
      %v2248 = vsel %vm2188, %v2246, %v2247
      %v2249 = vrot.slane %v2247, 4
      %v2250 = vrot.slane %v257, 5
      %v2251 = vsel %vm2188, %v2249, %v2250
      %v2252 = vrot.slane %v258, 5
      %v2253 = vrot.slane %v2252, 4
      %v2254 = vrot.slane %v259, 5
      %v2255 = vsel %vm2188, %v2253, %v2254
      %v2256 = vrot.slane %v2254, 4
      %v2257 = vrot.slane %v260, 5
      %v2258 = vsel %vm2188, %v2256, %v2257
      %v2259 = vrot.slane %v261, 5
      %v2260 = vrot.slane %v2259, 4
      %v2261 = vrot.slane %v262, 5
      %v2262 = vsel %vm2188, %v2260, %v2261
      %v2263 = vrot.slane %v2261, 4
      %v2264 = vrot.slane %v263, 5
      %v2265 = vsel %vm2188, %v2263, %v2264
      %v2266 = vrot.slane %v264, 5
      %v2267 = vrot.slane %v2266, 4
      %v2268 = vrot.slane %v265, 5
      %v2269 = vsel %vm2188, %v2267, %v2268
      %v2270 = vrot.slane %v2268, 4
      %v2271 = vrot.slane %v266, 5
      %v2272 = vsel %vm2188, %v2270, %v2271
      %v2273 = vrot.slane %v267, 5
      %v2274 = vrot.slane %v2273, 4
      %v2275 = vrot.slane %v268, 5
      %v2276 = vsel %vm2188, %v2274, %v2275
      %v2277 = vrot.slane %v2275, 4
      %v2278 = vrot.slane %v269, 5
      %v2279 = vsel %vm2188, %v2277, %v2278
      %v2280 = vrot.slane %v270, 5
      %v2281 = vrot.slane %v2280, 4
      %v2282 = vrot.slane %v271, 5
      %v2283 = vsel %vm2188, %v2281, %v2282
      %v2284 = vrot.slane %v2282, 4
      %v2285 = vrot.slane %v272, 5
      %v2286 = vsel %vm2188, %v2284, %v2285
      %v2287 = vrot.slane %v273, 5
      %v2288 = vrot.slane %v2287, 4
      %v2289 = vrot.slane %v274, 5
      %v2290 = vsel %vm2188, %v2288, %v2289
      %v2291 = vrot.slane %v2289, 4
      %v2292 = vrot.slane %v275, 5
      %v2293 = vsel %vm2188, %v2291, %v2292
      %v2294 = vrot.slane %v276, 5
      %v2295 = vrot.slane %v2294, 4
      %v2296 = vrot.slane %v277, 5
      %v2297 = vsel %vm2188, %v2295, %v2296
      %v2298 = vrot.slane %v2296, 4
      %v2299 = vrot.slane %v278, 5
      %v2300 = vsel %vm2188, %v2298, %v2299
      %v2301 = vrot.slane %v279, 5
      %v2302 = vrot.slane %v2301, 4
      %v2303 = vrot.slane %v280, 5
      %v2304 = vsel %vm2188, %v2302, %v2303
      %v2305 = vrot.slane %v2303, 4
      %v2306 = vrot.slane %v281, 5
      %v2307 = vsel %vm2188, %v2305, %v2306
      %v2308 = vrot.slane %v282, 5
      %v2309 = vrot.slane %v2308, 4
      %v2310 = vrot.slane %v283, 5
      %v2311 = vsel %vm2188, %v2309, %v2310
      %v2312 = vrot.slane %v2310, 4
      %v2313 = vrot.slane %v284, 5
      %v2314 = vsel %vm2188, %v2312, %v2313
      %s2315 = scalar_lea.vmem %s216, 32
      %v2316 = vld [vmem:[%s2315] sm:$0xf]
      %v2317 = vld [vmem:[%s2315 + $0x4] sm:$0xf]
      %v2318 = vld [vmem:[%s2315 + $0x8] sm:$0xf]
      %v2319 = vld [vmem:[%s2315 + $0xc] sm:$0xf]
      %v2320 = vunpack.c.l.b16 %v2192
      %v2321 = vunpack.c.l.b16 %v2195
      %v2322 = vunpack.c.l.b16 %v2199
      %v2323 = vunpack.c.l.b16 %v2202
      %v2324 = vunpack.c.l.b16 %v2206
      %v2325 = vunpack.c.l.b16 %v2209
      %v2326 = vunpack.c.l.b16 %v2213
      %v2327 = vunpack.c.l.b16 %v2216
      %v2328 = vunpack.c.l.b16 %v2220
      %v2329 = vunpack.c.l.b16 %v2223
      %v2330 = vunpack.c.l.b16 %v2227
      %v2331 = vunpack.c.l.b16 %v2230
      %v2332 = vunpack.c.l.b16 %v2234
      %v2333 = vunpack.c.l.b16 %v2237
      %v2334 = vunpack.c.l.b16 %v2241
      %v2335 = vunpack.c.l.b16 %v2244
      %v2336 = vunpack.c.l.b16 %v2248
      %v2337 = vunpack.c.l.b16 %v2251
      %v2338 = vunpack.c.l.b16 %v2255
      %v2339 = vunpack.c.l.b16 %v2258
      %v2340 = vunpack.c.l.b16 %v2262
      %v2341 = vunpack.c.l.b16 %v2265
      %v2342 = vunpack.c.l.b16 %v2269
      %v2343 = vunpack.c.l.b16 %v2272
      %v2344 = vunpack.c.l.b16 %v2276
      %v2345 = vunpack.c.l.b16 %v2279
      %v2346 = vunpack.c.l.b16 %v2283
      %v2347 = vunpack.c.l.b16 %v2286
      %v2348 = vunpack.c.l.b16 %v2290
      %v2349 = vunpack.c.l.b16 %v2293
      %v2350 = vunpack.c.l.b16 %v2297
      %v2351 = vunpack.c.l.b16 %v2300
      %v2352 = vpack.c.b16 %v2321, %v2320
      %v2353 = vpack.c.b16 %v2323, %v2322
      %v2354 = vpack.c.b16 %v2325, %v2324
      %v2355 = vpack.c.b16 %v2327, %v2326
      %v2356 = vpack.c.b16 %v2329, %v2328
      %v2357 = vpack.c.b16 %v2331, %v2330
      %v2358 = vpack.c.b16 %v2333, %v2332
      %v2359 = vpack.c.b16 %v2335, %v2334
      %v2360 = vpack.c.b16 %v2337, %v2336
      %v2361 = vpack.c.b16 %v2339, %v2338
      %v2362 = vpack.c.b16 %v2341, %v2340
      %v2363 = vpack.c.b16 %v2343, %v2342
      %v2364 = vpack.c.b16 %v2345, %v2344
      %v2365 = vpack.c.b16 %v2347, %v2346
      %v2366 = vpack.c.b16 %v2349, %v2348
      %v2367 = vpack.c.b16 %v2351, %v2350
      %v2372 = vunpack.c.l.b16 %v2316
      %v2373 = vunpack.c.l.b16 %v2317
      %v2374 = vunpack.c.l.b16 %v2318
      %v2375 = vunpack.c.l.b16 %v2319
      %v2376 = vpack.c.b16 %v2373, %v2372
      %v2377 = vpack.c.b16 %v2375, %v2374
      %v2381 = vsel %vm386, %v2352, 0
      %v2384 = vsel %vm386, %v2353, 0
      %v2387 = vsel %vm386, %v2354, 0
      %v2390 = vsel %vm386, %v2355, 0
      %v2393 = vsel %vm386, %v2356, 0
      %v2396 = vsel %vm386, %v2357, 0
      %v2399 = vsel %vm386, %v2358, 0
      %v2402 = vsel %vm386, %v2359, 0
      %v2405 = vsel %vm386, %v2360, 0
      %v2408 = vsel %vm386, %v2361, 0
      %v2411 = vsel %vm386, %v2362, 0
      %v2414 = vsel %vm386, %v2363, 0
      %v2417 = vsel %vm386, %v2364, 0
      %v2420 = vsel %vm386, %v2365, 0
      %v2423 = vsel %vm386, %v2366, 0
      %v2426 = vsel %vm386, %v2367, 0
      %2428 = vmatprep.subr.bf16.mxu0 0
      %2429 = vmatpush1.bf16.msra.mxu0 %v2376
      %2430 = vmatprep.subr.bf16.mxu0 0
      %2431 = vmatpush1.bf16.msra.mxu0 %v2377
      %2432 = vmatprep.subr.bf16.mxu0 0
      %2433 = vmatpush1.bf16.msra.mxu0 0
      %2434 = vmatprep.subr.bf16.mxu0 0
      %2435 = vmatpush1.bf16.msra.mxu0 0
      %2436 = vmatprep.subr.bf16.mxu0 0
      %2437 = vmatpush1.bf16.msra.mxu0 0
      %2438 = vmatprep.subr.bf16.mxu0 0
      %2439 = vmatpush1.bf16.msra.mxu0 0
      %2440 = vmatprep.subr.bf16.mxu0 0
      %2441 = vmatpush1.bf16.msra.mxu0 0
      %2442 = vmatprep.subr.bf16.mxu0 0
      %2443 = vmatpush1.bf16.msra.mxu0 0
      %2444 = vmatprep.subr.bf16.mxu0 0
      %2445 = vmatpush1.bf16.msra.mxu0 0
      %2446 = vmatprep.subr.bf16.mxu0 0
      %2447 = vmatpush1.bf16.msra.mxu0 0
      %2448 = vmatprep.subr.bf16.mxu0 0
      %2449 = vmatpush1.bf16.msra.mxu0 0
      %2450 = vmatprep.subr.bf16.mxu0 0
      %2451 = vmatpush1.bf16.msra.mxu0 0
      %2452 = vmatprep.subr.bf16.mxu0 0
      %2453 = vmatpush1.bf16.msra.mxu0 0
      %2454 = vmatprep.subr.bf16.mxu0 0
      %2455 = vmatpush1.bf16.msra.mxu0 0
      %2456 = vmatprep.subr.bf16.mxu0 0
      %2457 = vmatpush1.bf16.msra.mxu0 0
      %2458 = vmatprep.subr.bf16.mxu0 0
      %2459 = vmatpush1.bf16.msra.mxu0 0
      %2460 = vmatprep.mubr.bf16.mxu0 0
      %2461 = vmatmul.mubr.bf16.gmra.mrb[0].mxu0 %v2381
      %v2462 = vpop.f32.mrb[0].mxu0
      %v2463 = vadd.f32 0.0, %v2462
      %v2464 = vpop.f32.mrb[0].mxu0
      %v2465 = vpop.f32.mrb[0].mxu0
      %v2466 = vadd.f32 0.0, %v2465
      %v2467 = vpop.f32.mrb[0].mxu0
      %2468 = vmatprep.mubr.bf16.mxu0 0
      %2469 = vmatmul.mubr.bf16.gmra.mrb[0].mxu0 %v2384
      %v2470 = vpop.f32.mrb[0].mxu0
      %v2471 = vadd.f32 0.0, %v2470
      %v2472 = vpop.f32.mrb[0].mxu0
      %v2473 = vpop.f32.mrb[0].mxu0
      %v2474 = vadd.f32 0.0, %v2473
      %v2475 = vpop.f32.mrb[0].mxu0
      %2476 = vmatprep.mubr.bf16.mxu0 0
      %2477 = vmatmul.mubr.bf16.gmra.mrb[0].mxu0 %v2387
      %v2478 = vpop.f32.mrb[0].mxu0
      %v2479 = vadd.f32 0.0, %v2478
      %v2480 = vpop.f32.mrb[0].mxu0
      %v2481 = vpop.f32.mrb[0].mxu0
      %v2482 = vadd.f32 0.0, %v2481
      %v2483 = vpop.f32.mrb[0].mxu0
      %2484 = vmatprep.mubr.bf16.mxu0 0
      %2485 = vmatmul.mubr.bf16.gmra.mrb[0].mxu0 %v2390
      %v2486 = vpop.f32.mrb[0].mxu0
      %v2487 = vadd.f32 0.0, %v2486
      %v2488 = vpop.f32.mrb[0].mxu0
      %v2489 = vpop.f32.mrb[0].mxu0
      %v2490 = vadd.f32 0.0, %v2489
      %v2491 = vpop.f32.mrb[0].mxu0
      %2492 = vmatprep.mubr.bf16.mxu0 0
      %2493 = vmatmul.mubr.bf16.gmra.mrb[0].mxu0 %v2393
      %v2494 = vpop.f32.mrb[0].mxu0
      %v2495 = vadd.f32 0.0, %v2494
      %v2496 = vpop.f32.mrb[0].mxu0
      %v2497 = vpop.f32.mrb[0].mxu0
      %v2498 = vadd.f32 0.0, %v2497
      %v2499 = vpop.f32.mrb[0].mxu0
      %2500 = vmatprep.mubr.bf16.mxu0 0
      %2501 = vmatmul.mubr.bf16.gmra.mrb[0].mxu0 %v2396
      %v2502 = vpop.f32.mrb[0].mxu0
      %v2503 = vadd.f32 0.0, %v2502
      %v2504 = vpop.f32.mrb[0].mxu0
      %v2505 = vpop.f32.mrb[0].mxu0
      %v2506 = vadd.f32 0.0, %v2505
      %v2507 = vpop.f32.mrb[0].mxu0
      %2508 = vmatprep.mubr.bf16.mxu0 0
      %2509 = vmatmul.mubr.bf16.gmra.mrb[0].mxu0 %v2399
      %v2510 = vpop.f32.mrb[0].mxu0
      %v2511 = vadd.f32 0.0, %v2510
      %v2512 = vpop.f32.mrb[0].mxu0
      %v2513 = vpop.f32.mrb[0].mxu0
      %v2514 = vadd.f32 0.0, %v2513
      %v2515 = vpop.f32.mrb[0].mxu0
      %2516 = vmatprep.mubr.bf16.mxu0 0
      %2517 = vmatmul.mubr.bf16.gmra.mrb[0].mxu0 %v2402
      %v2518 = vpop.f32.mrb[0].mxu0
      %v2519 = vadd.f32 0.0, %v2518
      %v2520 = vpop.f32.mrb[0].mxu0
      %v2521 = vpop.f32.mrb[0].mxu0
      %v2522 = vadd.f32 0.0, %v2521
      %v2523 = vpop.f32.mrb[0].mxu0
      %2524 = vmatprep.mubr.bf16.mxu0 0
      %2525 = vmatmul.mubr.bf16.gmra.mrb[0].mxu0 %v2405
      %v2526 = vpop.f32.mrb[0].mxu0
      %v2527 = vadd.f32 0.0, %v2526
      %v2528 = vpop.f32.mrb[0].mxu0
      %v2529 = vpop.f32.mrb[0].mxu0
      %v2530 = vadd.f32 0.0, %v2529
      %v2531 = vpop.f32.mrb[0].mxu0
      %2532 = vmatprep.mubr.bf16.mxu0 0
      %2533 = vmatmul.mubr.bf16.gmra.mrb[0].mxu0 %v2408
      %v2534 = vpop.f32.mrb[0].mxu0
      %v2535 = vadd.f32 0.0, %v2534
      %v2536 = vpop.f32.mrb[0].mxu0
      %v2537 = vpop.f32.mrb[0].mxu0
      %v2538 = vadd.f32 0.0, %v2537
      %v2539 = vpop.f32.mrb[0].mxu0
      %2540 = vmatprep.mubr.bf16.mxu0 0
      %2541 = vmatmul.mubr.bf16.gmra.mrb[0].mxu0 %v2411
      %v2542 = vpop.f32.mrb[0].mxu0
      %v2543 = vadd.f32 0.0, %v2542
      %v2544 = vpop.f32.mrb[0].mxu0
      %v2545 = vpop.f32.mrb[0].mxu0
      %v2546 = vadd.f32 0.0, %v2545
      %v2547 = vpop.f32.mrb[0].mxu0
      %2548 = vmatprep.mubr.bf16.mxu0 0
      %2549 = vmatmul.mubr.bf16.gmra.mrb[0].mxu0 %v2414
      %v2550 = vpop.f32.mrb[0].mxu0
      %v2551 = vadd.f32 0.0, %v2550
      %v2552 = vpop.f32.mrb[0].mxu0
      %v2553 = vpop.f32.mrb[0].mxu0
      %v2554 = vadd.f32 0.0, %v2553
      %v2555 = vpop.f32.mrb[0].mxu0
      %2556 = vmatprep.mubr.bf16.mxu0 0
      %2557 = vmatmul.mubr.bf16.gmra.mrb[0].mxu0 %v2417
      %v2558 = vpop.f32.mrb[0].mxu0
      %v2559 = vadd.f32 0.0, %v2558
      %v2560 = vpop.f32.mrb[0].mxu0
      %v2561 = vpop.f32.mrb[0].mxu0
      %v2562 = vadd.f32 0.0, %v2561
      %v2563 = vpop.f32.mrb[0].mxu0
      %2564 = vmatprep.mubr.bf16.mxu0 0
      %2565 = vmatmul.mubr.bf16.gmra.mrb[0].mxu0 %v2420
      %v2566 = vpop.f32.mrb[0].mxu0
      %v2567 = vadd.f32 0.0, %v2566
      %v2568 = vpop.f32.mrb[0].mxu0
      %v2569 = vpop.f32.mrb[0].mxu0
      %v2570 = vadd.f32 0.0, %v2569
      %v2571 = vpop.f32.mrb[0].mxu0
      %2572 = vmatprep.mubr.bf16.mxu0 0
      %2573 = vmatmul.mubr.bf16.gmra.mrb[0].mxu0 %v2423
      %v2574 = vpop.f32.mrb[0].mxu0
      %v2575 = vadd.f32 0.0, %v2574
      %v2576 = vpop.f32.mrb[0].mxu0
      %v2577 = vpop.f32.mrb[0].mxu0
      %v2578 = vadd.f32 0.0, %v2577
      %v2579 = vpop.f32.mrb[0].mxu0
      %2580 = vmatprep.mubr.bf16.mxu0 0
      %2581 = vmatmul.mubr.bf16.gmra.mrb[0].mxu0 %v2426
      %v2582 = vpop.f32.mrb[0].mxu0
      %v2583 = vadd.f32 0.0, %v2582
      %v2584 = vpop.f32.mrb[0].mxu0
      %v2585 = vpop.f32.mrb[0].mxu0
      %v2586 = vadd.f32 0.0, %v2585
      %v2587 = vpop.f32.mrb[0].mxu0
      %2588 = vdwg.mxu0
      %v2589 = vadd.f32 %v2136, %v2463
      %v2590 = vadd.f32 %v2137, %v2466
      %v2591 = vadd.f32 %v2138, %v2471
      %v2592 = vadd.f32 %v2139, %v2474
      %v2593 = vadd.f32 %v2140, %v2479
      %v2594 = vadd.f32 %v2141, %v2482
      %v2595 = vadd.f32 %v2142, %v2487
      %v2596 = vadd.f32 %v2143, %v2490
      %v2597 = vadd.f32 %v2144, %v2495
      %v2598 = vadd.f32 %v2145, %v2498
      %v2599 = vadd.f32 %v2146, %v2503
      %v2600 = vadd.f32 %v2147, %v2506
      %v2601 = vadd.f32 %v2148, %v2511
      %v2602 = vadd.f32 %v2149, %v2514
      %v2603 = vadd.f32 %v2150, %v2519
      %v2604 = vadd.f32 %v2151, %v2522
      %v2605 = vadd.f32 %v2152, %v2527
      %v2606 = vadd.f32 %v2153, %v2530
      %v2607 = vadd.f32 %v2154, %v2535
      %v2608 = vadd.f32 %v2155, %v2538
      %v2609 = vadd.f32 %v2156, %v2543
      %v2610 = vadd.f32 %v2157, %v2546
      %v2611 = vadd.f32 %v2158, %v2551
      %v2612 = vadd.f32 %v2159, %v2554
      %v2613 = vadd.f32 %v2160, %v2559
      %v2614 = vadd.f32 %v2161, %v2562
      %v2615 = vadd.f32 %v2162, %v2567
      %v2616 = vadd.f32 %v2163, %v2570
      %v2617 = vadd.f32 %v2164, %v2575
      %v2618 = vadd.f32 %v2165, %v2578
      %v2619 = vadd.f32 %v2166, %v2583
      %v2620 = vadd.f32 %v2167, %v2586
      %s2621 = scalar_lea.vmem %s216, 80
      %v2622 = vld [vmem:[%s2621] sm:$0xf]
      %v2623 = vld [vmem:[%s2621 + $0x4] sm:$0xf]
      %v2624 = vld [vmem:[%s2621 + $0x8] sm:$0xf]
      %v2625 = vld [vmem:[%s2621 + $0xc] sm:$0xf]
      %v2626 = vunpack.c.l.b16 %v2304
      %v2627 = vunpack.c.l.b16 %v2307
      %v2628 = vpack.c.b16 %v2627, %v2626
      %v2633 = vunpack.c.l.b16 %v2622
      %v2634 = vunpack.c.l.b16 %v2623
      %v2635 = vunpack.c.l.b16 %v2624
      %v2636 = vunpack.c.l.b16 %v2625
      %v2637 = vpack.c.b16 %v2634, %v2633
      %v2638 = vpack.c.b16 %v2636, %v2635
      %v2642 = vsel %vm386, %v2628, 0
      %2644 = vmatprep.subr.bf16.mxu0 0
      %2645 = vmatpush1.bf16.msra.mxu0 %v2637
      %2646 = vmatprep.subr.bf16.mxu0 0
      %2647 = vmatpush1.bf16.msra.mxu0 %v2638
      %2648 = vmatprep.subr.bf16.mxu0 0
      %2649 = vmatpush1.bf16.msra.mxu0 0
      %2650 = vmatprep.subr.bf16.mxu0 0
      %2651 = vmatpush1.bf16.msra.mxu0 0
      %2652 = vmatprep.subr.bf16.mxu0 0
      %2653 = vmatpush1.bf16.msra.mxu0 0
      %2654 = vmatprep.subr.bf16.mxu0 0
      %2655 = vmatpush1.bf16.msra.mxu0 0
      %2656 = vmatprep.subr.bf16.mxu0 0
      %2657 = vmatpush1.bf16.msra.mxu0 0
      %2658 = vmatprep.subr.bf16.mxu0 0
      %2659 = vmatpush1.bf16.msra.mxu0 0
      %2660 = vmatprep.subr.bf16.mxu0 0
      %2661 = vmatpush1.bf16.msra.mxu0 0
      %2662 = vmatprep.subr.bf16.mxu0 0
      %2663 = vmatpush1.bf16.msra.mxu0 0
      %2664 = vmatprep.subr.bf16.mxu0 0
      %2665 = vmatpush1.bf16.msra.mxu0 0
      %2666 = vmatprep.subr.bf16.mxu0 0
      %2667 = vmatpush1.bf16.msra.mxu0 0
      %2668 = vmatprep.subr.bf16.mxu0 0
      %2669 = vmatpush1.bf16.msra.mxu0 0
      %2670 = vmatprep.subr.bf16.mxu0 0
      %2671 = vmatpush1.bf16.msra.mxu0 0
      %2672 = vmatprep.subr.bf16.mxu0 0
      %2673 = vmatpush1.bf16.msra.mxu0 0
      %2674 = vmatprep.subr.bf16.mxu0 0
      %2675 = vmatpush1.bf16.msra.mxu0 0
      %2676 = vmatprep.mubr.bf16.mxu0 0
      %2677 = vmatmul.mubr.bf16.gmra.mrb[0].mxu0 %v2384
      %v2678 = vpop.f32.mrb[0].mxu0
      %v2679 = vadd.f32 0.0, %v2678
      %v2680 = vpop.f32.mrb[0].mxu0
      %v2681 = vpop.f32.mrb[0].mxu0
      %v2682 = vadd.f32 0.0, %v2681
      %v2683 = vpop.f32.mrb[0].mxu0
      %2684 = vmatprep.mubr.bf16.mxu0 0
      %2685 = vmatmul.mubr.bf16.gmra.mrb[0].mxu0 %v2387
      %v2686 = vpop.f32.mrb[0].mxu0
      %v2687 = vadd.f32 0.0, %v2686
      %v2688 = vpop.f32.mrb[0].mxu0
      %v2689 = vpop.f32.mrb[0].mxu0
      %v2690 = vadd.f32 0.0, %v2689
      %v2691 = vpop.f32.mrb[0].mxu0
      %2692 = vmatprep.mubr.bf16.mxu0 0
      %2693 = vmatmul.mubr.bf16.gmra.mrb[0].mxu0 %v2390
      %v2694 = vpop.f32.mrb[0].mxu0
      %v2695 = vadd.f32 0.0, %v2694
      %v2696 = vpop.f32.mrb[0].mxu0
      %v2697 = vpop.f32.mrb[0].mxu0
      %v2698 = vadd.f32 0.0, %v2697
      %v2699 = vpop.f32.mrb[0].mxu0
      %2700 = vmatprep.mubr.bf16.mxu0 0
      %2701 = vmatmul.mubr.bf16.gmra.mrb[0].mxu0 %v2393
      %v2702 = vpop.f32.mrb[0].mxu0
      %v2703 = vadd.f32 0.0, %v2702
      %v2704 = vpop.f32.mrb[0].mxu0
      %v2705 = vpop.f32.mrb[0].mxu0
      %v2706 = vadd.f32 0.0, %v2705
      %v2707 = vpop.f32.mrb[0].mxu0
      %2708 = vmatprep.mubr.bf16.mxu0 0
      %2709 = vmatmul.mubr.bf16.gmra.mrb[0].mxu0 %v2396
      %v2710 = vpop.f32.mrb[0].mxu0
      %v2711 = vadd.f32 0.0, %v2710
      %v2712 = vpop.f32.mrb[0].mxu0
      %v2713 = vpop.f32.mrb[0].mxu0
      %v2714 = vadd.f32 0.0, %v2713
      %v2715 = vpop.f32.mrb[0].mxu0
      %2716 = vmatprep.mubr.bf16.mxu0 0
      %2717 = vmatmul.mubr.bf16.gmra.mrb[0].mxu0 %v2399
      %v2718 = vpop.f32.mrb[0].mxu0
      %v2719 = vadd.f32 0.0, %v2718
      %v2720 = vpop.f32.mrb[0].mxu0
      %v2721 = vpop.f32.mrb[0].mxu0
      %v2722 = vadd.f32 0.0, %v2721
      %v2723 = vpop.f32.mrb[0].mxu0
      %2724 = vmatprep.mubr.bf16.mxu0 0
      %2725 = vmatmul.mubr.bf16.gmra.mrb[0].mxu0 %v2402
      %v2726 = vpop.f32.mrb[0].mxu0
      %v2727 = vadd.f32 0.0, %v2726
      %v2728 = vpop.f32.mrb[0].mxu0
      %v2729 = vpop.f32.mrb[0].mxu0
      %v2730 = vadd.f32 0.0, %v2729
      %v2731 = vpop.f32.mrb[0].mxu0
      %2732 = vmatprep.mubr.bf16.mxu0 0
      %2733 = vmatmul.mubr.bf16.gmra.mrb[0].mxu0 %v2405
      %v2734 = vpop.f32.mrb[0].mxu0
      %v2735 = vadd.f32 0.0, %v2734
      %v2736 = vpop.f32.mrb[0].mxu0
      %v2737 = vpop.f32.mrb[0].mxu0
      %v2738 = vadd.f32 0.0, %v2737
      %v2739 = vpop.f32.mrb[0].mxu0
      %2740 = vmatprep.mubr.bf16.mxu0 0
      %2741 = vmatmul.mubr.bf16.gmra.mrb[0].mxu0 %v2408
      %v2742 = vpop.f32.mrb[0].mxu0
      %v2743 = vadd.f32 0.0, %v2742
      %v2744 = vpop.f32.mrb[0].mxu0
      %v2745 = vpop.f32.mrb[0].mxu0
      %v2746 = vadd.f32 0.0, %v2745
      %v2747 = vpop.f32.mrb[0].mxu0
      %2748 = vmatprep.mubr.bf16.mxu0 0
      %2749 = vmatmul.mubr.bf16.gmra.mrb[0].mxu0 %v2411
      %v2750 = vpop.f32.mrb[0].mxu0
      %v2751 = vadd.f32 0.0, %v2750
      %v2752 = vpop.f32.mrb[0].mxu0
      %v2753 = vpop.f32.mrb[0].mxu0
      %v2754 = vadd.f32 0.0, %v2753
      %v2755 = vpop.f32.mrb[0].mxu0
      %2756 = vmatprep.mubr.bf16.mxu0 0
      %2757 = vmatmul.mubr.bf16.gmra.mrb[0].mxu0 %v2414
      %v2758 = vpop.f32.mrb[0].mxu0
      %v2759 = vadd.f32 0.0, %v2758
      %v2760 = vpop.f32.mrb[0].mxu0
      %v2761 = vpop.f32.mrb[0].mxu0
      %v2762 = vadd.f32 0.0, %v2761
      %v2763 = vpop.f32.mrb[0].mxu0
      %2764 = vmatprep.mubr.bf16.mxu0 0
      %2765 = vmatmul.mubr.bf16.gmra.mrb[0].mxu0 %v2417
      %v2766 = vpop.f32.mrb[0].mxu0
      %v2767 = vadd.f32 0.0, %v2766
      %v2768 = vpop.f32.mrb[0].mxu0
      %v2769 = vpop.f32.mrb[0].mxu0
      %v2770 = vadd.f32 0.0, %v2769
      %v2771 = vpop.f32.mrb[0].mxu0
      %2772 = vmatprep.mubr.bf16.mxu0 0
      %2773 = vmatmul.mubr.bf16.gmra.mrb[0].mxu0 %v2420
      %v2774 = vpop.f32.mrb[0].mxu0
      %v2775 = vadd.f32 0.0, %v2774
      %v2776 = vpop.f32.mrb[0].mxu0
      %v2777 = vpop.f32.mrb[0].mxu0
      %v2778 = vadd.f32 0.0, %v2777
      %v2779 = vpop.f32.mrb[0].mxu0
      %2780 = vmatprep.mubr.bf16.mxu0 0
      %2781 = vmatmul.mubr.bf16.gmra.mrb[0].mxu0 %v2423
      %v2782 = vpop.f32.mrb[0].mxu0
      %v2783 = vadd.f32 0.0, %v2782
      %v2784 = vpop.f32.mrb[0].mxu0
      %v2785 = vpop.f32.mrb[0].mxu0
      %v2786 = vadd.f32 0.0, %v2785
      %v2787 = vpop.f32.mrb[0].mxu0
      %2788 = vmatprep.mubr.bf16.mxu0 0
      %2789 = vmatmul.mubr.bf16.gmra.mrb[0].mxu0 %v2426
      %v2790 = vpop.f32.mrb[0].mxu0
      %v2791 = vadd.f32 0.0, %v2790
      %v2792 = vpop.f32.mrb[0].mxu0
      %v2793 = vpop.f32.mrb[0].mxu0
      %v2794 = vadd.f32 0.0, %v2793
      %v2795 = vpop.f32.mrb[0].mxu0
      %2796 = vmatprep.mubr.bf16.mxu0 0
      %2797 = vmatmul.mubr.bf16.gmra.mrb[0].mxu0 %v2642
      %v2798 = vpop.f32.mrb[0].mxu0
      %v2799 = vadd.f32 0.0, %v2798
      %v2800 = vpop.f32.mrb[0].mxu0
      %v2801 = vpop.f32.mrb[0].mxu0
      %v2802 = vadd.f32 0.0, %v2801
      %v2803 = vpop.f32.mrb[0].mxu0
      %2804 = vdwg.mxu0
      %v2805 = vadd.f32 %v2589, %v2679
      %v2806 = vadd.f32 %v2590, %v2682
      %v2807 = vadd.f32 %v2591, %v2687
      %v2808 = vadd.f32 %v2592, %v2690
      %v2809 = vadd.f32 %v2593, %v2695
      %v2810 = vadd.f32 %v2594, %v2698
      %v2811 = vadd.f32 %v2595, %v2703
      %v2812 = vadd.f32 %v2596, %v2706
      %v2813 = vadd.f32 %v2597, %v2711
      %v2814 = vadd.f32 %v2598, %v2714
      %v2815 = vadd.f32 %v2599, %v2719
      %v2816 = vadd.f32 %v2600, %v2722
      %v2817 = vadd.f32 %v2601, %v2727
      %v2818 = vadd.f32 %v2602, %v2730
      %v2819 = vadd.f32 %v2603, %v2735
      %v2820 = vadd.f32 %v2604, %v2738
      %v2821 = vadd.f32 %v2605, %v2743
      %v2822 = vadd.f32 %v2606, %v2746
      %v2823 = vadd.f32 %v2607, %v2751
      %v2824 = vadd.f32 %v2608, %v2754
      %v2825 = vadd.f32 %v2609, %v2759
      %v2826 = vadd.f32 %v2610, %v2762
      %v2827 = vadd.f32 %v2611, %v2767
      %v2828 = vadd.f32 %v2612, %v2770
      %v2829 = vadd.f32 %v2613, %v2775
      %v2830 = vadd.f32 %v2614, %v2778
      %v2831 = vadd.f32 %v2615, %v2783
      %v2832 = vadd.f32 %v2616, %v2786
      %v2833 = vadd.f32 %v2617, %v2791
      %v2834 = vadd.f32 %v2618, %v2794
      %v2835 = vadd.f32 %v2619, %v2799
      %v2836 = vadd.f32 %v2620, %v2802
      %s2837 = scalar_lea.vmem %s216, 128
      %v2838 = vld [vmem:[%s2837] sm:$0xf]
      %v2839 = vld [vmem:[%s2837 + $0x4] sm:$0xf]
      %v2840 = vld [vmem:[%s2837 + $0x8] sm:$0xf]
      %v2841 = vld [vmem:[%s2837 + $0xc] sm:$0xf]
      %v2842 = vunpack.c.l.b16 %v2311
      %v2843 = vunpack.c.l.b16 %v2314
      %v2844 = vpack.c.b16 %v2843, %v2842
      %v2849 = vunpack.c.l.b16 %v2838
      %v2850 = vunpack.c.l.b16 %v2839
      %v2851 = vunpack.c.l.b16 %v2840
      %v2852 = vunpack.c.l.b16 %v2841
      %v2853 = vpack.c.b16 %v2850, %v2849
      %v2854 = vpack.c.b16 %v2852, %v2851
      %v2858 = vsel %vm386, %v2844, 0
      %2860 = vmatprep.subr.bf16.mxu0 0
      %2861 = vmatpush1.bf16.msra.mxu0 %v2853
      %2862 = vmatprep.subr.bf16.mxu0 0
      %2863 = vmatpush1.bf16.msra.mxu0 %v2854
      %2864 = vmatprep.subr.bf16.mxu0 0
      %2865 = vmatpush1.bf16.msra.mxu0 0
      %2866 = vmatprep.subr.bf16.mxu0 0
      %2867 = vmatpush1.bf16.msra.mxu0 0
      %2868 = vmatprep.subr.bf16.mxu0 0
      %2869 = vmatpush1.bf16.msra.mxu0 0
      %2870 = vmatprep.subr.bf16.mxu0 0
      %2871 = vmatpush1.bf16.msra.mxu0 0
      %2872 = vmatprep.subr.bf16.mxu0 0
      %2873 = vmatpush1.bf16.msra.mxu0 0
      %2874 = vmatprep.subr.bf16.mxu0 0
      %2875 = vmatpush1.bf16.msra.mxu0 0
      %2876 = vmatprep.subr.bf16.mxu0 0
      %2877 = vmatpush1.bf16.msra.mxu0 0
      %2878 = vmatprep.subr.bf16.mxu0 0
      %2879 = vmatpush1.bf16.msra.mxu0 0
      %2880 = vmatprep.subr.bf16.mxu0 0
      %2881 = vmatpush1.bf16.msra.mxu0 0
      %2882 = vmatprep.subr.bf16.mxu0 0
      %2883 = vmatpush1.bf16.msra.mxu0 0
      %2884 = vmatprep.subr.bf16.mxu0 0
      %2885 = vmatpush1.bf16.msra.mxu0 0
      %2886 = vmatprep.subr.bf16.mxu0 0
      %2887 = vmatpush1.bf16.msra.mxu0 0
      %2888 = vmatprep.subr.bf16.mxu0 0
      %2889 = vmatpush1.bf16.msra.mxu0 0
      %2890 = vmatprep.subr.bf16.mxu0 0
      %2891 = vmatpush1.bf16.msra.mxu0 0
      %2892 = vmatprep.mubr.bf16.mxu0 0
      %2893 = vmatmul.mubr.bf16.gmra.mrb[0].mxu0 %v2387
      %v2894 = vpop.f32.mrb[0].mxu0
      %v2895 = vadd.f32 0.0, %v2894
      %v2896 = vpop.f32.mrb[0].mxu0
      %v2897 = vpop.f32.mrb[0].mxu0
      %v2898 = vadd.f32 0.0, %v2897
      %v2899 = vpop.f32.mrb[0].mxu0
      %2900 = vmatprep.mubr.bf16.mxu0 0
      %2901 = vmatmul.mubr.bf16.gmra.mrb[0].mxu0 %v2390
      %v2902 = vpop.f32.mrb[0].mxu0
      %v2903 = vadd.f32 0.0, %v2902
      %v2904 = vpop.f32.mrb[0].mxu0
      %v2905 = vpop.f32.mrb[0].mxu0
      %v2906 = vadd.f32 0.0, %v2905
      %v2907 = vpop.f32.mrb[0].mxu0
      %2908 = vmatprep.mubr.bf16.mxu0 0
      %2909 = vmatmul.mubr.bf16.gmra.mrb[0].mxu0 %v2393
      %v2910 = vpop.f32.mrb[0].mxu0
      %v2911 = vadd.f32 0.0, %v2910
      %v2912 = vpop.f32.mrb[0].mxu0
      %v2913 = vpop.f32.mrb[0].mxu0
      %v2914 = vadd.f32 0.0, %v2913
      %v2915 = vpop.f32.mrb[0].mxu0
      %2916 = vmatprep.mubr.bf16.mxu0 0
      %2917 = vmatmul.mubr.bf16.gmra.mrb[0].mxu0 %v2396
      %v2918 = vpop.f32.mrb[0].mxu0
      %v2919 = vadd.f32 0.0, %v2918
      %v2920 = vpop.f32.mrb[0].mxu0
      %v2921 = vpop.f32.mrb[0].mxu0
      %v2922 = vadd.f32 0.0, %v2921
      %v2923 = vpop.f32.mrb[0].mxu0
      %2924 = vmatprep.mubr.bf16.mxu0 0
      %2925 = vmatmul.mubr.bf16.gmra.mrb[0].mxu0 %v2399
      %v2926 = vpop.f32.mrb[0].mxu0
      %v2927 = vadd.f32 0.0, %v2926
      %v2928 = vpop.f32.mrb[0].mxu0
      %v2929 = vpop.f32.mrb[0].mxu0
      %v2930 = vadd.f32 0.0, %v2929
      %v2931 = vpop.f32.mrb[0].mxu0
      %2932 = vmatprep.mubr.bf16.mxu0 0
      %2933 = vmatmul.mubr.bf16.gmra.mrb[0].mxu0 %v2402
      %v2934 = vpop.f32.mrb[0].mxu0
      %v2935 = vadd.f32 0.0, %v2934
      %v2936 = vpop.f32.mrb[0].mxu0
      %v2937 = vpop.f32.mrb[0].mxu0
      %v2938 = vadd.f32 0.0, %v2937
      %v2939 = vpop.f32.mrb[0].mxu0
      %2940 = vmatprep.mubr.bf16.mxu0 0
      %2941 = vmatmul.mubr.bf16.gmra.mrb[0].mxu0 %v2405
      %v2942 = vpop.f32.mrb[0].mxu0
      %v2943 = vadd.f32 0.0, %v2942
      %v2944 = vpop.f32.mrb[0].mxu0
      %v2945 = vpop.f32.mrb[0].mxu0
      %v2946 = vadd.f32 0.0, %v2945
      %v2947 = vpop.f32.mrb[0].mxu0
      %2948 = vmatprep.mubr.bf16.mxu0 0
      %2949 = vmatmul.mubr.bf16.gmra.mrb[0].mxu0 %v2408
      %v2950 = vpop.f32.mrb[0].mxu0
      %v2951 = vadd.f32 0.0, %v2950
      %v2952 = vpop.f32.mrb[0].mxu0
      %v2953 = vpop.f32.mrb[0].mxu0
      %v2954 = vadd.f32 0.0, %v2953
      %v2955 = vpop.f32.mrb[0].mxu0
      %2956 = vmatprep.mubr.bf16.mxu0 0
      %2957 = vmatmul.mubr.bf16.gmra.mrb[0].mxu0 %v2411
      %v2958 = vpop.f32.mrb[0].mxu0
      %v2959 = vadd.f32 0.0, %v2958
      %v2960 = vpop.f32.mrb[0].mxu0
      %v2961 = vpop.f32.mrb[0].mxu0
      %v2962 = vadd.f32 0.0, %v2961
      %v2963 = vpop.f32.mrb[0].mxu0
      %2964 = vmatprep.mubr.bf16.mxu0 0
      %2965 = vmatmul.mubr.bf16.gmra.mrb[0].mxu0 %v2414
      %v2966 = vpop.f32.mrb[0].mxu0
      %v2967 = vadd.f32 0.0, %v2966
      %v2968 = vpop.f32.mrb[0].mxu0
      %v2969 = vpop.f32.mrb[0].mxu0
      %v2970 = vadd.f32 0.0, %v2969
      %v2971 = vpop.f32.mrb[0].mxu0
      %2972 = vmatprep.mubr.bf16.mxu0 0
      %2973 = vmatmul.mubr.bf16.gmra.mrb[0].mxu0 %v2417
      %v2974 = vpop.f32.mrb[0].mxu0
      %v2975 = vadd.f32 0.0, %v2974
      %v2976 = vpop.f32.mrb[0].mxu0
      %v2977 = vpop.f32.mrb[0].mxu0
      %v2978 = vadd.f32 0.0, %v2977
      %v2979 = vpop.f32.mrb[0].mxu0
      %2980 = vmatprep.mubr.bf16.mxu0 0
      %2981 = vmatmul.mubr.bf16.gmra.mrb[0].mxu0 %v2420
      %v2982 = vpop.f32.mrb[0].mxu0
      %v2983 = vadd.f32 0.0, %v2982
      %v2984 = vpop.f32.mrb[0].mxu0
      %v2985 = vpop.f32.mrb[0].mxu0
      %v2986 = vadd.f32 0.0, %v2985
      %v2987 = vpop.f32.mrb[0].mxu0
      %2988 = vmatprep.mubr.bf16.mxu0 0
      %2989 = vmatmul.mubr.bf16.gmra.mrb[0].mxu0 %v2423
      %v2990 = vpop.f32.mrb[0].mxu0
      %v2991 = vadd.f32 0.0, %v2990
      %v2992 = vpop.f32.mrb[0].mxu0
      %v2993 = vpop.f32.mrb[0].mxu0
      %v2994 = vadd.f32 0.0, %v2993
      %v2995 = vpop.f32.mrb[0].mxu0
      %2996 = vmatprep.mubr.bf16.mxu0 0
      %2997 = vmatmul.mubr.bf16.gmra.mrb[0].mxu0 %v2426
      %v2998 = vpop.f32.mrb[0].mxu0
      %v2999 = vadd.f32 0.0, %v2998
      %v3000 = vpop.f32.mrb[0].mxu0
      %v3001 = vpop.f32.mrb[0].mxu0
      %v3002 = vadd.f32 0.0, %v3001
      %v3003 = vpop.f32.mrb[0].mxu0
      %3004 = vmatprep.mubr.bf16.mxu0 0
      %3005 = vmatmul.mubr.bf16.gmra.mrb[0].mxu0 %v2642
      %v3006 = vpop.f32.mrb[0].mxu0
      %v3007 = vadd.f32 0.0, %v3006
      %v3008 = vpop.f32.mrb[0].mxu0
      %v3009 = vpop.f32.mrb[0].mxu0
      %v3010 = vadd.f32 0.0, %v3009
      %v3011 = vpop.f32.mrb[0].mxu0
      %3012 = vmatprep.mubr.bf16.mxu0 0
      %3013 = vmatmul.mubr.bf16.gmra.mrb[0].mxu0 %v2858
      %v3014 = vpop.f32.mrb[0].mxu0
      %v3015 = vadd.f32 0.0, %v3014
      %v3016 = vpop.f32.mrb[0].mxu0
      %v3017 = vpop.f32.mrb[0].mxu0
      %v3018 = vadd.f32 0.0, %v3017
      %v3019 = vpop.f32.mrb[0].mxu0
      %3020 = vdwg.mxu0
      %v3021 = vadd.f32 %v2805, %v2895
      %v3022 = vadd.f32 %v2806, %v2898
      %v3023 = vadd.f32 %v2807, %v2903
      %v3024 = vadd.f32 %v2808, %v2906
      %v3025 = vadd.f32 %v2809, %v2911
      %v3026 = vadd.f32 %v2810, %v2914
      %v3027 = vadd.f32 %v2811, %v2919
      %v3028 = vadd.f32 %v2812, %v2922
      %v3029 = vadd.f32 %v2813, %v2927
      %v3030 = vadd.f32 %v2814, %v2930
      %v3031 = vadd.f32 %v2815, %v2935
      %v3032 = vadd.f32 %v2816, %v2938
      %v3033 = vadd.f32 %v2817, %v2943
      %v3034 = vadd.f32 %v2818, %v2946
      %v3035 = vadd.f32 %v2819, %v2951
      %v3036 = vadd.f32 %v2820, %v2954
      %v3037 = vadd.f32 %v2821, %v2959
      %v3038 = vadd.f32 %v2822, %v2962
      %v3039 = vadd.f32 %v2823, %v2967
      %v3040 = vadd.f32 %v2824, %v2970
      %v3041 = vadd.f32 %v2825, %v2975
      %v3042 = vadd.f32 %v2826, %v2978
      %v3043 = vadd.f32 %v2827, %v2983
      %v3044 = vadd.f32 %v2828, %v2986
      %v3045 = vadd.f32 %v2829, %v2991
      %v3046 = vadd.f32 %v2830, %v2994
      %v3047 = vadd.f32 %v2831, %v2999
      %v3048 = vadd.f32 %v2832, %v3002
      %v3049 = vadd.f32 %v2833, %v3007
      %v3050 = vadd.f32 %v2834, %v3010
      %v3051 = vadd.f32 %v2835, %v3015
      %v3052 = vadd.f32 %v2836, %v3018
      %v3053 = vld [vmem:[%s219] sm:$0x1]
      %v3055 = vlaneseq
      %v3056 = vshrl.u32 %v3055, 7
      %v3057 = vsub.s32 0, %v3056
      %v3058 = vrot.slane %v3053, %v3057
      %v3060 = vadd.f32 %v3021, %v3058
      %v3061 = vadd.f32 %v3022, %v3058
      %v3062 = vadd.f32 %v3023, %v3058
      %v3063 = vadd.f32 %v3024, %v3058
      %v3064 = vadd.f32 %v3025, %v3058
      %v3065 = vadd.f32 %v3026, %v3058
      %v3066 = vadd.f32 %v3027, %v3058
      %v3067 = vadd.f32 %v3028, %v3058
      %v3068 = vadd.f32 %v3029, %v3058
      %v3069 = vadd.f32 %v3030, %v3058
      %v3070 = vadd.f32 %v3031, %v3058
      %v3071 = vadd.f32 %v3032, %v3058
      %v3072 = vadd.f32 %v3033, %v3058
      %v3073 = vadd.f32 %v3034, %v3058
      %v3074 = vadd.f32 %v3035, %v3058
      %v3075 = vadd.f32 %v3036, %v3058
      %v3076 = vadd.f32 %v3037, %v3058
      %v3077 = vadd.f32 %v3038, %v3058
      %v3078 = vadd.f32 %v3039, %v3058
      %v3079 = vadd.f32 %v3040, %v3058
      %v3080 = vadd.f32 %v3041, %v3058
      %v3081 = vadd.f32 %v3042, %v3058
      %v3082 = vadd.f32 %v3043, %v3058
      %v3083 = vadd.f32 %v3044, %v3058
      %v3084 = vadd.f32 %v3045, %v3058
      %v3085 = vadd.f32 %v3046, %v3058
      %v3086 = vadd.f32 %v3047, %v3058
      %v3087 = vadd.f32 %v3048, %v3058
      %v3088 = vadd.f32 %v3049, %v3058
      %v3089 = vadd.f32 %v3050, %v3058
      %v3090 = vadd.f32 %v3051, %v3058
      %v3091 = vadd.f32 %v3052, %v3058
      %vm3092 = vcmp.ge.f32.partialorder %v3060, 0.0
      %vm3093 = vcmp.ge.f32.partialorder %v3061, 0.0
      %vm3094 = vcmp.ge.f32.partialorder %v3062, 0.0
      %vm3095 = vcmp.ge.f32.partialorder %v3063, 0.0
      %vm3096 = vcmp.ge.f32.partialorder %v3064, 0.0
      %vm3097 = vcmp.ge.f32.partialorder %v3065, 0.0
      %vm3098 = vcmp.ge.f32.partialorder %v3066, 0.0
      %vm3099 = vcmp.ge.f32.partialorder %v3067, 0.0
      %vm3100 = vcmp.ge.f32.partialorder %v3068, 0.0
      %vm3101 = vcmp.ge.f32.partialorder %v3069, 0.0
      %vm3102 = vcmp.ge.f32.partialorder %v3070, 0.0
      %vm3103 = vcmp.ge.f32.partialorder %v3071, 0.0
      %vm3104 = vcmp.ge.f32.partialorder %v3072, 0.0
      %vm3105 = vcmp.ge.f32.partialorder %v3073, 0.0
      %vm3106 = vcmp.ge.f32.partialorder %v3074, 0.0
      %vm3107 = vcmp.ge.f32.partialorder %v3075, 0.0
      %vm3108 = vcmp.ge.f32.partialorder %v3076, 0.0
      %vm3109 = vcmp.ge.f32.partialorder %v3077, 0.0
      %vm3110 = vcmp.ge.f32.partialorder %v3078, 0.0
      %vm3111 = vcmp.ge.f32.partialorder %v3079, 0.0
      %vm3112 = vcmp.ge.f32.partialorder %v3080, 0.0
      %vm3113 = vcmp.ge.f32.partialorder %v3081, 0.0
      %vm3114 = vcmp.ge.f32.partialorder %v3082, 0.0
      %vm3115 = vcmp.ge.f32.partialorder %v3083, 0.0
      %vm3116 = vcmp.ge.f32.partialorder %v3084, 0.0
      %vm3117 = vcmp.ge.f32.partialorder %v3085, 0.0
      %vm3118 = vcmp.ge.f32.partialorder %v3086, 0.0
      %vm3119 = vcmp.ge.f32.partialorder %v3087, 0.0
      %vm3120 = vcmp.ge.f32.partialorder %v3088, 0.0
      %vm3121 = vcmp.ge.f32.partialorder %v3089, 0.0
      %vm3122 = vcmp.ge.f32.partialorder %v3090, 0.0
      %vm3123 = vcmp.ge.f32.partialorder %v3091, 0.0
      %v3124 = vmul.f32 %v3060, 0.2
      %v3125 = vmul.f32 %v3061, 0.2
      %v3126 = vmul.f32 %v3062, 0.2
      %v3127 = vmul.f32 %v3063, 0.2
      %v3128 = vmul.f32 %v3064, 0.2
      %v3129 = vmul.f32 %v3065, 0.2
      %v3130 = vmul.f32 %v3066, 0.2
      %v3131 = vmul.f32 %v3067, 0.2
      %v3132 = vmul.f32 %v3068, 0.2
      %v3133 = vmul.f32 %v3069, 0.2
      %v3134 = vmul.f32 %v3070, 0.2
      %v3135 = vmul.f32 %v3071, 0.2
      %v3136 = vmul.f32 %v3072, 0.2
      %v3137 = vmul.f32 %v3073, 0.2
      %v3138 = vmul.f32 %v3074, 0.2
      %v3139 = vmul.f32 %v3075, 0.2
      %v3140 = vmul.f32 %v3076, 0.2
      %v3141 = vmul.f32 %v3077, 0.2
      %v3142 = vmul.f32 %v3078, 0.2
      %v3143 = vmul.f32 %v3079, 0.2
      %v3144 = vmul.f32 %v3080, 0.2
      %v3145 = vmul.f32 %v3081, 0.2
      %v3146 = vmul.f32 %v3082, 0.2
      %v3147 = vmul.f32 %v3083, 0.2
      %v3148 = vmul.f32 %v3084, 0.2
      %v3149 = vmul.f32 %v3085, 0.2
      %v3150 = vmul.f32 %v3086, 0.2
      %v3151 = vmul.f32 %v3087, 0.2
      %v3152 = vmul.f32 %v3088, 0.2
      %v3153 = vmul.f32 %v3089, 0.2
      %v3154 = vmul.f32 %v3090, 0.2
      %v3155 = vmul.f32 %v3091, 0.2
      %v3156 = vsel %vm3092, %v3060, %v3124
      %v3157 = vsel %vm3093, %v3061, %v3125
      %v3158 = vsel %vm3094, %v3062, %v3126
      %v3159 = vsel %vm3095, %v3063, %v3127
      %v3160 = vsel %vm3096, %v3064, %v3128
      %v3161 = vsel %vm3097, %v3065, %v3129
      %v3162 = vsel %vm3098, %v3066, %v3130
      %v3163 = vsel %vm3099, %v3067, %v3131
      %v3164 = vsel %vm3100, %v3068, %v3132
      %v3165 = vsel %vm3101, %v3069, %v3133
      %v3166 = vsel %vm3102, %v3070, %v3134
      %v3167 = vsel %vm3103, %v3071, %v3135
      %v3168 = vsel %vm3104, %v3072, %v3136
      %v3169 = vsel %vm3105, %v3073, %v3137
      %v3170 = vsel %vm3106, %v3074, %v3138
      %v3171 = vsel %vm3107, %v3075, %v3139
      %v3172 = vsel %vm3108, %v3076, %v3140
      %v3173 = vsel %vm3109, %v3077, %v3141
      %v3174 = vsel %vm3110, %v3078, %v3142
      %v3175 = vsel %vm3111, %v3079, %v3143
      %v3176 = vsel %vm3112, %v3080, %v3144
      %v3177 = vsel %vm3113, %v3081, %v3145
      %v3178 = vsel %vm3114, %v3082, %v3146
      %v3179 = vsel %vm3115, %v3083, %v3147
      %v3180 = vsel %vm3116, %v3084, %v3148
      %v3181 = vsel %vm3117, %v3085, %v3149
      %v3182 = vsel %vm3118, %v3086, %v3150
      %v3183 = vsel %vm3119, %v3087, %v3151
      %v3184 = vsel %vm3120, %v3088, %v3152
      %v3185 = vsel %vm3121, %v3089, %v3153
      %v3186 = vsel %vm3122, %v3090, %v3154
      %v3187 = vsel %vm3123, %v3091, %v3155
      %v3188 = vpack.c.bf16 %v3157, %v3156
      %v3189 = vpack.c.bf16 %v3159, %v3158
      %v3190 = vpack.c.bf16 %v3161, %v3160
      %v3191 = vpack.c.bf16 %v3163, %v3162
      %v3192 = vpack.c.bf16 %v3165, %v3164
      %v3193 = vpack.c.bf16 %v3167, %v3166
      %v3194 = vpack.c.bf16 %v3169, %v3168
      %v3195 = vpack.c.bf16 %v3171, %v3170
      %v3196 = vpack.c.bf16 %v3173, %v3172
      %v3197 = vpack.c.bf16 %v3175, %v3174
      %v3198 = vpack.c.bf16 %v3177, %v3176
      %v3199 = vpack.c.bf16 %v3179, %v3178
      %v3200 = vpack.c.bf16 %v3181, %v3180
      %v3201 = vpack.c.bf16 %v3183, %v3182
      %v3202 = vpack.c.bf16 %v3185, %v3184
      %v3203 = vpack.c.bf16 %v3187, %v3186
      %v3220 = vunpack.c.l.b16 %v3188
      %v3221 = vunpack.c.h.b16 %v3188
      %v3222 = vunpack.c.l.b16 %v3189
      %v3223 = vunpack.c.h.b16 %v3189
      %v3224 = vunpack.c.l.b16 %v3190
      %v3225 = vunpack.c.h.b16 %v3190
      %v3226 = vunpack.c.l.b16 %v3191
      %v3227 = vunpack.c.h.b16 %v3191
      %v3228 = vunpack.c.l.b16 %v3192
      %v3229 = vunpack.c.h.b16 %v3192
      %v3230 = vunpack.c.l.b16 %v3193
      %v3231 = vunpack.c.h.b16 %v3193
      %v3232 = vunpack.c.l.b16 %v3194
      %v3233 = vunpack.c.h.b16 %v3194
      %v3234 = vunpack.c.l.b16 %v3195
      %v3235 = vunpack.c.h.b16 %v3195
      %v3236 = vunpack.c.l.b16 %v3196
      %v3237 = vunpack.c.h.b16 %v3196
      %v3238 = vunpack.c.l.b16 %v3197
      %v3239 = vunpack.c.h.b16 %v3197
      %v3240 = vunpack.c.l.b16 %v3198
      %v3241 = vunpack.c.h.b16 %v3198
      %v3242 = vunpack.c.l.b16 %v3199
      %v3243 = vunpack.c.h.b16 %v3199
      %v3244 = vunpack.c.l.b16 %v3200
      %v3245 = vunpack.c.h.b16 %v3200
      %v3246 = vunpack.c.l.b16 %v3201
      %v3247 = vunpack.c.h.b16 %v3201
      %v3248 = vunpack.c.l.b16 %v3202
      %v3249 = vunpack.c.h.b16 %v3202
      %v3250 = vunpack.c.l.b16 %v3203
      %v3251 = vunpack.c.h.b16 %v3203
      %v3252 = vpack.c.b16 %v3220, %v3220
      %v3253 = vpack.c.b16 %v3221, %v3221
      %v3254 = vpack.c.b16 %v3222, %v3222
      %v3255 = vpack.c.b16 %v3223, %v3223
      %v3256 = vpack.c.b16 %v3224, %v3224
      %v3257 = vpack.c.b16 %v3225, %v3225
      %v3258 = vpack.c.b16 %v3226, %v3226
      %v3259 = vpack.c.b16 %v3227, %v3227
      %v3260 = vpack.c.b16 %v3228, %v3228
      %v3261 = vpack.c.b16 %v3229, %v3229
      %v3262 = vpack.c.b16 %v3230, %v3230
      %v3263 = vpack.c.b16 %v3231, %v3231
      %v3264 = vpack.c.b16 %v3232, %v3232
      %v3265 = vpack.c.b16 %v3233, %v3233
      %v3266 = vpack.c.b16 %v3234, %v3234
      %v3267 = vpack.c.b16 %v3235, %v3235
      %v3268 = vpack.c.b16 %v3236, %v3236
      %v3269 = vpack.c.b16 %v3237, %v3237
      %v3270 = vpack.c.b16 %v3238, %v3238
      %v3271 = vpack.c.b16 %v3239, %v3239
      %v3272 = vpack.c.b16 %v3240, %v3240
      %v3273 = vpack.c.b16 %v3241, %v3241
      %v3274 = vpack.c.b16 %v3242, %v3242
      %v3275 = vpack.c.b16 %v3243, %v3243
      %v3276 = vpack.c.b16 %v3244, %v3244
      %v3277 = vpack.c.b16 %v3245, %v3245
      %v3278 = vpack.c.b16 %v3246, %v3246
      %v3279 = vpack.c.b16 %v3247, %v3247
      %v3280 = vpack.c.b16 %v3248, %v3248
      %v3281 = vpack.c.b16 %v3249, %v3249
      %v3282 = vpack.c.b16 %v3250, %v3250
      %v3283 = vpack.c.b16 %v3251, %v3251
      %vm3316 = vcmask 519168
      %3317 = vst.msk [vmem:[%s228] sm:$0xf] %vm3316, %v3252
      %3318 = vst.msk [vmem:[%s228 + $0x4] sm:$0xf] %vm3316, %v3253
      %3319 = vst.msk [vmem:[%s228 + $0x8] sm:$0xf] %vm3316, %v3254
      %3320 = vst.msk [vmem:[%s228 + $0xc] sm:$0xf] %vm3316, %v3255
      %3321 = vst.msk [vmem:[%s228 + $0x10] sm:$0xf] %vm3316, %v3256
      %3322 = vst.msk [vmem:[%s228 + $0x14] sm:$0xf] %vm3316, %v3257
      %3323 = vst.msk [vmem:[%s228 + $0x18] sm:$0xf] %vm3316, %v3258
      %3324 = vst.msk [vmem:[%s228 + $0x1c] sm:$0xf] %vm3316, %v3259
      %3325 = vst.msk [vmem:[%s228 + $0x20] sm:$0xf] %vm3316, %v3260
      %3326 = vst.msk [vmem:[%s228 + $0x24] sm:$0xf] %vm3316, %v3261
      %3327 = vst.msk [vmem:[%s228 + $0x28] sm:$0xf] %vm3316, %v3262
      %3328 = vst.msk [vmem:[%s228 + $0x2c] sm:$0xf] %vm3316, %v3263
      %3329 = vst.msk [vmem:[%s228 + $0x30] sm:$0xf] %vm3316, %v3264
      %3330 = vst.msk [vmem:[%s228 + $0x34] sm:$0xf] %vm3316, %v3265
      %3331 = vst.msk [vmem:[%s228 + $0x38] sm:$0xf] %vm3316, %v3266
      %3332 = vst.msk [vmem:[%s228 + $0x3c] sm:$0xf] %vm3316, %v3267
      %3333 = vst.msk [vmem:[%s228 + $0x40] sm:$0xf] %vm3316, %v3268
      %3334 = vst.msk [vmem:[%s228 + $0x44] sm:$0xf] %vm3316, %v3269
      %3335 = vst.msk [vmem:[%s228 + $0x48] sm:$0xf] %vm3316, %v3270
      %3336 = vst.msk [vmem:[%s228 + $0x4c] sm:$0xf] %vm3316, %v3271
      %3337 = vst.msk [vmem:[%s228 + $0x50] sm:$0xf] %vm3316, %v3272
      %3338 = vst.msk [vmem:[%s228 + $0x54] sm:$0xf] %vm3316, %v3273
      %3339 = vst.msk [vmem:[%s228 + $0x58] sm:$0xf] %vm3316, %v3274
      %3340 = vst.msk [vmem:[%s228 + $0x5c] sm:$0xf] %vm3316, %v3275
      %3341 = vst.msk [vmem:[%s228 + $0x60] sm:$0xf] %vm3316, %v3276
      %3342 = vst.msk [vmem:[%s228 + $0x64] sm:$0xf] %vm3316, %v3277
      %3343 = vst.msk [vmem:[%s228 + $0x68] sm:$0xf] %vm3316, %v3278
      %3344 = vst.msk [vmem:[%s228 + $0x6c] sm:$0xf] %vm3316, %v3279
      %3345 = vst.msk [vmem:[%s228 + $0x70] sm:$0xf] %vm3316, %v3280
      %3346 = vst.msk [vmem:[%s228 + $0x74] sm:$0xf] %vm3316, %v3281
      %3347 = vst.msk [vmem:[%s228 + $0x78] sm:$0xf] %vm3316, %v3282
      %3348 = vst.msk [vmem:[%s228 + $0x7c] sm:$0xf] %vm3316, %v3283
      %s3349 = scalar_lea.vmem %s211, 216
      %v3350 = vld [vmem:[%s3349] sm:$0xf]
      %v3351 = vld [vmem:[%s3349 + $0x4] sm:$0xf]
      %v3352 = vld [vmem:[%s3349 + $0x8] sm:$0x1]
      %v3353 = vld [vmem:[%s3349 + $0xc] sm:$0xf]
      %v3354 = vld [vmem:[%s3349 + $0x10] sm:$0xf]
      %v3355 = vld [vmem:[%s3349 + $0x14] sm:$0x1]
      %v3356 = vld [vmem:[%s3349 + $0x18] sm:$0xf]
      %v3357 = vld [vmem:[%s3349 + $0x1c] sm:$0xf]
      %v3358 = vld [vmem:[%s3349 + $0x20] sm:$0x1]
      %v3359 = vld [vmem:[%s3349 + $0x24] sm:$0xf]
      %v3360 = vld [vmem:[%s3349 + $0x28] sm:$0xf]
      %v3361 = vld [vmem:[%s3349 + $0x2c] sm:$0x1]
      %v3362 = vld [vmem:[%s3349 + $0x30] sm:$0xf]
      %v3363 = vld [vmem:[%s3349 + $0x34] sm:$0xf]
      %v3364 = vld [vmem:[%s3349 + $0x38] sm:$0x1]
      %v3365 = vld [vmem:[%s3349 + $0x3c] sm:$0xf]
      %v3366 = vld [vmem:[%s3349 + $0x40] sm:$0xf]
      %v3367 = vld [vmem:[%s3349 + $0x44] sm:$0x1]
      %v3368 = vld [vmem:[%s3349 + $0x48] sm:$0xf]
      %v3369 = vld [vmem:[%s3349 + $0x4c] sm:$0xf]
      %v3370 = vld [vmem:[%s3349 + $0x50] sm:$0x1]
      %v3371 = vld [vmem:[%s3349 + $0x54] sm:$0xf]
      %v3372 = vld [vmem:[%s3349 + $0x58] sm:$0xf]
      %v3373 = vld [vmem:[%s3349 + $0x5c] sm:$0x1]
      %v3374 = vld [vmem:[%s3349 + $0x60] sm:$0xf]
      %v3375 = vld [vmem:[%s3349 + $0x64] sm:$0xf]
      %v3376 = vld [vmem:[%s3349 + $0x68] sm:$0x1]
      %v3377 = vld [vmem:[%s3349 + $0x6c] sm:$0xf]
      %v3378 = vld [vmem:[%s3349 + $0x70] sm:$0xf]
      %v3379 = vld [vmem:[%s3349 + $0x74] sm:$0x1]
      %v3380 = vld [vmem:[%s3349 + $0x78] sm:$0xf]
      %v3381 = vld [vmem:[%s3349 + $0x7c] sm:$0xf]
      %v3382 = vld [vmem:[%s3349 + $0x80] sm:$0x1]
      %v3383 = vld [vmem:[%s3349 + $0x84] sm:$0xf]
      %v3384 = vld [vmem:[%s3349 + $0x88] sm:$0xf]
      %v3385 = vld [vmem:[%s3349 + $0x8c] sm:$0x1]
      %v3386 = vld [vmem:[%s3349 + $0x90] sm:$0xf]
      %v3387 = vld [vmem:[%s3349 + $0x94] sm:$0xf]
      %v3388 = vld [vmem:[%s3349 + $0x98] sm:$0x1]
      %v3389 = vld [vmem:[%s3349 + $0x9c] sm:$0xf]
      %v3390 = vld [vmem:[%s3349 + $0xa0] sm:$0xf]
      %v3391 = vld [vmem:[%s3349 + $0xa4] sm:$0x1]
      %v3392 = vld [vmem:[%s3349 + $0xa8] sm:$0xf]
      %v3393 = vld [vmem:[%s3349 + $0xac] sm:$0xf]
      %v3394 = vld [vmem:[%s3349 + $0xb0] sm:$0x1]
      %v3395 = vld [vmem:[%s3349 + $0xb4] sm:$0xf]
      %v3396 = vld [vmem:[%s3349 + $0xb8] sm:$0xf]
      %v3397 = vld [vmem:[%s3349 + $0xbc] sm:$0x1]
      %v3398 = vld [vmem:[%s3349 + $0xc0] sm:$0xf]
      %v3399 = vld [vmem:[%s3349 + $0xc4] sm:$0xf]
      %v3400 = vld [vmem:[%s3349 + $0xc8] sm:$0x1]
      %v3401 = vld [vmem:[%s3349 + $0xcc] sm:$0xf]
      %v3402 = vld [vmem:[%s3349 + $0xd0] sm:$0xf]
      %v3403 = vld [vmem:[%s3349 + $0xd4] sm:$0x1]
      %v3404 = vld [vmem:[%s216] sm:$0xf]
      %v3405 = vld [vmem:[%s216 + $0x4] sm:$0xf]
      %v3406 = vld [vmem:[%s216 + $0x8] sm:$0xf]
      %v3407 = vld [vmem:[%s216 + $0xc] sm:$0xf]
      %v3408 = vld [vmem:[%s289] sm:$0xf]
      %v3409 = vld [vmem:[%s289 + $0x4] sm:$0xf]
      %v3410 = vld [vmem:[%s289 + $0x8] sm:$0xf]
      %v3411 = vld [vmem:[%s289 + $0xc] sm:$0xf]
      %v3444 = vunpack.c.l.b16 %v3353
      %v3445 = vunpack.c.l.b16 %v3354
      %v3446 = vunpack.c.l.b16 %v3356
      %v3447 = vunpack.c.l.b16 %v3357
      %v3448 = vunpack.c.l.b16 %v3359
      %v3449 = vunpack.c.l.b16 %v3360
      %v3450 = vunpack.c.l.b16 %v3362
      %v3451 = vunpack.c.l.b16 %v3363
      %v3452 = vunpack.c.l.b16 %v3365
      %v3453 = vunpack.c.l.b16 %v3366
      %v3454 = vunpack.c.l.b16 %v3368
      %v3455 = vunpack.c.l.b16 %v3369
      %v3456 = vunpack.c.l.b16 %v3371
      %v3457 = vunpack.c.l.b16 %v3372
      %v3458 = vunpack.c.l.b16 %v3374
      %v3459 = vunpack.c.l.b16 %v3375
      %v3460 = vunpack.c.l.b16 %v3377
      %v3461 = vunpack.c.l.b16 %v3378
      %v3462 = vunpack.c.l.b16 %v3380
      %v3463 = vunpack.c.l.b16 %v3381
      %v3464 = vunpack.c.l.b16 %v3383
      %v3465 = vunpack.c.l.b16 %v3384
      %v3466 = vunpack.c.l.b16 %v3386
      %v3467 = vunpack.c.l.b16 %v3387
      %v3468 = vunpack.c.l.b16 %v3389
      %v3469 = vunpack.c.l.b16 %v3390
      %v3470 = vunpack.c.l.b16 %v3392
      %v3471 = vunpack.c.l.b16 %v3393
      %v3472 = vunpack.c.l.b16 %v3395
      %v3473 = vunpack.c.l.b16 %v3396
      %v3474 = vunpack.c.l.b16 %v3398
      %v3475 = vunpack.c.l.b16 %v3399
      %v3476 = vpack.c.b16 %v3445, %v3444
      %v3477 = vpack.c.b16 %v3447, %v3446
      %v3478 = vpack.c.b16 %v3449, %v3448
      %v3479 = vpack.c.b16 %v3451, %v3450
      %v3480 = vpack.c.b16 %v3453, %v3452
      %v3481 = vpack.c.b16 %v3455, %v3454
      %v3482 = vpack.c.b16 %v3457, %v3456
      %v3483 = vpack.c.b16 %v3459, %v3458
      %v3484 = vpack.c.b16 %v3461, %v3460
      %v3485 = vpack.c.b16 %v3463, %v3462
      %v3486 = vpack.c.b16 %v3465, %v3464
      %v3487 = vpack.c.b16 %v3467, %v3466
      %v3488 = vpack.c.b16 %v3469, %v3468
      %v3489 = vpack.c.b16 %v3471, %v3470
      %v3490 = vpack.c.b16 %v3473, %v3472
      %v3491 = vpack.c.b16 %v3475, %v3474
      %v3496 = vunpack.c.l.b16 %v3408
      %v3497 = vunpack.c.l.b16 %v3409
      %v3498 = vunpack.c.l.b16 %v3410
      %v3499 = vunpack.c.l.b16 %v3411
      %v3500 = vpack.c.b16 %v3497, %v3496
      %v3501 = vpack.c.b16 %v3499, %v3498
      %v3505 = vsel %vm386, %v3476, 0
      %v3508 = vsel %vm386, %v3477, 0
      %v3511 = vsel %vm386, %v3478, 0
      %v3514 = vsel %vm386, %v3479, 0
      %v3517 = vsel %vm386, %v3480, 0
      %v3520 = vsel %vm386, %v3481, 0
      %v3523 = vsel %vm386, %v3482, 0
      %v3526 = vsel %vm386, %v3483, 0
      %v3529 = vsel %vm386, %v3484, 0
      %v3532 = vsel %vm386, %v3485, 0
      %v3535 = vsel %vm386, %v3486, 0
      %v3538 = vsel %vm386, %v3487, 0
      %v3541 = vsel %vm386, %v3488, 0
      %v3544 = vsel %vm386, %v3489, 0
      %v3547 = vsel %vm386, %v3490, 0
      %v3550 = vsel %vm386, %v3491, 0
      %3552 = vmatprep.subr.bf16.mxu0 0
      %3553 = vmatpush1.bf16.msra.mxu0 %v3500
      %3554 = vmatprep.subr.bf16.mxu0 0
      %3555 = vmatpush1.bf16.msra.mxu0 %v3501
      %3556 = vmatprep.subr.bf16.mxu0 0
      %3557 = vmatpush1.bf16.msra.mxu0 0
      %3558 = vmatprep.subr.bf16.mxu0 0
      %3559 = vmatpush1.bf16.msra.mxu0 0
      %3560 = vmatprep.subr.bf16.mxu0 0
      %3561 = vmatpush1.bf16.msra.mxu0 0
      %3562 = vmatprep.subr.bf16.mxu0 0
      %3563 = vmatpush1.bf16.msra.mxu0 0
      %3564 = vmatprep.subr.bf16.mxu0 0
      %3565 = vmatpush1.bf16.msra.mxu0 0
      %3566 = vmatprep.subr.bf16.mxu0 0
      %3567 = vmatpush1.bf16.msra.mxu0 0
      %3568 = vmatprep.subr.bf16.mxu0 0
      %3569 = vmatpush1.bf16.msra.mxu0 0
      %3570 = vmatprep.subr.bf16.mxu0 0
      %3571 = vmatpush1.bf16.msra.mxu0 0
      %3572 = vmatprep.subr.bf16.mxu0 0
      %3573 = vmatpush1.bf16.msra.mxu0 0
      %3574 = vmatprep.subr.bf16.mxu0 0
      %3575 = vmatpush1.bf16.msra.mxu0 0
      %3576 = vmatprep.subr.bf16.mxu0 0
      %3577 = vmatpush1.bf16.msra.mxu0 0
      %3578 = vmatprep.subr.bf16.mxu0 0
      %3579 = vmatpush1.bf16.msra.mxu0 0
      %3580 = vmatprep.subr.bf16.mxu0 0
      %3581 = vmatpush1.bf16.msra.mxu0 0
      %3582 = vmatprep.subr.bf16.mxu0 0
      %3583 = vmatpush1.bf16.msra.mxu0 0
      %3584 = vmatprep.mubr.bf16.mxu0 0
      %3585 = vmatmul.mubr.bf16.gmra.mrb[0].mxu0 %v3505
      %v3586 = vpop.f32.mrb[0].mxu0
      %v3587 = vadd.f32 0.0, %v3586
      %v3588 = vpop.f32.mrb[0].mxu0
      %v3589 = vpop.f32.mrb[0].mxu0
      %v3590 = vadd.f32 0.0, %v3589
      %v3591 = vpop.f32.mrb[0].mxu0
      %3592 = vmatprep.mubr.bf16.mxu0 0
      %3593 = vmatmul.mubr.bf16.gmra.mrb[0].mxu0 %v3508
      %v3594 = vpop.f32.mrb[0].mxu0
      %v3595 = vadd.f32 0.0, %v3594
      %v3596 = vpop.f32.mrb[0].mxu0
      %v3597 = vpop.f32.mrb[0].mxu0
      %v3598 = vadd.f32 0.0, %v3597
      %v3599 = vpop.f32.mrb[0].mxu0
      %3600 = vmatprep.mubr.bf16.mxu0 0
      %3601 = vmatmul.mubr.bf16.gmra.mrb[0].mxu0 %v3511
      %v3602 = vpop.f32.mrb[0].mxu0
      %v3603 = vadd.f32 0.0, %v3602
      %v3604 = vpop.f32.mrb[0].mxu0
      %v3605 = vpop.f32.mrb[0].mxu0
      %v3606 = vadd.f32 0.0, %v3605
      %v3607 = vpop.f32.mrb[0].mxu0
      %3608 = vmatprep.mubr.bf16.mxu0 0
      %3609 = vmatmul.mubr.bf16.gmra.mrb[0].mxu0 %v3514
      %v3610 = vpop.f32.mrb[0].mxu0
      %v3611 = vadd.f32 0.0, %v3610
      %v3612 = vpop.f32.mrb[0].mxu0
      %v3613 = vpop.f32.mrb[0].mxu0
      %v3614 = vadd.f32 0.0, %v3613
      %v3615 = vpop.f32.mrb[0].mxu0
      %3616 = vmatprep.mubr.bf16.mxu0 0
      %3617 = vmatmul.mubr.bf16.gmra.mrb[0].mxu0 %v3517
      %v3618 = vpop.f32.mrb[0].mxu0
      %v3619 = vadd.f32 0.0, %v3618
      %v3620 = vpop.f32.mrb[0].mxu0
      %v3621 = vpop.f32.mrb[0].mxu0
      %v3622 = vadd.f32 0.0, %v3621
      %v3623 = vpop.f32.mrb[0].mxu0
      %3624 = vmatprep.mubr.bf16.mxu0 0
      %3625 = vmatmul.mubr.bf16.gmra.mrb[0].mxu0 %v3520
      %v3626 = vpop.f32.mrb[0].mxu0
      %v3627 = vadd.f32 0.0, %v3626
      %v3628 = vpop.f32.mrb[0].mxu0
      %v3629 = vpop.f32.mrb[0].mxu0
      %v3630 = vadd.f32 0.0, %v3629
      %v3631 = vpop.f32.mrb[0].mxu0
      %3632 = vmatprep.mubr.bf16.mxu0 0
      %3633 = vmatmul.mubr.bf16.gmra.mrb[0].mxu0 %v3523
      %v3634 = vpop.f32.mrb[0].mxu0
      %v3635 = vadd.f32 0.0, %v3634
      %v3636 = vpop.f32.mrb[0].mxu0
      %v3637 = vpop.f32.mrb[0].mxu0
      %v3638 = vadd.f32 0.0, %v3637
      %v3639 = vpop.f32.mrb[0].mxu0
      %3640 = vmatprep.mubr.bf16.mxu0 0
      %3641 = vmatmul.mubr.bf16.gmra.mrb[0].mxu0 %v3526
      %v3642 = vpop.f32.mrb[0].mxu0
      %v3643 = vadd.f32 0.0, %v3642
      %v3644 = vpop.f32.mrb[0].mxu0
      %v3645 = vpop.f32.mrb[0].mxu0
      %v3646 = vadd.f32 0.0, %v3645
      %v3647 = vpop.f32.mrb[0].mxu0
      %3648 = vmatprep.mubr.bf16.mxu0 0
      %3649 = vmatmul.mubr.bf16.gmra.mrb[0].mxu0 %v3529
      %v3650 = vpop.f32.mrb[0].mxu0
      %v3651 = vadd.f32 0.0, %v3650
      %v3652 = vpop.f32.mrb[0].mxu0
      %v3653 = vpop.f32.mrb[0].mxu0
      %v3654 = vadd.f32 0.0, %v3653
      %v3655 = vpop.f32.mrb[0].mxu0
      %3656 = vmatprep.mubr.bf16.mxu0 0
      %3657 = vmatmul.mubr.bf16.gmra.mrb[0].mxu0 %v3532
      %v3658 = vpop.f32.mrb[0].mxu0
      %v3659 = vadd.f32 0.0, %v3658
      %v3660 = vpop.f32.mrb[0].mxu0
      %v3661 = vpop.f32.mrb[0].mxu0
      %v3662 = vadd.f32 0.0, %v3661
      %v3663 = vpop.f32.mrb[0].mxu0
      %3664 = vmatprep.mubr.bf16.mxu0 0
      %3665 = vmatmul.mubr.bf16.gmra.mrb[0].mxu0 %v3535
      %v3666 = vpop.f32.mrb[0].mxu0
      %v3667 = vadd.f32 0.0, %v3666
      %v3668 = vpop.f32.mrb[0].mxu0
      %v3669 = vpop.f32.mrb[0].mxu0
      %v3670 = vadd.f32 0.0, %v3669
      %v3671 = vpop.f32.mrb[0].mxu0
      %3672 = vmatprep.mubr.bf16.mxu0 0
      %3673 = vmatmul.mubr.bf16.gmra.mrb[0].mxu0 %v3538
      %v3674 = vpop.f32.mrb[0].mxu0
      %v3675 = vadd.f32 0.0, %v3674
      %v3676 = vpop.f32.mrb[0].mxu0
      %v3677 = vpop.f32.mrb[0].mxu0
      %v3678 = vadd.f32 0.0, %v3677
      %v3679 = vpop.f32.mrb[0].mxu0
      %3680 = vmatprep.mubr.bf16.mxu0 0
      %3681 = vmatmul.mubr.bf16.gmra.mrb[0].mxu0 %v3541
      %v3682 = vpop.f32.mrb[0].mxu0
      %v3683 = vadd.f32 0.0, %v3682
      %v3684 = vpop.f32.mrb[0].mxu0
      %v3685 = vpop.f32.mrb[0].mxu0
      %v3686 = vadd.f32 0.0, %v3685
      %v3687 = vpop.f32.mrb[0].mxu0
      %3688 = vmatprep.mubr.bf16.mxu0 0
      %3689 = vmatmul.mubr.bf16.gmra.mrb[0].mxu0 %v3544
      %v3690 = vpop.f32.mrb[0].mxu0
      %v3691 = vadd.f32 0.0, %v3690
      %v3692 = vpop.f32.mrb[0].mxu0
      %v3693 = vpop.f32.mrb[0].mxu0
      %v3694 = vadd.f32 0.0, %v3693
      %v3695 = vpop.f32.mrb[0].mxu0
      %3696 = vmatprep.mubr.bf16.mxu0 0
      %3697 = vmatmul.mubr.bf16.gmra.mrb[0].mxu0 %v3547
      %v3698 = vpop.f32.mrb[0].mxu0
      %v3699 = vadd.f32 0.0, %v3698
      %v3700 = vpop.f32.mrb[0].mxu0
      %v3701 = vpop.f32.mrb[0].mxu0
      %v3702 = vadd.f32 0.0, %v3701
      %v3703 = vpop.f32.mrb[0].mxu0
      %3704 = vmatprep.mubr.bf16.mxu0 0
      %3705 = vmatmul.mubr.bf16.gmra.mrb[0].mxu0 %v3550
      %v3706 = vpop.f32.mrb[0].mxu0
      %v3707 = vadd.f32 0.0, %v3706
      %v3708 = vpop.f32.mrb[0].mxu0
      %v3709 = vpop.f32.mrb[0].mxu0
      %v3710 = vadd.f32 0.0, %v3709
      %v3711 = vpop.f32.mrb[0].mxu0
      %3712 = vdwg.mxu0
      %v3715 = vunpack.c.l.b16 %v3350
      %v3716 = vunpack.c.l.b16 %v3351
      %v3717 = vpack.c.b16 %v3716, %v3715
      %v3722 = vunpack.c.l.b16 %v3404
      %v3723 = vunpack.c.l.b16 %v3405
      %v3724 = vunpack.c.l.b16 %v3406
      %v3725 = vunpack.c.l.b16 %v3407
      %v3726 = vpack.c.b16 %v3723, %v3722
      %v3727 = vpack.c.b16 %v3725, %v3724
      %v3731 = vsel %vm386, %v3717, 0
      %3733 = vmatprep.subr.bf16.mxu0 0
      %3734 = vmatpush1.bf16.msra.mxu0 %v3726
      %3735 = vmatprep.subr.bf16.mxu0 0
      %3736 = vmatpush1.bf16.msra.mxu0 %v3727
      %3737 = vmatprep.subr.bf16.mxu0 0
      %3738 = vmatpush1.bf16.msra.mxu0 0
      %3739 = vmatprep.subr.bf16.mxu0 0
      %3740 = vmatpush1.bf16.msra.mxu0 0
      %3741 = vmatprep.subr.bf16.mxu0 0
      %3742 = vmatpush1.bf16.msra.mxu0 0
      %3743 = vmatprep.subr.bf16.mxu0 0
      %3744 = vmatpush1.bf16.msra.mxu0 0
      %3745 = vmatprep.subr.bf16.mxu0 0
      %3746 = vmatpush1.bf16.msra.mxu0 0
      %3747 = vmatprep.subr.bf16.mxu0 0
      %3748 = vmatpush1.bf16.msra.mxu0 0
      %3749 = vmatprep.subr.bf16.mxu0 0
      %3750 = vmatpush1.bf16.msra.mxu0 0
      %3751 = vmatprep.subr.bf16.mxu0 0
      %3752 = vmatpush1.bf16.msra.mxu0 0
      %3753 = vmatprep.subr.bf16.mxu0 0
      %3754 = vmatpush1.bf16.msra.mxu0 0
      %3755 = vmatprep.subr.bf16.mxu0 0
      %3756 = vmatpush1.bf16.msra.mxu0 0
      %3757 = vmatprep.subr.bf16.mxu0 0
      %3758 = vmatpush1.bf16.msra.mxu0 0
      %3759 = vmatprep.subr.bf16.mxu0 0
      %3760 = vmatpush1.bf16.msra.mxu0 0
      %3761 = vmatprep.subr.bf16.mxu0 0
      %3762 = vmatpush1.bf16.msra.mxu0 0
      %3763 = vmatprep.subr.bf16.mxu0 0
      %3764 = vmatpush1.bf16.msra.mxu0 0
      %3765 = vmatprep.mubr.bf16.mxu0 0
      %3766 = vmatmul.mubr.bf16.gmra.mrb[0].mxu0 %v3731
      %v3767 = vpop.f32.mrb[0].mxu0
      %v3768 = vadd.f32 %v3587, %v3767
      %v3769 = vpop.f32.mrb[0].mxu0
      %v3770 = vpop.f32.mrb[0].mxu0
      %v3771 = vadd.f32 %v3590, %v3770
      %v3772 = vpop.f32.mrb[0].mxu0
      %3773 = vmatprep.mubr.bf16.mxu0 0
      %3774 = vmatmul.mubr.bf16.gmra.mrb[0].mxu0 %v3505
      %v3775 = vpop.f32.mrb[0].mxu0
      %v3776 = vadd.f32 %v3595, %v3775
      %v3777 = vpop.f32.mrb[0].mxu0
      %v3778 = vpop.f32.mrb[0].mxu0
      %v3779 = vadd.f32 %v3598, %v3778
      %v3780 = vpop.f32.mrb[0].mxu0
      %3781 = vmatprep.mubr.bf16.mxu0 0
      %3782 = vmatmul.mubr.bf16.gmra.mrb[0].mxu0 %v3508
      %v3783 = vpop.f32.mrb[0].mxu0
      %v3784 = vadd.f32 %v3603, %v3783
      %v3785 = vpop.f32.mrb[0].mxu0
      %v3786 = vpop.f32.mrb[0].mxu0
      %v3787 = vadd.f32 %v3606, %v3786
      %v3788 = vpop.f32.mrb[0].mxu0
      %3789 = vmatprep.mubr.bf16.mxu0 0
      %3790 = vmatmul.mubr.bf16.gmra.mrb[0].mxu0 %v3511
      %v3791 = vpop.f32.mrb[0].mxu0
      %v3792 = vadd.f32 %v3611, %v3791
      %v3793 = vpop.f32.mrb[0].mxu0
      %v3794 = vpop.f32.mrb[0].mxu0
      %v3795 = vadd.f32 %v3614, %v3794
      %v3796 = vpop.f32.mrb[0].mxu0
      %3797 = vmatprep.mubr.bf16.mxu0 0
      %3798 = vmatmul.mubr.bf16.gmra.mrb[0].mxu0 %v3514
      %v3799 = vpop.f32.mrb[0].mxu0
      %v3800 = vadd.f32 %v3619, %v3799
      %v3801 = vpop.f32.mrb[0].mxu0
      %v3802 = vpop.f32.mrb[0].mxu0
      %v3803 = vadd.f32 %v3622, %v3802
      %v3804 = vpop.f32.mrb[0].mxu0
      %3805 = vmatprep.mubr.bf16.mxu0 0
      %3806 = vmatmul.mubr.bf16.gmra.mrb[0].mxu0 %v3517
      %v3807 = vpop.f32.mrb[0].mxu0
      %v3808 = vadd.f32 %v3627, %v3807
      %v3809 = vpop.f32.mrb[0].mxu0
      %v3810 = vpop.f32.mrb[0].mxu0
      %v3811 = vadd.f32 %v3630, %v3810
      %v3812 = vpop.f32.mrb[0].mxu0
      %3813 = vmatprep.mubr.bf16.mxu0 0
      %3814 = vmatmul.mubr.bf16.gmra.mrb[0].mxu0 %v3520
      %v3815 = vpop.f32.mrb[0].mxu0
      %v3816 = vadd.f32 %v3635, %v3815
      %v3817 = vpop.f32.mrb[0].mxu0
      %v3818 = vpop.f32.mrb[0].mxu0
      %v3819 = vadd.f32 %v3638, %v3818
      %v3820 = vpop.f32.mrb[0].mxu0
      %3821 = vmatprep.mubr.bf16.mxu0 0
      %3822 = vmatmul.mubr.bf16.gmra.mrb[0].mxu0 %v3523
      %v3823 = vpop.f32.mrb[0].mxu0
      %v3824 = vadd.f32 %v3643, %v3823
      %v3825 = vpop.f32.mrb[0].mxu0
      %v3826 = vpop.f32.mrb[0].mxu0
      %v3827 = vadd.f32 %v3646, %v3826
      %v3828 = vpop.f32.mrb[0].mxu0
      %3829 = vmatprep.mubr.bf16.mxu0 0
      %3830 = vmatmul.mubr.bf16.gmra.mrb[0].mxu0 %v3526
      %v3831 = vpop.f32.mrb[0].mxu0
      %v3832 = vadd.f32 %v3651, %v3831
      %v3833 = vpop.f32.mrb[0].mxu0
      %v3834 = vpop.f32.mrb[0].mxu0
      %v3835 = vadd.f32 %v3654, %v3834
      %v3836 = vpop.f32.mrb[0].mxu0
      %3837 = vmatprep.mubr.bf16.mxu0 0
      %3838 = vmatmul.mubr.bf16.gmra.mrb[0].mxu0 %v3529
      %v3839 = vpop.f32.mrb[0].mxu0
      %v3840 = vadd.f32 %v3659, %v3839
      %v3841 = vpop.f32.mrb[0].mxu0
      %v3842 = vpop.f32.mrb[0].mxu0
      %v3843 = vadd.f32 %v3662, %v3842
      %v3844 = vpop.f32.mrb[0].mxu0
      %3845 = vmatprep.mubr.bf16.mxu0 0
      %3846 = vmatmul.mubr.bf16.gmra.mrb[0].mxu0 %v3532
      %v3847 = vpop.f32.mrb[0].mxu0
      %v3848 = vadd.f32 %v3667, %v3847
      %v3849 = vpop.f32.mrb[0].mxu0
      %v3850 = vpop.f32.mrb[0].mxu0
      %v3851 = vadd.f32 %v3670, %v3850
      %v3852 = vpop.f32.mrb[0].mxu0
      %3853 = vmatprep.mubr.bf16.mxu0 0
      %3854 = vmatmul.mubr.bf16.gmra.mrb[0].mxu0 %v3535
      %v3855 = vpop.f32.mrb[0].mxu0
      %v3856 = vadd.f32 %v3675, %v3855
      %v3857 = vpop.f32.mrb[0].mxu0
      %v3858 = vpop.f32.mrb[0].mxu0
      %v3859 = vadd.f32 %v3678, %v3858
      %v3860 = vpop.f32.mrb[0].mxu0
      %3861 = vmatprep.mubr.bf16.mxu0 0
      %3862 = vmatmul.mubr.bf16.gmra.mrb[0].mxu0 %v3538
      %v3863 = vpop.f32.mrb[0].mxu0
      %v3864 = vadd.f32 %v3683, %v3863
      %v3865 = vpop.f32.mrb[0].mxu0
      %v3866 = vpop.f32.mrb[0].mxu0
      %v3867 = vadd.f32 %v3686, %v3866
      %v3868 = vpop.f32.mrb[0].mxu0
      %3869 = vmatprep.mubr.bf16.mxu0 0
      %3870 = vmatmul.mubr.bf16.gmra.mrb[0].mxu0 %v3541
      %v3871 = vpop.f32.mrb[0].mxu0
      %v3872 = vadd.f32 %v3691, %v3871
      %v3873 = vpop.f32.mrb[0].mxu0
      %v3874 = vpop.f32.mrb[0].mxu0
      %v3875 = vadd.f32 %v3694, %v3874
      %v3876 = vpop.f32.mrb[0].mxu0
      %3877 = vmatprep.mubr.bf16.mxu0 0
      %3878 = vmatmul.mubr.bf16.gmra.mrb[0].mxu0 %v3544
      %v3879 = vpop.f32.mrb[0].mxu0
      %v3880 = vadd.f32 %v3699, %v3879
      %v3881 = vpop.f32.mrb[0].mxu0
      %v3882 = vpop.f32.mrb[0].mxu0
      %v3883 = vadd.f32 %v3702, %v3882
      %v3884 = vpop.f32.mrb[0].mxu0
      %3885 = vmatprep.mubr.bf16.mxu0 0
      %3886 = vmatmul.mubr.bf16.gmra.mrb[0].mxu0 %v3547
      %v3887 = vpop.f32.mrb[0].mxu0
      %v3888 = vadd.f32 %v3707, %v3887
      %v3889 = vpop.f32.mrb[0].mxu0
      %v3890 = vpop.f32.mrb[0].mxu0
      %v3891 = vadd.f32 %v3710, %v3890
      %v3892 = vpop.f32.mrb[0].mxu0
      %3893 = vdwg.mxu0
      %v3894 = vld [vmem:[%s777] sm:$0xf]
      %v3895 = vld [vmem:[%s777 + $0x4] sm:$0xf]
      %v3896 = vld [vmem:[%s777 + $0x8] sm:$0xf]
      %v3897 = vld [vmem:[%s777 + $0xc] sm:$0xf]
      %v3900 = vunpack.c.l.b16 %v3401
      %v3901 = vunpack.c.l.b16 %v3402
      %v3902 = vpack.c.b16 %v3901, %v3900
      %v3907 = vunpack.c.l.b16 %v3894
      %v3908 = vunpack.c.l.b16 %v3895
      %v3909 = vunpack.c.l.b16 %v3896
      %v3910 = vunpack.c.l.b16 %v3897
      %v3911 = vpack.c.b16 %v3908, %v3907
      %v3912 = vpack.c.b16 %v3910, %v3909
      %v3916 = vsel %vm386, %v3902, 0
      %3918 = vmatprep.subr.bf16.mxu0 0
      %3919 = vmatpush1.bf16.msra.mxu0 %v3911
      %3920 = vmatprep.subr.bf16.mxu0 0
      %3921 = vmatpush1.bf16.msra.mxu0 %v3912
      %3922 = vmatprep.subr.bf16.mxu0 0
      %3923 = vmatpush1.bf16.msra.mxu0 0
      %3924 = vmatprep.subr.bf16.mxu0 0
      %3925 = vmatpush1.bf16.msra.mxu0 0
      %3926 = vmatprep.subr.bf16.mxu0 0
      %3927 = vmatpush1.bf16.msra.mxu0 0
      %3928 = vmatprep.subr.bf16.mxu0 0
      %3929 = vmatpush1.bf16.msra.mxu0 0
      %3930 = vmatprep.subr.bf16.mxu0 0
      %3931 = vmatpush1.bf16.msra.mxu0 0
      %3932 = vmatprep.subr.bf16.mxu0 0
      %3933 = vmatpush1.bf16.msra.mxu0 0
      %3934 = vmatprep.subr.bf16.mxu0 0
      %3935 = vmatpush1.bf16.msra.mxu0 0
      %3936 = vmatprep.subr.bf16.mxu0 0
      %3937 = vmatpush1.bf16.msra.mxu0 0
      %3938 = vmatprep.subr.bf16.mxu0 0
      %3939 = vmatpush1.bf16.msra.mxu0 0
      %3940 = vmatprep.subr.bf16.mxu0 0
      %3941 = vmatpush1.bf16.msra.mxu0 0
      %3942 = vmatprep.subr.bf16.mxu0 0
      %3943 = vmatpush1.bf16.msra.mxu0 0
      %3944 = vmatprep.subr.bf16.mxu0 0
      %3945 = vmatpush1.bf16.msra.mxu0 0
      %3946 = vmatprep.subr.bf16.mxu0 0
      %3947 = vmatpush1.bf16.msra.mxu0 0
      %3948 = vmatprep.subr.bf16.mxu0 0
      %3949 = vmatpush1.bf16.msra.mxu0 0
      %3950 = vmatprep.mubr.bf16.mxu0 0
      %3951 = vmatmul.mubr.bf16.gmra.mrb[0].mxu0 %v3508
      %v3952 = vpop.f32.mrb[0].mxu0
      %v3953 = vadd.f32 0.0, %v3952
      %v3954 = vpop.f32.mrb[0].mxu0
      %v3955 = vpop.f32.mrb[0].mxu0
      %v3956 = vadd.f32 0.0, %v3955
      %v3957 = vpop.f32.mrb[0].mxu0
      %3958 = vmatprep.mubr.bf16.mxu0 0
      %3959 = vmatmul.mubr.bf16.gmra.mrb[0].mxu0 %v3511
      %v3960 = vpop.f32.mrb[0].mxu0
      %v3961 = vadd.f32 0.0, %v3960
      %v3962 = vpop.f32.mrb[0].mxu0
      %v3963 = vpop.f32.mrb[0].mxu0
      %v3964 = vadd.f32 0.0, %v3963
      %v3965 = vpop.f32.mrb[0].mxu0
      %3966 = vmatprep.mubr.bf16.mxu0 0
      %3967 = vmatmul.mubr.bf16.gmra.mrb[0].mxu0 %v3514
      %v3968 = vpop.f32.mrb[0].mxu0
      %v3969 = vadd.f32 0.0, %v3968
      %v3970 = vpop.f32.mrb[0].mxu0
      %v3971 = vpop.f32.mrb[0].mxu0
      %v3972 = vadd.f32 0.0, %v3971
      %v3973 = vpop.f32.mrb[0].mxu0
      %3974 = vmatprep.mubr.bf16.mxu0 0
      %3975 = vmatmul.mubr.bf16.gmra.mrb[0].mxu0 %v3517
      %v3976 = vpop.f32.mrb[0].mxu0
      %v3977 = vadd.f32 0.0, %v3976
      %v3978 = vpop.f32.mrb[0].mxu0
      %v3979 = vpop.f32.mrb[0].mxu0
      %v3980 = vadd.f32 0.0, %v3979
      %v3981 = vpop.f32.mrb[0].mxu0
      %3982 = vmatprep.mubr.bf16.mxu0 0
      %3983 = vmatmul.mubr.bf16.gmra.mrb[0].mxu0 %v3520
      %v3984 = vpop.f32.mrb[0].mxu0
      %v3985 = vadd.f32 0.0, %v3984
      %v3986 = vpop.f32.mrb[0].mxu0
      %v3987 = vpop.f32.mrb[0].mxu0
      %v3988 = vadd.f32 0.0, %v3987
      %v3989 = vpop.f32.mrb[0].mxu0
      %3990 = vmatprep.mubr.bf16.mxu0 0
      %3991 = vmatmul.mubr.bf16.gmra.mrb[0].mxu0 %v3523
      %v3992 = vpop.f32.mrb[0].mxu0
      %v3993 = vadd.f32 0.0, %v3992
      %v3994 = vpop.f32.mrb[0].mxu0
      %v3995 = vpop.f32.mrb[0].mxu0
      %v3996 = vadd.f32 0.0, %v3995
      %v3997 = vpop.f32.mrb[0].mxu0
      %3998 = vmatprep.mubr.bf16.mxu0 0
      %3999 = vmatmul.mubr.bf16.gmra.mrb[0].mxu0 %v3526
      %v4000 = vpop.f32.mrb[0].mxu0
      %v4001 = vadd.f32 0.0, %v4000
      %v4002 = vpop.f32.mrb[0].mxu0
      %v4003 = vpop.f32.mrb[0].mxu0
      %v4004 = vadd.f32 0.0, %v4003
      %v4005 = vpop.f32.mrb[0].mxu0
      %4006 = vmatprep.mubr.bf16.mxu0 0
      %4007 = vmatmul.mubr.bf16.gmra.mrb[0].mxu0 %v3529
      %v4008 = vpop.f32.mrb[0].mxu0
      %v4009 = vadd.f32 0.0, %v4008
      %v4010 = vpop.f32.mrb[0].mxu0
      %v4011 = vpop.f32.mrb[0].mxu0
      %v4012 = vadd.f32 0.0, %v4011
      %v4013 = vpop.f32.mrb[0].mxu0
      %4014 = vmatprep.mubr.bf16.mxu0 0
      %4015 = vmatmul.mubr.bf16.gmra.mrb[0].mxu0 %v3532
      %v4016 = vpop.f32.mrb[0].mxu0
      %v4017 = vadd.f32 0.0, %v4016
      %v4018 = vpop.f32.mrb[0].mxu0
      %v4019 = vpop.f32.mrb[0].mxu0
      %v4020 = vadd.f32 0.0, %v4019
      %v4021 = vpop.f32.mrb[0].mxu0
      %4022 = vmatprep.mubr.bf16.mxu0 0
      %4023 = vmatmul.mubr.bf16.gmra.mrb[0].mxu0 %v3535
      %v4024 = vpop.f32.mrb[0].mxu0
      %v4025 = vadd.f32 0.0, %v4024
      %v4026 = vpop.f32.mrb[0].mxu0
      %v4027 = vpop.f32.mrb[0].mxu0
      %v4028 = vadd.f32 0.0, %v4027
      %v4029 = vpop.f32.mrb[0].mxu0
      %4030 = vmatprep.mubr.bf16.mxu0 0
      %4031 = vmatmul.mubr.bf16.gmra.mrb[0].mxu0 %v3538
      %v4032 = vpop.f32.mrb[0].mxu0
      %v4033 = vadd.f32 0.0, %v4032
      %v4034 = vpop.f32.mrb[0].mxu0
      %v4035 = vpop.f32.mrb[0].mxu0
      %v4036 = vadd.f32 0.0, %v4035
      %v4037 = vpop.f32.mrb[0].mxu0
      %4038 = vmatprep.mubr.bf16.mxu0 0
      %4039 = vmatmul.mubr.bf16.gmra.mrb[0].mxu0 %v3541
      %v4040 = vpop.f32.mrb[0].mxu0
      %v4041 = vadd.f32 0.0, %v4040
      %v4042 = vpop.f32.mrb[0].mxu0
      %v4043 = vpop.f32.mrb[0].mxu0
      %v4044 = vadd.f32 0.0, %v4043
      %v4045 = vpop.f32.mrb[0].mxu0
      %4046 = vmatprep.mubr.bf16.mxu0 0
      %4047 = vmatmul.mubr.bf16.gmra.mrb[0].mxu0 %v3544
      %v4048 = vpop.f32.mrb[0].mxu0
      %v4049 = vadd.f32 0.0, %v4048
      %v4050 = vpop.f32.mrb[0].mxu0
      %v4051 = vpop.f32.mrb[0].mxu0
      %v4052 = vadd.f32 0.0, %v4051
      %v4053 = vpop.f32.mrb[0].mxu0
      %4054 = vmatprep.mubr.bf16.mxu0 0
      %4055 = vmatmul.mubr.bf16.gmra.mrb[0].mxu0 %v3547
      %v4056 = vpop.f32.mrb[0].mxu0
      %v4057 = vadd.f32 0.0, %v4056
      %v4058 = vpop.f32.mrb[0].mxu0
      %v4059 = vpop.f32.mrb[0].mxu0
      %v4060 = vadd.f32 0.0, %v4059
      %v4061 = vpop.f32.mrb[0].mxu0
      %4062 = vmatprep.mubr.bf16.mxu0 0
      %4063 = vmatmul.mubr.bf16.gmra.mrb[0].mxu0 %v3550
      %v4064 = vpop.f32.mrb[0].mxu0
      %v4065 = vadd.f32 0.0, %v4064
      %v4066 = vpop.f32.mrb[0].mxu0
      %v4067 = vpop.f32.mrb[0].mxu0
      %v4068 = vadd.f32 0.0, %v4067
      %v4069 = vpop.f32.mrb[0].mxu0
      %4070 = vmatprep.mubr.bf16.mxu0 0
      %4071 = vmatmul.mubr.bf16.gmra.mrb[0].mxu0 %v3916
      %v4072 = vpop.f32.mrb[0].mxu0
      %v4073 = vadd.f32 0.0, %v4072
      %v4074 = vpop.f32.mrb[0].mxu0
      %v4075 = vpop.f32.mrb[0].mxu0
      %v4076 = vadd.f32 0.0, %v4075
      %v4077 = vpop.f32.mrb[0].mxu0
      %4078 = vdwg.mxu0
      %v4079 = vadd.f32 %v3768, %v3953
      %v4080 = vadd.f32 %v3771, %v3956
      %v4081 = vadd.f32 %v3776, %v3961
      %v4082 = vadd.f32 %v3779, %v3964
      %v4083 = vadd.f32 %v3784, %v3969
      %v4084 = vadd.f32 %v3787, %v3972
      %v4085 = vadd.f32 %v3792, %v3977
      %v4086 = vadd.f32 %v3795, %v3980
      %v4087 = vadd.f32 %v3800, %v3985
      %v4088 = vadd.f32 %v3803, %v3988
      %v4089 = vadd.f32 %v3808, %v3993
      %v4090 = vadd.f32 %v3811, %v3996
      %v4091 = vadd.f32 %v3816, %v4001
      %v4092 = vadd.f32 %v3819, %v4004
      %v4093 = vadd.f32 %v3824, %v4009
      %v4094 = vadd.f32 %v3827, %v4012
      %v4095 = vadd.f32 %v3832, %v4017
      %v4096 = vadd.f32 %v3835, %v4020
      %v4097 = vadd.f32 %v3840, %v4025
      %v4098 = vadd.f32 %v3843, %v4028
      %v4099 = vadd.f32 %v3848, %v4033
      %v4100 = vadd.f32 %v3851, %v4036
      %v4101 = vadd.f32 %v3856, %v4041
      %v4102 = vadd.f32 %v3859, %v4044
      %v4103 = vadd.f32 %v3864, %v4049
      %v4104 = vadd.f32 %v3867, %v4052
      %v4105 = vadd.f32 %v3872, %v4057
      %v4106 = vadd.f32 %v3875, %v4060
      %v4107 = vadd.f32 %v3880, %v4065
      %v4108 = vadd.f32 %v3883, %v4068
      %v4109 = vadd.f32 %v3888, %v4073
      %v4110 = vadd.f32 %v3891, %v4076
      %v4112 = vshrl.u32 %v3350, 16
      %v4114 = vrot.slane %v4112, 4
      %v4115 = vshll.u32 %v3350, 16
      %v4117 = vrot.slane %v4115, 5
      %v4118 = vor.u32 %v4114, %v4117
      %v4119 = vrot.slane %v4118, 4
      %v4121 = vshll.u32 %v3351, 16
      %v4123 = vrot.slane %v4121, 5
      %v4124 = vsel %vm997, %v4119, %v4123
      %v4125 = vshrl.u32 %v3351, 16
      %v4127 = vrot.slane %v4125, 4
      %v4128 = vor.u32 %v4127, %v4123
      %v4129 = vrot.slane %v4128, 4
      %v4131 = vshll.u32 %v3352, 16
      %v4133 = vrot.slane %v4131, 5
      %v4134 = vsel %vm997, %v4129, %v4133
      %v4136 = vshrl.u32 %v3353, 16
      %v4138 = vrot.slane %v4136, 4
      %v4139 = vshll.u32 %v3353, 16
      %v4141 = vrot.slane %v4139, 5
      %v4142 = vor.u32 %v4138, %v4141
      %v4143 = vrot.slane %v4142, 4
      %v4145 = vshll.u32 %v3354, 16
      %v4147 = vrot.slane %v4145, 5
      %v4148 = vsel %vm997, %v4143, %v4147
      %v4149 = vshrl.u32 %v3354, 16
      %v4151 = vrot.slane %v4149, 4
      %v4152 = vor.u32 %v4151, %v4147
      %v4153 = vrot.slane %v4152, 4
      %v4155 = vshll.u32 %v3355, 16
      %v4157 = vrot.slane %v4155, 5
      %v4158 = vsel %vm997, %v4153, %v4157
      %v4160 = vshrl.u32 %v3356, 16
      %v4162 = vrot.slane %v4160, 4
      %v4163 = vshll.u32 %v3356, 16
      %v4165 = vrot.slane %v4163, 5
      %v4166 = vor.u32 %v4162, %v4165
      %v4167 = vrot.slane %v4166, 4
      %v4169 = vshll.u32 %v3357, 16
      %v4171 = vrot.slane %v4169, 5
      %v4172 = vsel %vm997, %v4167, %v4171
      %v4173 = vshrl.u32 %v3357, 16
      %v4175 = vrot.slane %v4173, 4
      %v4176 = vor.u32 %v4175, %v4171
      %v4177 = vrot.slane %v4176, 4
      %v4179 = vshll.u32 %v3358, 16
      %v4181 = vrot.slane %v4179, 5
      %v4182 = vsel %vm997, %v4177, %v4181
      %v4184 = vshrl.u32 %v3359, 16
      %v4186 = vrot.slane %v4184, 4
      %v4187 = vshll.u32 %v3359, 16
      %v4189 = vrot.slane %v4187, 5
      %v4190 = vor.u32 %v4186, %v4189
      %v4191 = vrot.slane %v4190, 4
      %v4193 = vshll.u32 %v3360, 16
      %v4195 = vrot.slane %v4193, 5
      %v4196 = vsel %vm997, %v4191, %v4195
      %v4197 = vshrl.u32 %v3360, 16
      %v4199 = vrot.slane %v4197, 4
      %v4200 = vor.u32 %v4199, %v4195
      %v4201 = vrot.slane %v4200, 4
      %v4203 = vshll.u32 %v3361, 16
      %v4205 = vrot.slane %v4203, 5
      %v4206 = vsel %vm997, %v4201, %v4205
      %v4208 = vshrl.u32 %v3362, 16
      %v4210 = vrot.slane %v4208, 4
      %v4211 = vshll.u32 %v3362, 16
      %v4213 = vrot.slane %v4211, 5
      %v4214 = vor.u32 %v4210, %v4213
      %v4215 = vrot.slane %v4214, 4
      %v4217 = vshll.u32 %v3363, 16
      %v4219 = vrot.slane %v4217, 5
      %v4220 = vsel %vm997, %v4215, %v4219
      %v4221 = vshrl.u32 %v3363, 16
      %v4223 = vrot.slane %v4221, 4
      %v4224 = vor.u32 %v4223, %v4219
      %v4225 = vrot.slane %v4224, 4
      %v4227 = vshll.u32 %v3364, 16
      %v4229 = vrot.slane %v4227, 5
      %v4230 = vsel %vm997, %v4225, %v4229
      %v4232 = vshrl.u32 %v3365, 16
      %v4234 = vrot.slane %v4232, 4
      %v4235 = vshll.u32 %v3365, 16
      %v4237 = vrot.slane %v4235, 5
      %v4238 = vor.u32 %v4234, %v4237
      %v4239 = vrot.slane %v4238, 4
      %v4241 = vshll.u32 %v3366, 16
      %v4243 = vrot.slane %v4241, 5
      %v4244 = vsel %vm997, %v4239, %v4243
      %v4245 = vshrl.u32 %v3366, 16
      %v4247 = vrot.slane %v4245, 4
      %v4248 = vor.u32 %v4247, %v4243
      %v4249 = vrot.slane %v4248, 4
      %v4251 = vshll.u32 %v3367, 16
      %v4253 = vrot.slane %v4251, 5
      %v4254 = vsel %vm997, %v4249, %v4253
      %v4256 = vshrl.u32 %v3368, 16
      %v4258 = vrot.slane %v4256, 4
      %v4259 = vshll.u32 %v3368, 16
      %v4261 = vrot.slane %v4259, 5
      %v4262 = vor.u32 %v4258, %v4261
      %v4263 = vrot.slane %v4262, 4
      %v4265 = vshll.u32 %v3369, 16
      %v4267 = vrot.slane %v4265, 5
      %v4268 = vsel %vm997, %v4263, %v4267
      %v4269 = vshrl.u32 %v3369, 16
      %v4271 = vrot.slane %v4269, 4
      %v4272 = vor.u32 %v4271, %v4267
      %v4273 = vrot.slane %v4272, 4
      %v4275 = vshll.u32 %v3370, 16
      %v4277 = vrot.slane %v4275, 5
      %v4278 = vsel %vm997, %v4273, %v4277
      %v4280 = vshrl.u32 %v3371, 16
      %v4282 = vrot.slane %v4280, 4
      %v4283 = vshll.u32 %v3371, 16
      %v4285 = vrot.slane %v4283, 5
      %v4286 = vor.u32 %v4282, %v4285
      %v4287 = vrot.slane %v4286, 4
      %v4289 = vshll.u32 %v3372, 16
      %v4291 = vrot.slane %v4289, 5
      %v4292 = vsel %vm997, %v4287, %v4291
      %v4293 = vshrl.u32 %v3372, 16
      %v4295 = vrot.slane %v4293, 4
      %v4296 = vor.u32 %v4295, %v4291
      %v4297 = vrot.slane %v4296, 4
      %v4299 = vshll.u32 %v3373, 16
      %v4301 = vrot.slane %v4299, 5
      %v4302 = vsel %vm997, %v4297, %v4301
      %v4304 = vshrl.u32 %v3374, 16
      %v4306 = vrot.slane %v4304, 4
      %v4307 = vshll.u32 %v3374, 16
      %v4309 = vrot.slane %v4307, 5
      %v4310 = vor.u32 %v4306, %v4309
      %v4311 = vrot.slane %v4310, 4
      %v4313 = vshll.u32 %v3375, 16
      %v4315 = vrot.slane %v4313, 5
      %v4316 = vsel %vm997, %v4311, %v4315
      %v4317 = vshrl.u32 %v3375, 16
      %v4319 = vrot.slane %v4317, 4
      %v4320 = vor.u32 %v4319, %v4315
      %v4321 = vrot.slane %v4320, 4
      %v4323 = vshll.u32 %v3376, 16
      %v4325 = vrot.slane %v4323, 5
      %v4326 = vsel %vm997, %v4321, %v4325
      %v4328 = vshrl.u32 %v3377, 16
      %v4330 = vrot.slane %v4328, 4
      %v4331 = vshll.u32 %v3377, 16
      %v4333 = vrot.slane %v4331, 5
      %v4334 = vor.u32 %v4330, %v4333
      %v4335 = vrot.slane %v4334, 4
      %v4337 = vshll.u32 %v3378, 16
      %v4339 = vrot.slane %v4337, 5
      %v4340 = vsel %vm997, %v4335, %v4339
      %v4341 = vshrl.u32 %v3378, 16
      %v4343 = vrot.slane %v4341, 4
      %v4344 = vor.u32 %v4343, %v4339
      %v4345 = vrot.slane %v4344, 4
      %v4347 = vshll.u32 %v3379, 16
      %v4349 = vrot.slane %v4347, 5
      %v4350 = vsel %vm997, %v4345, %v4349
      %v4352 = vshrl.u32 %v3380, 16
      %v4354 = vrot.slane %v4352, 4
      %v4355 = vshll.u32 %v3380, 16
      %v4357 = vrot.slane %v4355, 5
      %v4358 = vor.u32 %v4354, %v4357
      %v4359 = vrot.slane %v4358, 4
      %v4361 = vshll.u32 %v3381, 16
      %v4363 = vrot.slane %v4361, 5
      %v4364 = vsel %vm997, %v4359, %v4363
      %v4365 = vshrl.u32 %v3381, 16
      %v4367 = vrot.slane %v4365, 4
      %v4368 = vor.u32 %v4367, %v4363
      %v4369 = vrot.slane %v4368, 4
      %v4371 = vshll.u32 %v3382, 16
      %v4373 = vrot.slane %v4371, 5
      %v4374 = vsel %vm997, %v4369, %v4373
      %v4376 = vshrl.u32 %v3383, 16
      %v4378 = vrot.slane %v4376, 4
      %v4379 = vshll.u32 %v3383, 16
      %v4381 = vrot.slane %v4379, 5
      %v4382 = vor.u32 %v4378, %v4381
      %v4383 = vrot.slane %v4382, 4
      %v4385 = vshll.u32 %v3384, 16
      %v4387 = vrot.slane %v4385, 5
      %v4388 = vsel %vm997, %v4383, %v4387
      %v4389 = vshrl.u32 %v3384, 16
      %v4391 = vrot.slane %v4389, 4
      %v4392 = vor.u32 %v4391, %v4387
      %v4393 = vrot.slane %v4392, 4
      %v4395 = vshll.u32 %v3385, 16
      %v4397 = vrot.slane %v4395, 5
      %v4398 = vsel %vm997, %v4393, %v4397
      %v4400 = vshrl.u32 %v3386, 16
      %v4402 = vrot.slane %v4400, 4
      %v4403 = vshll.u32 %v3386, 16
      %v4405 = vrot.slane %v4403, 5
      %v4406 = vor.u32 %v4402, %v4405
      %v4407 = vrot.slane %v4406, 4
      %v4409 = vshll.u32 %v3387, 16
      %v4411 = vrot.slane %v4409, 5
      %v4412 = vsel %vm997, %v4407, %v4411
      %v4413 = vshrl.u32 %v3387, 16
      %v4415 = vrot.slane %v4413, 4
      %v4416 = vor.u32 %v4415, %v4411
      %v4417 = vrot.slane %v4416, 4
      %v4419 = vshll.u32 %v3388, 16
      %v4421 = vrot.slane %v4419, 5
      %v4422 = vsel %vm997, %v4417, %v4421
      %v4424 = vshrl.u32 %v3389, 16
      %v4426 = vrot.slane %v4424, 4
      %v4427 = vshll.u32 %v3389, 16
      %v4429 = vrot.slane %v4427, 5
      %v4430 = vor.u32 %v4426, %v4429
      %v4431 = vrot.slane %v4430, 4
      %v4433 = vshll.u32 %v3390, 16
      %v4435 = vrot.slane %v4433, 5
      %v4436 = vsel %vm997, %v4431, %v4435
      %v4437 = vshrl.u32 %v3390, 16
      %v4439 = vrot.slane %v4437, 4
      %v4440 = vor.u32 %v4439, %v4435
      %v4441 = vrot.slane %v4440, 4
      %v4443 = vshll.u32 %v3391, 16
      %v4445 = vrot.slane %v4443, 5
      %v4446 = vsel %vm997, %v4441, %v4445
      %v4448 = vshrl.u32 %v3392, 16
      %v4450 = vrot.slane %v4448, 4
      %v4451 = vshll.u32 %v3392, 16
      %v4453 = vrot.slane %v4451, 5
      %v4454 = vor.u32 %v4450, %v4453
      %v4455 = vrot.slane %v4454, 4
      %v4457 = vshll.u32 %v3393, 16
      %v4459 = vrot.slane %v4457, 5
      %v4460 = vsel %vm997, %v4455, %v4459
      %v4461 = vshrl.u32 %v3393, 16
      %v4463 = vrot.slane %v4461, 4
      %v4464 = vor.u32 %v4463, %v4459
      %v4465 = vrot.slane %v4464, 4
      %v4467 = vshll.u32 %v3394, 16
      %v4469 = vrot.slane %v4467, 5
      %v4470 = vsel %vm997, %v4465, %v4469
      %v4472 = vshrl.u32 %v3395, 16
      %v4474 = vrot.slane %v4472, 4
      %v4475 = vshll.u32 %v3395, 16
      %v4477 = vrot.slane %v4475, 5
      %v4478 = vor.u32 %v4474, %v4477
      %v4479 = vrot.slane %v4478, 4
      %v4481 = vshll.u32 %v3396, 16
      %v4483 = vrot.slane %v4481, 5
      %v4484 = vsel %vm997, %v4479, %v4483
      %v4485 = vshrl.u32 %v3396, 16
      %v4487 = vrot.slane %v4485, 4
      %v4488 = vor.u32 %v4487, %v4483
      %v4489 = vrot.slane %v4488, 4
      %v4491 = vshll.u32 %v3397, 16
      %v4493 = vrot.slane %v4491, 5
      %v4494 = vsel %vm997, %v4489, %v4493
      %v4496 = vshrl.u32 %v3398, 16
      %v4498 = vrot.slane %v4496, 4
      %v4499 = vshll.u32 %v3398, 16
      %v4501 = vrot.slane %v4499, 5
      %v4502 = vor.u32 %v4498, %v4501
      %v4503 = vrot.slane %v4502, 4
      %v4505 = vshll.u32 %v3399, 16
      %v4507 = vrot.slane %v4505, 5
      %v4508 = vsel %vm997, %v4503, %v4507
      %v4509 = vshrl.u32 %v3399, 16
      %v4511 = vrot.slane %v4509, 4
      %v4512 = vor.u32 %v4511, %v4507
      %v4513 = vrot.slane %v4512, 4
      %v4515 = vshll.u32 %v3400, 16
      %v4517 = vrot.slane %v4515, 5
      %v4518 = vsel %vm997, %v4513, %v4517
      %v4520 = vshrl.u32 %v3401, 16
      %v4522 = vrot.slane %v4520, 4
      %v4523 = vshll.u32 %v3401, 16
      %v4525 = vrot.slane %v4523, 5
      %v4526 = vor.u32 %v4522, %v4525
      %v4527 = vrot.slane %v4526, 4
      %v4529 = vshll.u32 %v3402, 16
      %v4531 = vrot.slane %v4529, 5
      %v4532 = vsel %vm997, %v4527, %v4531
      %v4533 = vshrl.u32 %v3402, 16
      %v4535 = vrot.slane %v4533, 4
      %v4536 = vor.u32 %v4535, %v4531
      %v4537 = vrot.slane %v4536, 4
      %v4539 = vshll.u32 %v3403, 16
      %v4541 = vrot.slane %v4539, 5
      %v4542 = vsel %vm997, %v4537, %v4541
      %v4543 = vld [vmem:[%s1430] sm:$0xf]
      %v4544 = vld [vmem:[%s1430 + $0x4] sm:$0xf]
      %v4545 = vld [vmem:[%s1430 + $0x8] sm:$0xf]
      %v4546 = vld [vmem:[%s1430 + $0xc] sm:$0xf]
      %v4547 = vunpack.c.l.b16 %v4124
      %v4548 = vunpack.c.l.b16 %v4134
      %v4549 = vunpack.c.l.b16 %v4148
      %v4550 = vunpack.c.l.b16 %v4158
      %v4551 = vunpack.c.l.b16 %v4172
      %v4552 = vunpack.c.l.b16 %v4182
      %v4553 = vunpack.c.l.b16 %v4196
      %v4554 = vunpack.c.l.b16 %v4206
      %v4555 = vunpack.c.l.b16 %v4220
      %v4556 = vunpack.c.l.b16 %v4230
      %v4557 = vunpack.c.l.b16 %v4244
      %v4558 = vunpack.c.l.b16 %v4254
      %v4559 = vunpack.c.l.b16 %v4268
      %v4560 = vunpack.c.l.b16 %v4278
      %v4561 = vunpack.c.l.b16 %v4292
      %v4562 = vunpack.c.l.b16 %v4302
      %v4563 = vunpack.c.l.b16 %v4316
      %v4564 = vunpack.c.l.b16 %v4326
      %v4565 = vunpack.c.l.b16 %v4340
      %v4566 = vunpack.c.l.b16 %v4350
      %v4567 = vunpack.c.l.b16 %v4364
      %v4568 = vunpack.c.l.b16 %v4374
      %v4569 = vunpack.c.l.b16 %v4388
      %v4570 = vunpack.c.l.b16 %v4398
      %v4571 = vunpack.c.l.b16 %v4412
      %v4572 = vunpack.c.l.b16 %v4422
      %v4573 = vunpack.c.l.b16 %v4436
      %v4574 = vunpack.c.l.b16 %v4446
      %v4575 = vunpack.c.l.b16 %v4460
      %v4576 = vunpack.c.l.b16 %v4470
      %v4577 = vunpack.c.l.b16 %v4484
      %v4578 = vunpack.c.l.b16 %v4494
      %v4579 = vpack.c.b16 %v4548, %v4547
      %v4580 = vpack.c.b16 %v4550, %v4549
      %v4581 = vpack.c.b16 %v4552, %v4551
      %v4582 = vpack.c.b16 %v4554, %v4553
      %v4583 = vpack.c.b16 %v4556, %v4555
      %v4584 = vpack.c.b16 %v4558, %v4557
      %v4585 = vpack.c.b16 %v4560, %v4559
      %v4586 = vpack.c.b16 %v4562, %v4561
      %v4587 = vpack.c.b16 %v4564, %v4563
      %v4588 = vpack.c.b16 %v4566, %v4565
      %v4589 = vpack.c.b16 %v4568, %v4567
      %v4590 = vpack.c.b16 %v4570, %v4569
      %v4591 = vpack.c.b16 %v4572, %v4571
      %v4592 = vpack.c.b16 %v4574, %v4573
      %v4593 = vpack.c.b16 %v4576, %v4575
      %v4594 = vpack.c.b16 %v4578, %v4577
      %v4599 = vunpack.c.l.b16 %v4543
      %v4600 = vunpack.c.l.b16 %v4544
      %v4601 = vunpack.c.l.b16 %v4545
      %v4602 = vunpack.c.l.b16 %v4546
      %v4603 = vpack.c.b16 %v4600, %v4599
      %v4604 = vpack.c.b16 %v4602, %v4601
      %v4608 = vsel %vm386, %v4579, 0
      %v4611 = vsel %vm386, %v4580, 0
      %v4614 = vsel %vm386, %v4581, 0
      %v4617 = vsel %vm386, %v4582, 0
      %v4620 = vsel %vm386, %v4583, 0
      %v4623 = vsel %vm386, %v4584, 0
      %v4626 = vsel %vm386, %v4585, 0
      %v4629 = vsel %vm386, %v4586, 0
      %v4632 = vsel %vm386, %v4587, 0
      %v4635 = vsel %vm386, %v4588, 0
      %v4638 = vsel %vm386, %v4589, 0
      %v4641 = vsel %vm386, %v4590, 0
      %v4644 = vsel %vm386, %v4591, 0
      %v4647 = vsel %vm386, %v4592, 0
      %v4650 = vsel %vm386, %v4593, 0
      %v4653 = vsel %vm386, %v4594, 0
      %4655 = vmatprep.subr.bf16.mxu0 0
      %4656 = vmatpush1.bf16.msra.mxu0 %v4603
      %4657 = vmatprep.subr.bf16.mxu0 0
      %4658 = vmatpush1.bf16.msra.mxu0 %v4604
      %4659 = vmatprep.subr.bf16.mxu0 0
      %4660 = vmatpush1.bf16.msra.mxu0 0
      %4661 = vmatprep.subr.bf16.mxu0 0
      %4662 = vmatpush1.bf16.msra.mxu0 0
      %4663 = vmatprep.subr.bf16.mxu0 0
      %4664 = vmatpush1.bf16.msra.mxu0 0
      %4665 = vmatprep.subr.bf16.mxu0 0
      %4666 = vmatpush1.bf16.msra.mxu0 0
      %4667 = vmatprep.subr.bf16.mxu0 0
      %4668 = vmatpush1.bf16.msra.mxu0 0
      %4669 = vmatprep.subr.bf16.mxu0 0
      %4670 = vmatpush1.bf16.msra.mxu0 0
      %4671 = vmatprep.subr.bf16.mxu0 0
      %4672 = vmatpush1.bf16.msra.mxu0 0
      %4673 = vmatprep.subr.bf16.mxu0 0
      %4674 = vmatpush1.bf16.msra.mxu0 0
      %4675 = vmatprep.subr.bf16.mxu0 0
      %4676 = vmatpush1.bf16.msra.mxu0 0
      %4677 = vmatprep.subr.bf16.mxu0 0
      %4678 = vmatpush1.bf16.msra.mxu0 0
      %4679 = vmatprep.subr.bf16.mxu0 0
      %4680 = vmatpush1.bf16.msra.mxu0 0
      %4681 = vmatprep.subr.bf16.mxu0 0
      %4682 = vmatpush1.bf16.msra.mxu0 0
      %4683 = vmatprep.subr.bf16.mxu0 0
      %4684 = vmatpush1.bf16.msra.mxu0 0
      %4685 = vmatprep.subr.bf16.mxu0 0
      %4686 = vmatpush1.bf16.msra.mxu0 0
      %4687 = vmatprep.mubr.bf16.mxu0 0
      %4688 = vmatmul.mubr.bf16.gmra.mrb[0].mxu0 %v4608
      %v4689 = vpop.f32.mrb[0].mxu0
      %v4690 = vadd.f32 0.0, %v4689
      %v4691 = vpop.f32.mrb[0].mxu0
      %v4692 = vpop.f32.mrb[0].mxu0
      %v4693 = vadd.f32 0.0, %v4692
      %v4694 = vpop.f32.mrb[0].mxu0
      %4695 = vmatprep.mubr.bf16.mxu0 0
      %4696 = vmatmul.mubr.bf16.gmra.mrb[0].mxu0 %v4611
      %v4697 = vpop.f32.mrb[0].mxu0
      %v4698 = vadd.f32 0.0, %v4697
      %v4699 = vpop.f32.mrb[0].mxu0
      %v4700 = vpop.f32.mrb[0].mxu0
      %v4701 = vadd.f32 0.0, %v4700
      %v4702 = vpop.f32.mrb[0].mxu0
      %4703 = vmatprep.mubr.bf16.mxu0 0
      %4704 = vmatmul.mubr.bf16.gmra.mrb[0].mxu0 %v4614
      %v4705 = vpop.f32.mrb[0].mxu0
      %v4706 = vadd.f32 0.0, %v4705
      %v4707 = vpop.f32.mrb[0].mxu0
      %v4708 = vpop.f32.mrb[0].mxu0
      %v4709 = vadd.f32 0.0, %v4708
      %v4710 = vpop.f32.mrb[0].mxu0
      %4711 = vmatprep.mubr.bf16.mxu0 0
      %4712 = vmatmul.mubr.bf16.gmra.mrb[0].mxu0 %v4617
      %v4713 = vpop.f32.mrb[0].mxu0
      %v4714 = vadd.f32 0.0, %v4713
      %v4715 = vpop.f32.mrb[0].mxu0
      %v4716 = vpop.f32.mrb[0].mxu0
      %v4717 = vadd.f32 0.0, %v4716
      %v4718 = vpop.f32.mrb[0].mxu0
      %4719 = vmatprep.mubr.bf16.mxu0 0
      %4720 = vmatmul.mubr.bf16.gmra.mrb[0].mxu0 %v4620
      %v4721 = vpop.f32.mrb[0].mxu0
      %v4722 = vadd.f32 0.0, %v4721
      %v4723 = vpop.f32.mrb[0].mxu0
      %v4724 = vpop.f32.mrb[0].mxu0
      %v4725 = vadd.f32 0.0, %v4724
      %v4726 = vpop.f32.mrb[0].mxu0
      %4727 = vmatprep.mubr.bf16.mxu0 0
      %4728 = vmatmul.mubr.bf16.gmra.mrb[0].mxu0 %v4623
      %v4729 = vpop.f32.mrb[0].mxu0
      %v4730 = vadd.f32 0.0, %v4729
      %v4731 = vpop.f32.mrb[0].mxu0
      %v4732 = vpop.f32.mrb[0].mxu0
      %v4733 = vadd.f32 0.0, %v4732
      %v4734 = vpop.f32.mrb[0].mxu0
      %4735 = vmatprep.mubr.bf16.mxu0 0
      %4736 = vmatmul.mubr.bf16.gmra.mrb[0].mxu0 %v4626
      %v4737 = vpop.f32.mrb[0].mxu0
      %v4738 = vadd.f32 0.0, %v4737
      %v4739 = vpop.f32.mrb[0].mxu0
      %v4740 = vpop.f32.mrb[0].mxu0
      %v4741 = vadd.f32 0.0, %v4740
      %v4742 = vpop.f32.mrb[0].mxu0
      %4743 = vmatprep.mubr.bf16.mxu0 0
      %4744 = vmatmul.mubr.bf16.gmra.mrb[0].mxu0 %v4629
      %v4745 = vpop.f32.mrb[0].mxu0
      %v4746 = vadd.f32 0.0, %v4745
      %v4747 = vpop.f32.mrb[0].mxu0
      %v4748 = vpop.f32.mrb[0].mxu0
      %v4749 = vadd.f32 0.0, %v4748
      %v4750 = vpop.f32.mrb[0].mxu0
      %4751 = vmatprep.mubr.bf16.mxu0 0
      %4752 = vmatmul.mubr.bf16.gmra.mrb[0].mxu0 %v4632
      %v4753 = vpop.f32.mrb[0].mxu0
      %v4754 = vadd.f32 0.0, %v4753
      %v4755 = vpop.f32.mrb[0].mxu0
      %v4756 = vpop.f32.mrb[0].mxu0
      %v4757 = vadd.f32 0.0, %v4756
      %v4758 = vpop.f32.mrb[0].mxu0
      %4759 = vmatprep.mubr.bf16.mxu0 0
      %4760 = vmatmul.mubr.bf16.gmra.mrb[0].mxu0 %v4635
      %v4761 = vpop.f32.mrb[0].mxu0
      %v4762 = vadd.f32 0.0, %v4761
      %v4763 = vpop.f32.mrb[0].mxu0
      %v4764 = vpop.f32.mrb[0].mxu0
      %v4765 = vadd.f32 0.0, %v4764
      %v4766 = vpop.f32.mrb[0].mxu0
      %4767 = vmatprep.mubr.bf16.mxu0 0
      %4768 = vmatmul.mubr.bf16.gmra.mrb[0].mxu0 %v4638
      %v4769 = vpop.f32.mrb[0].mxu0
      %v4770 = vadd.f32 0.0, %v4769
      %v4771 = vpop.f32.mrb[0].mxu0
      %v4772 = vpop.f32.mrb[0].mxu0
      %v4773 = vadd.f32 0.0, %v4772
      %v4774 = vpop.f32.mrb[0].mxu0
      %4775 = vmatprep.mubr.bf16.mxu0 0
      %4776 = vmatmul.mubr.bf16.gmra.mrb[0].mxu0 %v4641
      %v4777 = vpop.f32.mrb[0].mxu0
      %v4778 = vadd.f32 0.0, %v4777
      %v4779 = vpop.f32.mrb[0].mxu0
      %v4780 = vpop.f32.mrb[0].mxu0
      %v4781 = vadd.f32 0.0, %v4780
      %v4782 = vpop.f32.mrb[0].mxu0
      %4783 = vmatprep.mubr.bf16.mxu0 0
      %4784 = vmatmul.mubr.bf16.gmra.mrb[0].mxu0 %v4644
      %v4785 = vpop.f32.mrb[0].mxu0
      %v4786 = vadd.f32 0.0, %v4785
      %v4787 = vpop.f32.mrb[0].mxu0
      %v4788 = vpop.f32.mrb[0].mxu0
      %v4789 = vadd.f32 0.0, %v4788
      %v4790 = vpop.f32.mrb[0].mxu0
      %4791 = vmatprep.mubr.bf16.mxu0 0
      %4792 = vmatmul.mubr.bf16.gmra.mrb[0].mxu0 %v4647
      %v4793 = vpop.f32.mrb[0].mxu0
      %v4794 = vadd.f32 0.0, %v4793
      %v4795 = vpop.f32.mrb[0].mxu0
      %v4796 = vpop.f32.mrb[0].mxu0
      %v4797 = vadd.f32 0.0, %v4796
      %v4798 = vpop.f32.mrb[0].mxu0
      %4799 = vmatprep.mubr.bf16.mxu0 0
      %4800 = vmatmul.mubr.bf16.gmra.mrb[0].mxu0 %v4650
      %v4801 = vpop.f32.mrb[0].mxu0
      %v4802 = vadd.f32 0.0, %v4801
      %v4803 = vpop.f32.mrb[0].mxu0
      %v4804 = vpop.f32.mrb[0].mxu0
      %v4805 = vadd.f32 0.0, %v4804
      %v4806 = vpop.f32.mrb[0].mxu0
      %4807 = vmatprep.mubr.bf16.mxu0 0
      %4808 = vmatmul.mubr.bf16.gmra.mrb[0].mxu0 %v4653
      %v4809 = vpop.f32.mrb[0].mxu0
      %v4810 = vadd.f32 0.0, %v4809
      %v4811 = vpop.f32.mrb[0].mxu0
      %v4812 = vpop.f32.mrb[0].mxu0
      %v4813 = vadd.f32 0.0, %v4812
      %v4814 = vpop.f32.mrb[0].mxu0
      %4815 = vdwg.mxu0
      %v4816 = vadd.f32 %v4079, %v4690
      %v4817 = vadd.f32 %v4080, %v4693
      %v4818 = vadd.f32 %v4081, %v4698
      %v4819 = vadd.f32 %v4082, %v4701
      %v4820 = vadd.f32 %v4083, %v4706
      %v4821 = vadd.f32 %v4084, %v4709
      %v4822 = vadd.f32 %v4085, %v4714
      %v4823 = vadd.f32 %v4086, %v4717
      %v4824 = vadd.f32 %v4087, %v4722
      %v4825 = vadd.f32 %v4088, %v4725
      %v4826 = vadd.f32 %v4089, %v4730
      %v4827 = vadd.f32 %v4090, %v4733
      %v4828 = vadd.f32 %v4091, %v4738
      %v4829 = vadd.f32 %v4092, %v4741
      %v4830 = vadd.f32 %v4093, %v4746
      %v4831 = vadd.f32 %v4094, %v4749
      %v4832 = vadd.f32 %v4095, %v4754
      %v4833 = vadd.f32 %v4096, %v4757
      %v4834 = vadd.f32 %v4097, %v4762
      %v4835 = vadd.f32 %v4098, %v4765
      %v4836 = vadd.f32 %v4099, %v4770
      %v4837 = vadd.f32 %v4100, %v4773
      %v4838 = vadd.f32 %v4101, %v4778
      %v4839 = vadd.f32 %v4102, %v4781
      %v4840 = vadd.f32 %v4103, %v4786
      %v4841 = vadd.f32 %v4104, %v4789
      %v4842 = vadd.f32 %v4105, %v4794
      %v4843 = vadd.f32 %v4106, %v4797
      %v4844 = vadd.f32 %v4107, %v4802
      %v4845 = vadd.f32 %v4108, %v4805
      %v4846 = vadd.f32 %v4109, %v4810
      %v4847 = vadd.f32 %v4110, %v4813
      %v4848 = vld [vmem:[%s1736] sm:$0xf]
      %v4849 = vld [vmem:[%s1736 + $0x4] sm:$0xf]
      %v4850 = vld [vmem:[%s1736 + $0x8] sm:$0xf]
      %v4851 = vld [vmem:[%s1736 + $0xc] sm:$0xf]
      %v4852 = vunpack.c.l.b16 %v4508
      %v4853 = vunpack.c.l.b16 %v4518
      %v4854 = vpack.c.b16 %v4853, %v4852
      %v4859 = vunpack.c.l.b16 %v4848
      %v4860 = vunpack.c.l.b16 %v4849
      %v4861 = vunpack.c.l.b16 %v4850
      %v4862 = vunpack.c.l.b16 %v4851
      %v4863 = vpack.c.b16 %v4860, %v4859
      %v4864 = vpack.c.b16 %v4862, %v4861
      %v4868 = vsel %vm386, %v4854, 0
      %4870 = vmatprep.subr.bf16.mxu0 0
      %4871 = vmatpush1.bf16.msra.mxu0 %v4863
      %4872 = vmatprep.subr.bf16.mxu0 0
      %4873 = vmatpush1.bf16.msra.mxu0 %v4864
      %4874 = vmatprep.subr.bf16.mxu0 0
      %4875 = vmatpush1.bf16.msra.mxu0 0
      %4876 = vmatprep.subr.bf16.mxu0 0
      %4877 = vmatpush1.bf16.msra.mxu0 0
      %4878 = vmatprep.subr.bf16.mxu0 0
      %4879 = vmatpush1.bf16.msra.mxu0 0
      %4880 = vmatprep.subr.bf16.mxu0 0
      %4881 = vmatpush1.bf16.msra.mxu0 0
      %4882 = vmatprep.subr.bf16.mxu0 0
      %4883 = vmatpush1.bf16.msra.mxu0 0
      %4884 = vmatprep.subr.bf16.mxu0 0
      %4885 = vmatpush1.bf16.msra.mxu0 0
      %4886 = vmatprep.subr.bf16.mxu0 0
      %4887 = vmatpush1.bf16.msra.mxu0 0
      %4888 = vmatprep.subr.bf16.mxu0 0
      %4889 = vmatpush1.bf16.msra.mxu0 0
      %4890 = vmatprep.subr.bf16.mxu0 0
      %4891 = vmatpush1.bf16.msra.mxu0 0
      %4892 = vmatprep.subr.bf16.mxu0 0
      %4893 = vmatpush1.bf16.msra.mxu0 0
      %4894 = vmatprep.subr.bf16.mxu0 0
      %4895 = vmatpush1.bf16.msra.mxu0 0
      %4896 = vmatprep.subr.bf16.mxu0 0
      %4897 = vmatpush1.bf16.msra.mxu0 0
      %4898 = vmatprep.subr.bf16.mxu0 0
      %4899 = vmatpush1.bf16.msra.mxu0 0
      %4900 = vmatprep.subr.bf16.mxu0 0
      %4901 = vmatpush1.bf16.msra.mxu0 0
      %4902 = vmatprep.mubr.bf16.mxu0 0
      %4903 = vmatmul.mubr.bf16.gmra.mrb[0].mxu0 %v4611
      %v4904 = vpop.f32.mrb[0].mxu0
      %v4905 = vadd.f32 0.0, %v4904
      %v4906 = vpop.f32.mrb[0].mxu0
      %v4907 = vpop.f32.mrb[0].mxu0
      %v4908 = vadd.f32 0.0, %v4907
      %v4909 = vpop.f32.mrb[0].mxu0
      %4910 = vmatprep.mubr.bf16.mxu0 0
      %4911 = vmatmul.mubr.bf16.gmra.mrb[0].mxu0 %v4614
      %v4912 = vpop.f32.mrb[0].mxu0
      %v4913 = vadd.f32 0.0, %v4912
      %v4914 = vpop.f32.mrb[0].mxu0
      %v4915 = vpop.f32.mrb[0].mxu0
      %v4916 = vadd.f32 0.0, %v4915
      %v4917 = vpop.f32.mrb[0].mxu0
      %4918 = vmatprep.mubr.bf16.mxu0 0
      %4919 = vmatmul.mubr.bf16.gmra.mrb[0].mxu0 %v4617
      %v4920 = vpop.f32.mrb[0].mxu0
      %v4921 = vadd.f32 0.0, %v4920
      %v4922 = vpop.f32.mrb[0].mxu0
      %v4923 = vpop.f32.mrb[0].mxu0
      %v4924 = vadd.f32 0.0, %v4923
      %v4925 = vpop.f32.mrb[0].mxu0
      %4926 = vmatprep.mubr.bf16.mxu0 0
      %4927 = vmatmul.mubr.bf16.gmra.mrb[0].mxu0 %v4620
      %v4928 = vpop.f32.mrb[0].mxu0
      %v4929 = vadd.f32 0.0, %v4928
      %v4930 = vpop.f32.mrb[0].mxu0
      %v4931 = vpop.f32.mrb[0].mxu0
      %v4932 = vadd.f32 0.0, %v4931
      %v4933 = vpop.f32.mrb[0].mxu0
      %4934 = vmatprep.mubr.bf16.mxu0 0
      %4935 = vmatmul.mubr.bf16.gmra.mrb[0].mxu0 %v4623
      %v4936 = vpop.f32.mrb[0].mxu0
      %v4937 = vadd.f32 0.0, %v4936
      %v4938 = vpop.f32.mrb[0].mxu0
      %v4939 = vpop.f32.mrb[0].mxu0
      %v4940 = vadd.f32 0.0, %v4939
      %v4941 = vpop.f32.mrb[0].mxu0
      %4942 = vmatprep.mubr.bf16.mxu0 0
      %4943 = vmatmul.mubr.bf16.gmra.mrb[0].mxu0 %v4626
      %v4944 = vpop.f32.mrb[0].mxu0
      %v4945 = vadd.f32 0.0, %v4944
      %v4946 = vpop.f32.mrb[0].mxu0
      %v4947 = vpop.f32.mrb[0].mxu0
      %v4948 = vadd.f32 0.0, %v4947
      %v4949 = vpop.f32.mrb[0].mxu0
      %4950 = vmatprep.mubr.bf16.mxu0 0
      %4951 = vmatmul.mubr.bf16.gmra.mrb[0].mxu0 %v4629
      %v4952 = vpop.f32.mrb[0].mxu0
      %v4953 = vadd.f32 0.0, %v4952
      %v4954 = vpop.f32.mrb[0].mxu0
      %v4955 = vpop.f32.mrb[0].mxu0
      %v4956 = vadd.f32 0.0, %v4955
      %v4957 = vpop.f32.mrb[0].mxu0
      %4958 = vmatprep.mubr.bf16.mxu0 0
      %4959 = vmatmul.mubr.bf16.gmra.mrb[0].mxu0 %v4632
      %v4960 = vpop.f32.mrb[0].mxu0
      %v4961 = vadd.f32 0.0, %v4960
      %v4962 = vpop.f32.mrb[0].mxu0
      %v4963 = vpop.f32.mrb[0].mxu0
      %v4964 = vadd.f32 0.0, %v4963
      %v4965 = vpop.f32.mrb[0].mxu0
      %4966 = vmatprep.mubr.bf16.mxu0 0
      %4967 = vmatmul.mubr.bf16.gmra.mrb[0].mxu0 %v4635
      %v4968 = vpop.f32.mrb[0].mxu0
      %v4969 = vadd.f32 0.0, %v4968
      %v4970 = vpop.f32.mrb[0].mxu0
      %v4971 = vpop.f32.mrb[0].mxu0
      %v4972 = vadd.f32 0.0, %v4971
      %v4973 = vpop.f32.mrb[0].mxu0
      %4974 = vmatprep.mubr.bf16.mxu0 0
      %4975 = vmatmul.mubr.bf16.gmra.mrb[0].mxu0 %v4638
      %v4976 = vpop.f32.mrb[0].mxu0
      %v4977 = vadd.f32 0.0, %v4976
      %v4978 = vpop.f32.mrb[0].mxu0
      %v4979 = vpop.f32.mrb[0].mxu0
      %v4980 = vadd.f32 0.0, %v4979
      %v4981 = vpop.f32.mrb[0].mxu0
      %4982 = vmatprep.mubr.bf16.mxu0 0
      %4983 = vmatmul.mubr.bf16.gmra.mrb[0].mxu0 %v4641
      %v4984 = vpop.f32.mrb[0].mxu0
      %v4985 = vadd.f32 0.0, %v4984
      %v4986 = vpop.f32.mrb[0].mxu0
      %v4987 = vpop.f32.mrb[0].mxu0
      %v4988 = vadd.f32 0.0, %v4987
      %v4989 = vpop.f32.mrb[0].mxu0
      %4990 = vmatprep.mubr.bf16.mxu0 0
      %4991 = vmatmul.mubr.bf16.gmra.mrb[0].mxu0 %v4644
      %v4992 = vpop.f32.mrb[0].mxu0
      %v4993 = vadd.f32 0.0, %v4992
      %v4994 = vpop.f32.mrb[0].mxu0
      %v4995 = vpop.f32.mrb[0].mxu0
      %v4996 = vadd.f32 0.0, %v4995
      %v4997 = vpop.f32.mrb[0].mxu0
      %4998 = vmatprep.mubr.bf16.mxu0 0
      %4999 = vmatmul.mubr.bf16.gmra.mrb[0].mxu0 %v4647
      %v5000 = vpop.f32.mrb[0].mxu0
      %v5001 = vadd.f32 0.0, %v5000
      %v5002 = vpop.f32.mrb[0].mxu0
      %v5003 = vpop.f32.mrb[0].mxu0
      %v5004 = vadd.f32 0.0, %v5003
      %v5005 = vpop.f32.mrb[0].mxu0
      %5006 = vmatprep.mubr.bf16.mxu0 0
      %5007 = vmatmul.mubr.bf16.gmra.mrb[0].mxu0 %v4650
      %v5008 = vpop.f32.mrb[0].mxu0
      %v5009 = vadd.f32 0.0, %v5008
      %v5010 = vpop.f32.mrb[0].mxu0
      %v5011 = vpop.f32.mrb[0].mxu0
      %v5012 = vadd.f32 0.0, %v5011
      %v5013 = vpop.f32.mrb[0].mxu0
      %5014 = vmatprep.mubr.bf16.mxu0 0
      %5015 = vmatmul.mubr.bf16.gmra.mrb[0].mxu0 %v4653
      %v5016 = vpop.f32.mrb[0].mxu0
      %v5017 = vadd.f32 0.0, %v5016
      %v5018 = vpop.f32.mrb[0].mxu0
      %v5019 = vpop.f32.mrb[0].mxu0
      %v5020 = vadd.f32 0.0, %v5019
      %v5021 = vpop.f32.mrb[0].mxu0
      %5022 = vmatprep.mubr.bf16.mxu0 0
      %5023 = vmatmul.mubr.bf16.gmra.mrb[0].mxu0 %v4868
      %v5024 = vpop.f32.mrb[0].mxu0
      %v5025 = vadd.f32 0.0, %v5024
      %v5026 = vpop.f32.mrb[0].mxu0
      %v5027 = vpop.f32.mrb[0].mxu0
      %v5028 = vadd.f32 0.0, %v5027
      %v5029 = vpop.f32.mrb[0].mxu0
      %5030 = vdwg.mxu0
      %v5031 = vadd.f32 %v4816, %v4905
      %v5032 = vadd.f32 %v4817, %v4908
      %v5033 = vadd.f32 %v4818, %v4913
      %v5034 = vadd.f32 %v4819, %v4916
      %v5035 = vadd.f32 %v4820, %v4921
      %v5036 = vadd.f32 %v4821, %v4924
      %v5037 = vadd.f32 %v4822, %v4929
      %v5038 = vadd.f32 %v4823, %v4932
      %v5039 = vadd.f32 %v4824, %v4937
      %v5040 = vadd.f32 %v4825, %v4940
      %v5041 = vadd.f32 %v4826, %v4945
      %v5042 = vadd.f32 %v4827, %v4948
      %v5043 = vadd.f32 %v4828, %v4953
      %v5044 = vadd.f32 %v4829, %v4956
      %v5045 = vadd.f32 %v4830, %v4961
      %v5046 = vadd.f32 %v4831, %v4964
      %v5047 = vadd.f32 %v4832, %v4969
      %v5048 = vadd.f32 %v4833, %v4972
      %v5049 = vadd.f32 %v4834, %v4977
      %v5050 = vadd.f32 %v4835, %v4980
      %v5051 = vadd.f32 %v4836, %v4985
      %v5052 = vadd.f32 %v4837, %v4988
      %v5053 = vadd.f32 %v4838, %v4993
      %v5054 = vadd.f32 %v4839, %v4996
      %v5055 = vadd.f32 %v4840, %v5001
      %v5056 = vadd.f32 %v4841, %v5004
      %v5057 = vadd.f32 %v4842, %v5009
      %v5058 = vadd.f32 %v4843, %v5012
      %v5059 = vadd.f32 %v4844, %v5017
      %v5060 = vadd.f32 %v4845, %v5020
      %v5061 = vadd.f32 %v4846, %v5025
      %v5062 = vadd.f32 %v4847, %v5028
      %v5063 = vld [vmem:[%s1952] sm:$0xf]
      %v5064 = vld [vmem:[%s1952 + $0x4] sm:$0xf]
      %v5065 = vld [vmem:[%s1952 + $0x8] sm:$0xf]
      %v5066 = vld [vmem:[%s1952 + $0xc] sm:$0xf]
      %v5067 = vunpack.c.l.b16 %v4532
      %v5068 = vunpack.c.l.b16 %v4542
      %v5069 = vpack.c.b16 %v5068, %v5067
      %v5074 = vunpack.c.l.b16 %v5063
      %v5075 = vunpack.c.l.b16 %v5064
      %v5076 = vunpack.c.l.b16 %v5065
      %v5077 = vunpack.c.l.b16 %v5066
      %v5078 = vpack.c.b16 %v5075, %v5074
      %v5079 = vpack.c.b16 %v5077, %v5076
      %v5083 = vsel %vm386, %v5069, 0
      %5085 = vmatprep.subr.bf16.mxu0 0
      %5086 = vmatpush1.bf16.msra.mxu0 %v5078
      %5087 = vmatprep.subr.bf16.mxu0 0
      %5088 = vmatpush1.bf16.msra.mxu0 %v5079
      %5089 = vmatprep.subr.bf16.mxu0 0
      %5090 = vmatpush1.bf16.msra.mxu0 0
      %5091 = vmatprep.subr.bf16.mxu0 0
      %5092 = vmatpush1.bf16.msra.mxu0 0
      %5093 = vmatprep.subr.bf16.mxu0 0
      %5094 = vmatpush1.bf16.msra.mxu0 0
      %5095 = vmatprep.subr.bf16.mxu0 0
      %5096 = vmatpush1.bf16.msra.mxu0 0
      %5097 = vmatprep.subr.bf16.mxu0 0
      %5098 = vmatpush1.bf16.msra.mxu0 0
      %5099 = vmatprep.subr.bf16.mxu0 0
      %5100 = vmatpush1.bf16.msra.mxu0 0
      %5101 = vmatprep.subr.bf16.mxu0 0
      %5102 = vmatpush1.bf16.msra.mxu0 0
      %5103 = vmatprep.subr.bf16.mxu0 0
      %5104 = vmatpush1.bf16.msra.mxu0 0
      %5105 = vmatprep.subr.bf16.mxu0 0
      %5106 = vmatpush1.bf16.msra.mxu0 0
      %5107 = vmatprep.subr.bf16.mxu0 0
      %5108 = vmatpush1.bf16.msra.mxu0 0
      %5109 = vmatprep.subr.bf16.mxu0 0
      %5110 = vmatpush1.bf16.msra.mxu0 0
      %5111 = vmatprep.subr.bf16.mxu0 0
      %5112 = vmatpush1.bf16.msra.mxu0 0
      %5113 = vmatprep.subr.bf16.mxu0 0
      %5114 = vmatpush1.bf16.msra.mxu0 0
      %5115 = vmatprep.subr.bf16.mxu0 0
      %5116 = vmatpush1.bf16.msra.mxu0 0
      %5117 = vmatprep.mubr.bf16.mxu0 0
      %5118 = vmatmul.mubr.bf16.gmra.mrb[0].mxu0 %v4614
      %v5119 = vpop.f32.mrb[0].mxu0
      %v5120 = vadd.f32 0.0, %v5119
      %v5121 = vpop.f32.mrb[0].mxu0
      %v5122 = vpop.f32.mrb[0].mxu0
      %v5123 = vadd.f32 0.0, %v5122
      %v5124 = vpop.f32.mrb[0].mxu0
      %5125 = vmatprep.mubr.bf16.mxu0 0
      %5126 = vmatmul.mubr.bf16.gmra.mrb[0].mxu0 %v4617
      %v5127 = vpop.f32.mrb[0].mxu0
      %v5128 = vadd.f32 0.0, %v5127
      %v5129 = vpop.f32.mrb[0].mxu0
      %v5130 = vpop.f32.mrb[0].mxu0
      %v5131 = vadd.f32 0.0, %v5130
      %v5132 = vpop.f32.mrb[0].mxu0
      %5133 = vmatprep.mubr.bf16.mxu0 0
      %5134 = vmatmul.mubr.bf16.gmra.mrb[0].mxu0 %v4620
      %v5135 = vpop.f32.mrb[0].mxu0
      %v5136 = vadd.f32 0.0, %v5135
      %v5137 = vpop.f32.mrb[0].mxu0
      %v5138 = vpop.f32.mrb[0].mxu0
      %v5139 = vadd.f32 0.0, %v5138
      %v5140 = vpop.f32.mrb[0].mxu0
      %5141 = vmatprep.mubr.bf16.mxu0 0
      %5142 = vmatmul.mubr.bf16.gmra.mrb[0].mxu0 %v4623
      %v5143 = vpop.f32.mrb[0].mxu0
      %v5144 = vadd.f32 0.0, %v5143
      %v5145 = vpop.f32.mrb[0].mxu0
      %v5146 = vpop.f32.mrb[0].mxu0
      %v5147 = vadd.f32 0.0, %v5146
      %v5148 = vpop.f32.mrb[0].mxu0
      %5149 = vmatprep.mubr.bf16.mxu0 0
      %5150 = vmatmul.mubr.bf16.gmra.mrb[0].mxu0 %v4626
      %v5151 = vpop.f32.mrb[0].mxu0
      %v5152 = vadd.f32 0.0, %v5151
      %v5153 = vpop.f32.mrb[0].mxu0
      %v5154 = vpop.f32.mrb[0].mxu0
      %v5155 = vadd.f32 0.0, %v5154
      %v5156 = vpop.f32.mrb[0].mxu0
      %5157 = vmatprep.mubr.bf16.mxu0 0
      %5158 = vmatmul.mubr.bf16.gmra.mrb[0].mxu0 %v4629
      %v5159 = vpop.f32.mrb[0].mxu0
      %v5160 = vadd.f32 0.0, %v5159
      %v5161 = vpop.f32.mrb[0].mxu0
      %v5162 = vpop.f32.mrb[0].mxu0
      %v5163 = vadd.f32 0.0, %v5162
      %v5164 = vpop.f32.mrb[0].mxu0
      %5165 = vmatprep.mubr.bf16.mxu0 0
      %5166 = vmatmul.mubr.bf16.gmra.mrb[0].mxu0 %v4632
      %v5167 = vpop.f32.mrb[0].mxu0
      %v5168 = vadd.f32 0.0, %v5167
      %v5169 = vpop.f32.mrb[0].mxu0
      %v5170 = vpop.f32.mrb[0].mxu0
      %v5171 = vadd.f32 0.0, %v5170
      %v5172 = vpop.f32.mrb[0].mxu0
      %5173 = vmatprep.mubr.bf16.mxu0 0
      %5174 = vmatmul.mubr.bf16.gmra.mrb[0].mxu0 %v4635
      %v5175 = vpop.f32.mrb[0].mxu0
      %v5176 = vadd.f32 0.0, %v5175
      %v5177 = vpop.f32.mrb[0].mxu0
      %v5178 = vpop.f32.mrb[0].mxu0
      %v5179 = vadd.f32 0.0, %v5178
      %v5180 = vpop.f32.mrb[0].mxu0
      %5181 = vmatprep.mubr.bf16.mxu0 0
      %5182 = vmatmul.mubr.bf16.gmra.mrb[0].mxu0 %v4638
      %v5183 = vpop.f32.mrb[0].mxu0
      %v5184 = vadd.f32 0.0, %v5183
      %v5185 = vpop.f32.mrb[0].mxu0
      %v5186 = vpop.f32.mrb[0].mxu0
      %v5187 = vadd.f32 0.0, %v5186
      %v5188 = vpop.f32.mrb[0].mxu0
      %5189 = vmatprep.mubr.bf16.mxu0 0
      %5190 = vmatmul.mubr.bf16.gmra.mrb[0].mxu0 %v4641
      %v5191 = vpop.f32.mrb[0].mxu0
      %v5192 = vadd.f32 0.0, %v5191
      %v5193 = vpop.f32.mrb[0].mxu0
      %v5194 = vpop.f32.mrb[0].mxu0
      %v5195 = vadd.f32 0.0, %v5194
      %v5196 = vpop.f32.mrb[0].mxu0
      %5197 = vmatprep.mubr.bf16.mxu0 0
      %5198 = vmatmul.mubr.bf16.gmra.mrb[0].mxu0 %v4644
      %v5199 = vpop.f32.mrb[0].mxu0
      %v5200 = vadd.f32 0.0, %v5199
      %v5201 = vpop.f32.mrb[0].mxu0
      %v5202 = vpop.f32.mrb[0].mxu0
      %v5203 = vadd.f32 0.0, %v5202
      %v5204 = vpop.f32.mrb[0].mxu0
      %5205 = vmatprep.mubr.bf16.mxu0 0
      %5206 = vmatmul.mubr.bf16.gmra.mrb[0].mxu0 %v4647
      %v5207 = vpop.f32.mrb[0].mxu0
      %v5208 = vadd.f32 0.0, %v5207
      %v5209 = vpop.f32.mrb[0].mxu0
      %v5210 = vpop.f32.mrb[0].mxu0
      %v5211 = vadd.f32 0.0, %v5210
      %v5212 = vpop.f32.mrb[0].mxu0
      %5213 = vmatprep.mubr.bf16.mxu0 0
      %5214 = vmatmul.mubr.bf16.gmra.mrb[0].mxu0 %v4650
      %v5215 = vpop.f32.mrb[0].mxu0
      %v5216 = vadd.f32 0.0, %v5215
      %v5217 = vpop.f32.mrb[0].mxu0
      %v5218 = vpop.f32.mrb[0].mxu0
      %v5219 = vadd.f32 0.0, %v5218
      %v5220 = vpop.f32.mrb[0].mxu0
      %5221 = vmatprep.mubr.bf16.mxu0 0
      %5222 = vmatmul.mubr.bf16.gmra.mrb[0].mxu0 %v4653
      %v5223 = vpop.f32.mrb[0].mxu0
      %v5224 = vadd.f32 0.0, %v5223
      %v5225 = vpop.f32.mrb[0].mxu0
      %v5226 = vpop.f32.mrb[0].mxu0
      %v5227 = vadd.f32 0.0, %v5226
      %v5228 = vpop.f32.mrb[0].mxu0
      %5229 = vmatprep.mubr.bf16.mxu0 0
      %5230 = vmatmul.mubr.bf16.gmra.mrb[0].mxu0 %v4868
      %v5231 = vpop.f32.mrb[0].mxu0
      %v5232 = vadd.f32 0.0, %v5231
      %v5233 = vpop.f32.mrb[0].mxu0
      %v5234 = vpop.f32.mrb[0].mxu0
      %v5235 = vadd.f32 0.0, %v5234
      %v5236 = vpop.f32.mrb[0].mxu0
      %5237 = vmatprep.mubr.bf16.mxu0 0
      %5238 = vmatmul.mubr.bf16.gmra.mrb[0].mxu0 %v5083
      %v5239 = vpop.f32.mrb[0].mxu0
      %v5240 = vadd.f32 0.0, %v5239
      %v5241 = vpop.f32.mrb[0].mxu0
      %v5242 = vpop.f32.mrb[0].mxu0
      %v5243 = vadd.f32 0.0, %v5242
      %v5244 = vpop.f32.mrb[0].mxu0
      %5245 = vdwg.mxu0
      %v5246 = vadd.f32 %v5031, %v5120
      %v5247 = vadd.f32 %v5032, %v5123
      %v5248 = vadd.f32 %v5033, %v5128
      %v5249 = vadd.f32 %v5034, %v5131
      %v5250 = vadd.f32 %v5035, %v5136
      %v5251 = vadd.f32 %v5036, %v5139
      %v5252 = vadd.f32 %v5037, %v5144
      %v5253 = vadd.f32 %v5038, %v5147
      %v5254 = vadd.f32 %v5039, %v5152
      %v5255 = vadd.f32 %v5040, %v5155
      %v5256 = vadd.f32 %v5041, %v5160
      %v5257 = vadd.f32 %v5042, %v5163
      %v5258 = vadd.f32 %v5043, %v5168
      %v5259 = vadd.f32 %v5044, %v5171
      %v5260 = vadd.f32 %v5045, %v5176
      %v5261 = vadd.f32 %v5046, %v5179
      %v5262 = vadd.f32 %v5047, %v5184
      %v5263 = vadd.f32 %v5048, %v5187
      %v5264 = vadd.f32 %v5049, %v5192
      %v5265 = vadd.f32 %v5050, %v5195
      %v5266 = vadd.f32 %v5051, %v5200
      %v5267 = vadd.f32 %v5052, %v5203
      %v5268 = vadd.f32 %v5053, %v5208
      %v5269 = vadd.f32 %v5054, %v5211
      %v5270 = vadd.f32 %v5055, %v5216
      %v5271 = vadd.f32 %v5056, %v5219
      %v5272 = vadd.f32 %v5057, %v5224
      %v5273 = vadd.f32 %v5058, %v5227
      %v5274 = vadd.f32 %v5059, %v5232
      %v5275 = vadd.f32 %v5060, %v5235
      %v5276 = vadd.f32 %v5061, %v5240
      %v5277 = vadd.f32 %v5062, %v5243
      %v5296 = vrot.slane %v3350, 5
      %v5297 = vrot.slane %v5296, 4
      %v5298 = vrot.slane %v3351, 5
      %v5299 = vsel %vm2188, %v5297, %v5298
      %v5300 = vrot.slane %v5298, 4
      %v5301 = vrot.slane %v3352, 5
      %v5302 = vsel %vm2188, %v5300, %v5301
      %v5303 = vrot.slane %v3353, 5
      %v5304 = vrot.slane %v5303, 4
      %v5305 = vrot.slane %v3354, 5
      %v5306 = vsel %vm2188, %v5304, %v5305
      %v5307 = vrot.slane %v5305, 4
      %v5308 = vrot.slane %v3355, 5
      %v5309 = vsel %vm2188, %v5307, %v5308
      %v5310 = vrot.slane %v3356, 5
      %v5311 = vrot.slane %v5310, 4
      %v5312 = vrot.slane %v3357, 5
      %v5313 = vsel %vm2188, %v5311, %v5312
      %v5314 = vrot.slane %v5312, 4
      %v5315 = vrot.slane %v3358, 5
      %v5316 = vsel %vm2188, %v5314, %v5315
      %v5317 = vrot.slane %v3359, 5
      %v5318 = vrot.slane %v5317, 4
      %v5319 = vrot.slane %v3360, 5
      %v5320 = vsel %vm2188, %v5318, %v5319
      %v5321 = vrot.slane %v5319, 4
      %v5322 = vrot.slane %v3361, 5
      %v5323 = vsel %vm2188, %v5321, %v5322
      %v5324 = vrot.slane %v3362, 5
      %v5325 = vrot.slane %v5324, 4
      %v5326 = vrot.slane %v3363, 5
      %v5327 = vsel %vm2188, %v5325, %v5326
      %v5328 = vrot.slane %v5326, 4
      %v5329 = vrot.slane %v3364, 5
      %v5330 = vsel %vm2188, %v5328, %v5329
      %v5331 = vrot.slane %v3365, 5
      %v5332 = vrot.slane %v5331, 4
      %v5333 = vrot.slane %v3366, 5
      %v5334 = vsel %vm2188, %v5332, %v5333
      %v5335 = vrot.slane %v5333, 4
      %v5336 = vrot.slane %v3367, 5
      %v5337 = vsel %vm2188, %v5335, %v5336
      %v5338 = vrot.slane %v3368, 5
      %v5339 = vrot.slane %v5338, 4
      %v5340 = vrot.slane %v3369, 5
      %v5341 = vsel %vm2188, %v5339, %v5340
      %v5342 = vrot.slane %v5340, 4
      %v5343 = vrot.slane %v3370, 5
      %v5344 = vsel %vm2188, %v5342, %v5343
      %v5345 = vrot.slane %v3371, 5
      %v5346 = vrot.slane %v5345, 4
      %v5347 = vrot.slane %v3372, 5
      %v5348 = vsel %vm2188, %v5346, %v5347
      %v5349 = vrot.slane %v5347, 4
      %v5350 = vrot.slane %v3373, 5
      %v5351 = vsel %vm2188, %v5349, %v5350
      %v5352 = vrot.slane %v3374, 5
      %v5353 = vrot.slane %v5352, 4
      %v5354 = vrot.slane %v3375, 5
      %v5355 = vsel %vm2188, %v5353, %v5354
      %v5356 = vrot.slane %v5354, 4
      %v5357 = vrot.slane %v3376, 5
      %v5358 = vsel %vm2188, %v5356, %v5357
      %v5359 = vrot.slane %v3377, 5
      %v5360 = vrot.slane %v5359, 4
      %v5361 = vrot.slane %v3378, 5
      %v5362 = vsel %vm2188, %v5360, %v5361
      %v5363 = vrot.slane %v5361, 4
      %v5364 = vrot.slane %v3379, 5
      %v5365 = vsel %vm2188, %v5363, %v5364
      %v5366 = vrot.slane %v3380, 5
      %v5367 = vrot.slane %v5366, 4
      %v5368 = vrot.slane %v3381, 5
      %v5369 = vsel %vm2188, %v5367, %v5368
      %v5370 = vrot.slane %v5368, 4
      %v5371 = vrot.slane %v3382, 5
      %v5372 = vsel %vm2188, %v5370, %v5371
      %v5373 = vrot.slane %v3383, 5
      %v5374 = vrot.slane %v5373, 4
      %v5375 = vrot.slane %v3384, 5
      %v5376 = vsel %vm2188, %v5374, %v5375
      %v5377 = vrot.slane %v5375, 4
      %v5378 = vrot.slane %v3385, 5
      %v5379 = vsel %vm2188, %v5377, %v5378
      %v5380 = vrot.slane %v3386, 5
      %v5381 = vrot.slane %v5380, 4
      %v5382 = vrot.slane %v3387, 5
      %v5383 = vsel %vm2188, %v5381, %v5382
      %v5384 = vrot.slane %v5382, 4
      %v5385 = vrot.slane %v3388, 5
      %v5386 = vsel %vm2188, %v5384, %v5385
      %v5387 = vrot.slane %v3389, 5
      %v5388 = vrot.slane %v5387, 4
      %v5389 = vrot.slane %v3390, 5
      %v5390 = vsel %vm2188, %v5388, %v5389
      %v5391 = vrot.slane %v5389, 4
      %v5392 = vrot.slane %v3391, 5
      %v5393 = vsel %vm2188, %v5391, %v5392
      %v5394 = vrot.slane %v3392, 5
      %v5395 = vrot.slane %v5394, 4
      %v5396 = vrot.slane %v3393, 5
      %v5397 = vsel %vm2188, %v5395, %v5396
      %v5398 = vrot.slane %v5396, 4
      %v5399 = vrot.slane %v3394, 5
      %v5400 = vsel %vm2188, %v5398, %v5399
      %v5401 = vrot.slane %v3395, 5
      %v5402 = vrot.slane %v5401, 4
      %v5403 = vrot.slane %v3396, 5
      %v5404 = vsel %vm2188, %v5402, %v5403
      %v5405 = vrot.slane %v5403, 4
      %v5406 = vrot.slane %v3397, 5
      %v5407 = vsel %vm2188, %v5405, %v5406
      %v5408 = vrot.slane %v3398, 5
      %v5409 = vrot.slane %v5408, 4
      %v5410 = vrot.slane %v3399, 5
      %v5411 = vsel %vm2188, %v5409, %v5410
      %v5412 = vrot.slane %v5410, 4
      %v5413 = vrot.slane %v3400, 5
      %v5414 = vsel %vm2188, %v5412, %v5413
      %v5415 = vrot.slane %v3401, 5
      %v5416 = vrot.slane %v5415, 4
      %v5417 = vrot.slane %v3402, 5
      %v5418 = vsel %vm2188, %v5416, %v5417
      %v5419 = vrot.slane %v5417, 4
      %v5420 = vrot.slane %v3403, 5
      %v5421 = vsel %vm2188, %v5419, %v5420
      %v5422 = vld [vmem:[%s2315] sm:$0xf]
      %v5423 = vld [vmem:[%s2315 + $0x4] sm:$0xf]
      %v5424 = vld [vmem:[%s2315 + $0x8] sm:$0xf]
      %v5425 = vld [vmem:[%s2315 + $0xc] sm:$0xf]
      %v5426 = vunpack.c.l.b16 %v5299
      %v5427 = vunpack.c.l.b16 %v5302
      %v5428 = vunpack.c.l.b16 %v5306
      %v5429 = vunpack.c.l.b16 %v5309
      %v5430 = vunpack.c.l.b16 %v5313
      %v5431 = vunpack.c.l.b16 %v5316
      %v5432 = vunpack.c.l.b16 %v5320
      %v5433 = vunpack.c.l.b16 %v5323
      %v5434 = vunpack.c.l.b16 %v5327
      %v5435 = vunpack.c.l.b16 %v5330
      %v5436 = vunpack.c.l.b16 %v5334
      %v5437 = vunpack.c.l.b16 %v5337
      %v5438 = vunpack.c.l.b16 %v5341
      %v5439 = vunpack.c.l.b16 %v5344
      %v5440 = vunpack.c.l.b16 %v5348
      %v5441 = vunpack.c.l.b16 %v5351
      %v5442 = vunpack.c.l.b16 %v5355
      %v5443 = vunpack.c.l.b16 %v5358
      %v5444 = vunpack.c.l.b16 %v5362
      %v5445 = vunpack.c.l.b16 %v5365
      %v5446 = vunpack.c.l.b16 %v5369
      %v5447 = vunpack.c.l.b16 %v5372
      %v5448 = vunpack.c.l.b16 %v5376
      %v5449 = vunpack.c.l.b16 %v5379
      %v5450 = vunpack.c.l.b16 %v5383
      %v5451 = vunpack.c.l.b16 %v5386
      %v5452 = vunpack.c.l.b16 %v5390
      %v5453 = vunpack.c.l.b16 %v5393
      %v5454 = vunpack.c.l.b16 %v5397
      %v5455 = vunpack.c.l.b16 %v5400
      %v5456 = vunpack.c.l.b16 %v5404
      %v5457 = vunpack.c.l.b16 %v5407
      %v5458 = vpack.c.b16 %v5427, %v5426
      %v5459 = vpack.c.b16 %v5429, %v5428
      %v5460 = vpack.c.b16 %v5431, %v5430
      %v5461 = vpack.c.b16 %v5433, %v5432
      %v5462 = vpack.c.b16 %v5435, %v5434
      %v5463 = vpack.c.b16 %v5437, %v5436
      %v5464 = vpack.c.b16 %v5439, %v5438
      %v5465 = vpack.c.b16 %v5441, %v5440
      %v5466 = vpack.c.b16 %v5443, %v5442
      %v5467 = vpack.c.b16 %v5445, %v5444
      %v5468 = vpack.c.b16 %v5447, %v5446
      %v5469 = vpack.c.b16 %v5449, %v5448
      %v5470 = vpack.c.b16 %v5451, %v5450
      %v5471 = vpack.c.b16 %v5453, %v5452
      %v5472 = vpack.c.b16 %v5455, %v5454
      %v5473 = vpack.c.b16 %v5457, %v5456
      %v5478 = vunpack.c.l.b16 %v5422
      %v5479 = vunpack.c.l.b16 %v5423
      %v5480 = vunpack.c.l.b16 %v5424
      %v5481 = vunpack.c.l.b16 %v5425
      %v5482 = vpack.c.b16 %v5479, %v5478
      %v5483 = vpack.c.b16 %v5481, %v5480
      %v5487 = vsel %vm386, %v5458, 0
      %v5490 = vsel %vm386, %v5459, 0
      %v5493 = vsel %vm386, %v5460, 0
      %v5496 = vsel %vm386, %v5461, 0
      %v5499 = vsel %vm386, %v5462, 0
      %v5502 = vsel %vm386, %v5463, 0
      %v5505 = vsel %vm386, %v5464, 0
      %v5508 = vsel %vm386, %v5465, 0
      %v5511 = vsel %vm386, %v5466, 0
      %v5514 = vsel %vm386, %v5467, 0
      %v5517 = vsel %vm386, %v5468, 0
      %v5520 = vsel %vm386, %v5469, 0
      %v5523 = vsel %vm386, %v5470, 0
      %v5526 = vsel %vm386, %v5471, 0
      %v5529 = vsel %vm386, %v5472, 0
      %v5532 = vsel %vm386, %v5473, 0
      %5534 = vmatprep.subr.bf16.mxu0 0
      %5535 = vmatpush1.bf16.msra.mxu0 %v5482
      %5536 = vmatprep.subr.bf16.mxu0 0
      %5537 = vmatpush1.bf16.msra.mxu0 %v5483
      %5538 = vmatprep.subr.bf16.mxu0 0
      %5539 = vmatpush1.bf16.msra.mxu0 0
      %5540 = vmatprep.subr.bf16.mxu0 0
      %5541 = vmatpush1.bf16.msra.mxu0 0
      %5542 = vmatprep.subr.bf16.mxu0 0
      %5543 = vmatpush1.bf16.msra.mxu0 0
      %5544 = vmatprep.subr.bf16.mxu0 0
      %5545 = vmatpush1.bf16.msra.mxu0 0
      %5546 = vmatprep.subr.bf16.mxu0 0
      %5547 = vmatpush1.bf16.msra.mxu0 0
      %5548 = vmatprep.subr.bf16.mxu0 0
      %5549 = vmatpush1.bf16.msra.mxu0 0
      %5550 = vmatprep.subr.bf16.mxu0 0
      %5551 = vmatpush1.bf16.msra.mxu0 0
      %5552 = vmatprep.subr.bf16.mxu0 0
      %5553 = vmatpush1.bf16.msra.mxu0 0
      %5554 = vmatprep.subr.bf16.mxu0 0
      %5555 = vmatpush1.bf16.msra.mxu0 0
      %5556 = vmatprep.subr.bf16.mxu0 0
      %5557 = vmatpush1.bf16.msra.mxu0 0
      %5558 = vmatprep.subr.bf16.mxu0 0
      %5559 = vmatpush1.bf16.msra.mxu0 0
      %5560 = vmatprep.subr.bf16.mxu0 0
      %5561 = vmatpush1.bf16.msra.mxu0 0
      %5562 = vmatprep.subr.bf16.mxu0 0
      %5563 = vmatpush1.bf16.msra.mxu0 0
      %5564 = vmatprep.subr.bf16.mxu0 0
      %5565 = vmatpush1.bf16.msra.mxu0 0
      %5566 = vmatprep.mubr.bf16.mxu0 0
      %5567 = vmatmul.mubr.bf16.gmra.mrb[0].mxu0 %v5487
      %v5568 = vpop.f32.mrb[0].mxu0
      %v5569 = vadd.f32 0.0, %v5568
      %v5570 = vpop.f32.mrb[0].mxu0
      %v5571 = vpop.f32.mrb[0].mxu0
      %v5572 = vadd.f32 0.0, %v5571
      %v5573 = vpop.f32.mrb[0].mxu0
      %5574 = vmatprep.mubr.bf16.mxu0 0
      %5575 = vmatmul.mubr.bf16.gmra.mrb[0].mxu0 %v5490
      %v5576 = vpop.f32.mrb[0].mxu0
      %v5577 = vadd.f32 0.0, %v5576
      %v5578 = vpop.f32.mrb[0].mxu0
      %v5579 = vpop.f32.mrb[0].mxu0
      %v5580 = vadd.f32 0.0, %v5579
      %v5581 = vpop.f32.mrb[0].mxu0
      %5582 = vmatprep.mubr.bf16.mxu0 0
      %5583 = vmatmul.mubr.bf16.gmra.mrb[0].mxu0 %v5493
      %v5584 = vpop.f32.mrb[0].mxu0
      %v5585 = vadd.f32 0.0, %v5584
      %v5586 = vpop.f32.mrb[0].mxu0
      %v5587 = vpop.f32.mrb[0].mxu0
      %v5588 = vadd.f32 0.0, %v5587
      %v5589 = vpop.f32.mrb[0].mxu0
      %5590 = vmatprep.mubr.bf16.mxu0 0
      %5591 = vmatmul.mubr.bf16.gmra.mrb[0].mxu0 %v5496
      %v5592 = vpop.f32.mrb[0].mxu0
      %v5593 = vadd.f32 0.0, %v5592
      %v5594 = vpop.f32.mrb[0].mxu0
      %v5595 = vpop.f32.mrb[0].mxu0
      %v5596 = vadd.f32 0.0, %v5595
      %v5597 = vpop.f32.mrb[0].mxu0
      %5598 = vmatprep.mubr.bf16.mxu0 0
      %5599 = vmatmul.mubr.bf16.gmra.mrb[0].mxu0 %v5499
      %v5600 = vpop.f32.mrb[0].mxu0
      %v5601 = vadd.f32 0.0, %v5600
      %v5602 = vpop.f32.mrb[0].mxu0
      %v5603 = vpop.f32.mrb[0].mxu0
      %v5604 = vadd.f32 0.0, %v5603
      %v5605 = vpop.f32.mrb[0].mxu0
      %5606 = vmatprep.mubr.bf16.mxu0 0
      %5607 = vmatmul.mubr.bf16.gmra.mrb[0].mxu0 %v5502
      %v5608 = vpop.f32.mrb[0].mxu0
      %v5609 = vadd.f32 0.0, %v5608
      %v5610 = vpop.f32.mrb[0].mxu0
      %v5611 = vpop.f32.mrb[0].mxu0
      %v5612 = vadd.f32 0.0, %v5611
      %v5613 = vpop.f32.mrb[0].mxu0
      %5614 = vmatprep.mubr.bf16.mxu0 0
      %5615 = vmatmul.mubr.bf16.gmra.mrb[0].mxu0 %v5505
      %v5616 = vpop.f32.mrb[0].mxu0
      %v5617 = vadd.f32 0.0, %v5616
      %v5618 = vpop.f32.mrb[0].mxu0
      %v5619 = vpop.f32.mrb[0].mxu0
      %v5620 = vadd.f32 0.0, %v5619
      %v5621 = vpop.f32.mrb[0].mxu0
      %5622 = vmatprep.mubr.bf16.mxu0 0
      %5623 = vmatmul.mubr.bf16.gmra.mrb[0].mxu0 %v5508
      %v5624 = vpop.f32.mrb[0].mxu0
      %v5625 = vadd.f32 0.0, %v5624
      %v5626 = vpop.f32.mrb[0].mxu0
      %v5627 = vpop.f32.mrb[0].mxu0
      %v5628 = vadd.f32 0.0, %v5627
      %v5629 = vpop.f32.mrb[0].mxu0
      %5630 = vmatprep.mubr.bf16.mxu0 0
      %5631 = vmatmul.mubr.bf16.gmra.mrb[0].mxu0 %v5511
      %v5632 = vpop.f32.mrb[0].mxu0
      %v5633 = vadd.f32 0.0, %v5632
      %v5634 = vpop.f32.mrb[0].mxu0
      %v5635 = vpop.f32.mrb[0].mxu0
      %v5636 = vadd.f32 0.0, %v5635
      %v5637 = vpop.f32.mrb[0].mxu0
      %5638 = vmatprep.mubr.bf16.mxu0 0
      %5639 = vmatmul.mubr.bf16.gmra.mrb[0].mxu0 %v5514
      %v5640 = vpop.f32.mrb[0].mxu0
      %v5641 = vadd.f32 0.0, %v5640
      %v5642 = vpop.f32.mrb[0].mxu0
      %v5643 = vpop.f32.mrb[0].mxu0
      %v5644 = vadd.f32 0.0, %v5643
      %v5645 = vpop.f32.mrb[0].mxu0
      %5646 = vmatprep.mubr.bf16.mxu0 0
      %5647 = vmatmul.mubr.bf16.gmra.mrb[0].mxu0 %v5517
      %v5648 = vpop.f32.mrb[0].mxu0
      %v5649 = vadd.f32 0.0, %v5648
      %v5650 = vpop.f32.mrb[0].mxu0
      %v5651 = vpop.f32.mrb[0].mxu0
      %v5652 = vadd.f32 0.0, %v5651
      %v5653 = vpop.f32.mrb[0].mxu0
      %5654 = vmatprep.mubr.bf16.mxu0 0
      %5655 = vmatmul.mubr.bf16.gmra.mrb[0].mxu0 %v5520
      %v5656 = vpop.f32.mrb[0].mxu0
      %v5657 = vadd.f32 0.0, %v5656
      %v5658 = vpop.f32.mrb[0].mxu0
      %v5659 = vpop.f32.mrb[0].mxu0
      %v5660 = vadd.f32 0.0, %v5659
      %v5661 = vpop.f32.mrb[0].mxu0
      %5662 = vmatprep.mubr.bf16.mxu0 0
      %5663 = vmatmul.mubr.bf16.gmra.mrb[0].mxu0 %v5523
      %v5664 = vpop.f32.mrb[0].mxu0
      %v5665 = vadd.f32 0.0, %v5664
      %v5666 = vpop.f32.mrb[0].mxu0
      %v5667 = vpop.f32.mrb[0].mxu0
      %v5668 = vadd.f32 0.0, %v5667
      %v5669 = vpop.f32.mrb[0].mxu0
      %5670 = vmatprep.mubr.bf16.mxu0 0
      %5671 = vmatmul.mubr.bf16.gmra.mrb[0].mxu0 %v5526
      %v5672 = vpop.f32.mrb[0].mxu0
      %v5673 = vadd.f32 0.0, %v5672
      %v5674 = vpop.f32.mrb[0].mxu0
      %v5675 = vpop.f32.mrb[0].mxu0
      %v5676 = vadd.f32 0.0, %v5675
      %v5677 = vpop.f32.mrb[0].mxu0
      %5678 = vmatprep.mubr.bf16.mxu0 0
      %5679 = vmatmul.mubr.bf16.gmra.mrb[0].mxu0 %v5529
      %v5680 = vpop.f32.mrb[0].mxu0
      %v5681 = vadd.f32 0.0, %v5680
      %v5682 = vpop.f32.mrb[0].mxu0
      %v5683 = vpop.f32.mrb[0].mxu0
      %v5684 = vadd.f32 0.0, %v5683
      %v5685 = vpop.f32.mrb[0].mxu0
      %5686 = vmatprep.mubr.bf16.mxu0 0
      %5687 = vmatmul.mubr.bf16.gmra.mrb[0].mxu0 %v5532
      %v5688 = vpop.f32.mrb[0].mxu0
      %v5689 = vadd.f32 0.0, %v5688
      %v5690 = vpop.f32.mrb[0].mxu0
      %v5691 = vpop.f32.mrb[0].mxu0
      %v5692 = vadd.f32 0.0, %v5691
      %v5693 = vpop.f32.mrb[0].mxu0
      %5694 = vdwg.mxu0
      %v5695 = vadd.f32 %v5246, %v5569
      %v5696 = vadd.f32 %v5247, %v5572
      %v5697 = vadd.f32 %v5248, %v5577
      %v5698 = vadd.f32 %v5249, %v5580
      %v5699 = vadd.f32 %v5250, %v5585
      %v5700 = vadd.f32 %v5251, %v5588
      %v5701 = vadd.f32 %v5252, %v5593
      %v5702 = vadd.f32 %v5253, %v5596
      %v5703 = vadd.f32 %v5254, %v5601
      %v5704 = vadd.f32 %v5255, %v5604
      %v5705 = vadd.f32 %v5256, %v5609
      %v5706 = vadd.f32 %v5257, %v5612
      %v5707 = vadd.f32 %v5258, %v5617
      %v5708 = vadd.f32 %v5259, %v5620
      %v5709 = vadd.f32 %v5260, %v5625
      %v5710 = vadd.f32 %v5261, %v5628
      %v5711 = vadd.f32 %v5262, %v5633
      %v5712 = vadd.f32 %v5263, %v5636
      %v5713 = vadd.f32 %v5264, %v5641
      %v5714 = vadd.f32 %v5265, %v5644
      %v5715 = vadd.f32 %v5266, %v5649
      %v5716 = vadd.f32 %v5267, %v5652
      %v5717 = vadd.f32 %v5268, %v5657
      %v5718 = vadd.f32 %v5269, %v5660
      %v5719 = vadd.f32 %v5270, %v5665
      %v5720 = vadd.f32 %v5271, %v5668
      %v5721 = vadd.f32 %v5272, %v5673
      %v5722 = vadd.f32 %v5273, %v5676
      %v5723 = vadd.f32 %v5274, %v5681
      %v5724 = vadd.f32 %v5275, %v5684
      %v5725 = vadd.f32 %v5276, %v5689
      %v5726 = vadd.f32 %v5277, %v5692
      %v5727 = vld [vmem:[%s2621] sm:$0xf]
      %v5728 = vld [vmem:[%s2621 + $0x4] sm:$0xf]
      %v5729 = vld [vmem:[%s2621 + $0x8] sm:$0xf]
      %v5730 = vld [vmem:[%s2621 + $0xc] sm:$0xf]
      %v5731 = vunpack.c.l.b16 %v5411
      %v5732 = vunpack.c.l.b16 %v5414
      %v5733 = vpack.c.b16 %v5732, %v5731
      %v5738 = vunpack.c.l.b16 %v5727
      %v5739 = vunpack.c.l.b16 %v5728
      %v5740 = vunpack.c.l.b16 %v5729
      %v5741 = vunpack.c.l.b16 %v5730
      %v5742 = vpack.c.b16 %v5739, %v5738
      %v5743 = vpack.c.b16 %v5741, %v5740
      %v5747 = vsel %vm386, %v5733, 0
      %5749 = vmatprep.subr.bf16.mxu0 0
      %5750 = vmatpush1.bf16.msra.mxu0 %v5742
      %5751 = vmatprep.subr.bf16.mxu0 0
      %5752 = vmatpush1.bf16.msra.mxu0 %v5743
      %5753 = vmatprep.subr.bf16.mxu0 0
      %5754 = vmatpush1.bf16.msra.mxu0 0
      %5755 = vmatprep.subr.bf16.mxu0 0
      %5756 = vmatpush1.bf16.msra.mxu0 0
      %5757 = vmatprep.subr.bf16.mxu0 0
      %5758 = vmatpush1.bf16.msra.mxu0 0
      %5759 = vmatprep.subr.bf16.mxu0 0
      %5760 = vmatpush1.bf16.msra.mxu0 0
      %5761 = vmatprep.subr.bf16.mxu0 0
      %5762 = vmatpush1.bf16.msra.mxu0 0
      %5763 = vmatprep.subr.bf16.mxu0 0
      %5764 = vmatpush1.bf16.msra.mxu0 0
      %5765 = vmatprep.subr.bf16.mxu0 0
      %5766 = vmatpush1.bf16.msra.mxu0 0
      %5767 = vmatprep.subr.bf16.mxu0 0
      %5768 = vmatpush1.bf16.msra.mxu0 0
      %5769 = vmatprep.subr.bf16.mxu0 0
      %5770 = vmatpush1.bf16.msra.mxu0 0
      %5771 = vmatprep.subr.bf16.mxu0 0
      %5772 = vmatpush1.bf16.msra.mxu0 0
      %5773 = vmatprep.subr.bf16.mxu0 0
      %5774 = vmatpush1.bf16.msra.mxu0 0
      %5775 = vmatprep.subr.bf16.mxu0 0
      %5776 = vmatpush1.bf16.msra.mxu0 0
      %5777 = vmatprep.subr.bf16.mxu0 0
      %5778 = vmatpush1.bf16.msra.mxu0 0
      %5779 = vmatprep.subr.bf16.mxu0 0
      %5780 = vmatpush1.bf16.msra.mxu0 0
      %5781 = vmatprep.mubr.bf16.mxu0 0
      %5782 = vmatmul.mubr.bf16.gmra.mrb[0].mxu0 %v5490
      %v5783 = vpop.f32.mrb[0].mxu0
      %v5784 = vadd.f32 0.0, %v5783
      %v5785 = vpop.f32.mrb[0].mxu0
      %v5786 = vpop.f32.mrb[0].mxu0
      %v5787 = vadd.f32 0.0, %v5786
      %v5788 = vpop.f32.mrb[0].mxu0
      %5789 = vmatprep.mubr.bf16.mxu0 0
      %5790 = vmatmul.mubr.bf16.gmra.mrb[0].mxu0 %v5493
      %v5791 = vpop.f32.mrb[0].mxu0
      %v5792 = vadd.f32 0.0, %v5791
      %v5793 = vpop.f32.mrb[0].mxu0
      %v5794 = vpop.f32.mrb[0].mxu0
      %v5795 = vadd.f32 0.0, %v5794
      %v5796 = vpop.f32.mrb[0].mxu0
      %5797 = vmatprep.mubr.bf16.mxu0 0
      %5798 = vmatmul.mubr.bf16.gmra.mrb[0].mxu0 %v5496
      %v5799 = vpop.f32.mrb[0].mxu0
      %v5800 = vadd.f32 0.0, %v5799
      %v5801 = vpop.f32.mrb[0].mxu0
      %v5802 = vpop.f32.mrb[0].mxu0
      %v5803 = vadd.f32 0.0, %v5802
      %v5804 = vpop.f32.mrb[0].mxu0
      %5805 = vmatprep.mubr.bf16.mxu0 0
      %5806 = vmatmul.mubr.bf16.gmra.mrb[0].mxu0 %v5499
      %v5807 = vpop.f32.mrb[0].mxu0
      %v5808 = vadd.f32 0.0, %v5807
      %v5809 = vpop.f32.mrb[0].mxu0
      %v5810 = vpop.f32.mrb[0].mxu0
      %v5811 = vadd.f32 0.0, %v5810
      %v5812 = vpop.f32.mrb[0].mxu0
      %5813 = vmatprep.mubr.bf16.mxu0 0
      %5814 = vmatmul.mubr.bf16.gmra.mrb[0].mxu0 %v5502
      %v5815 = vpop.f32.mrb[0].mxu0
      %v5816 = vadd.f32 0.0, %v5815
      %v5817 = vpop.f32.mrb[0].mxu0
      %v5818 = vpop.f32.mrb[0].mxu0
      %v5819 = vadd.f32 0.0, %v5818
      %v5820 = vpop.f32.mrb[0].mxu0
      %5821 = vmatprep.mubr.bf16.mxu0 0
      %5822 = vmatmul.mubr.bf16.gmra.mrb[0].mxu0 %v5505
      %v5823 = vpop.f32.mrb[0].mxu0
      %v5824 = vadd.f32 0.0, %v5823
      %v5825 = vpop.f32.mrb[0].mxu0
      %v5826 = vpop.f32.mrb[0].mxu0
      %v5827 = vadd.f32 0.0, %v5826
      %v5828 = vpop.f32.mrb[0].mxu0
      %5829 = vmatprep.mubr.bf16.mxu0 0
      %5830 = vmatmul.mubr.bf16.gmra.mrb[0].mxu0 %v5508
      %v5831 = vpop.f32.mrb[0].mxu0
      %v5832 = vadd.f32 0.0, %v5831
      %v5833 = vpop.f32.mrb[0].mxu0
      %v5834 = vpop.f32.mrb[0].mxu0
      %v5835 = vadd.f32 0.0, %v5834
      %v5836 = vpop.f32.mrb[0].mxu0
      %5837 = vmatprep.mubr.bf16.mxu0 0
      %5838 = vmatmul.mubr.bf16.gmra.mrb[0].mxu0 %v5511
      %v5839 = vpop.f32.mrb[0].mxu0
      %v5840 = vadd.f32 0.0, %v5839
      %v5841 = vpop.f32.mrb[0].mxu0
      %v5842 = vpop.f32.mrb[0].mxu0
      %v5843 = vadd.f32 0.0, %v5842
      %v5844 = vpop.f32.mrb[0].mxu0
      %5845 = vmatprep.mubr.bf16.mxu0 0
      %5846 = vmatmul.mubr.bf16.gmra.mrb[0].mxu0 %v5514
      %v5847 = vpop.f32.mrb[0].mxu0
      %v5848 = vadd.f32 0.0, %v5847
      %v5849 = vpop.f32.mrb[0].mxu0
      %v5850 = vpop.f32.mrb[0].mxu0
      %v5851 = vadd.f32 0.0, %v5850
      %v5852 = vpop.f32.mrb[0].mxu0
      %5853 = vmatprep.mubr.bf16.mxu0 0
      %5854 = vmatmul.mubr.bf16.gmra.mrb[0].mxu0 %v5517
      %v5855 = vpop.f32.mrb[0].mxu0
      %v5856 = vadd.f32 0.0, %v5855
      %v5857 = vpop.f32.mrb[0].mxu0
      %v5858 = vpop.f32.mrb[0].mxu0
      %v5859 = vadd.f32 0.0, %v5858
      %v5860 = vpop.f32.mrb[0].mxu0
      %5861 = vmatprep.mubr.bf16.mxu0 0
      %5862 = vmatmul.mubr.bf16.gmra.mrb[0].mxu0 %v5520
      %v5863 = vpop.f32.mrb[0].mxu0
      %v5864 = vadd.f32 0.0, %v5863
      %v5865 = vpop.f32.mrb[0].mxu0
      %v5866 = vpop.f32.mrb[0].mxu0
      %v5867 = vadd.f32 0.0, %v5866
      %v5868 = vpop.f32.mrb[0].mxu0
      %5869 = vmatprep.mubr.bf16.mxu0 0
      %5870 = vmatmul.mubr.bf16.gmra.mrb[0].mxu0 %v5523
      %v5871 = vpop.f32.mrb[0].mxu0
      %v5872 = vadd.f32 0.0, %v5871
      %v5873 = vpop.f32.mrb[0].mxu0
      %v5874 = vpop.f32.mrb[0].mxu0
      %v5875 = vadd.f32 0.0, %v5874
      %v5876 = vpop.f32.mrb[0].mxu0
      %5877 = vmatprep.mubr.bf16.mxu0 0
      %5878 = vmatmul.mubr.bf16.gmra.mrb[0].mxu0 %v5526
      %v5879 = vpop.f32.mrb[0].mxu0
      %v5880 = vadd.f32 0.0, %v5879
      %v5881 = vpop.f32.mrb[0].mxu0
      %v5882 = vpop.f32.mrb[0].mxu0
      %v5883 = vadd.f32 0.0, %v5882
      %v5884 = vpop.f32.mrb[0].mxu0
      %5885 = vmatprep.mubr.bf16.mxu0 0
      %5886 = vmatmul.mubr.bf16.gmra.mrb[0].mxu0 %v5529
      %v5887 = vpop.f32.mrb[0].mxu0
      %v5888 = vadd.f32 0.0, %v5887
      %v5889 = vpop.f32.mrb[0].mxu0
      %v5890 = vpop.f32.mrb[0].mxu0
      %v5891 = vadd.f32 0.0, %v5890
      %v5892 = vpop.f32.mrb[0].mxu0
      %5893 = vmatprep.mubr.bf16.mxu0 0
      %5894 = vmatmul.mubr.bf16.gmra.mrb[0].mxu0 %v5532
      %v5895 = vpop.f32.mrb[0].mxu0
      %v5896 = vadd.f32 0.0, %v5895
      %v5897 = vpop.f32.mrb[0].mxu0
      %v5898 = vpop.f32.mrb[0].mxu0
      %v5899 = vadd.f32 0.0, %v5898
      %v5900 = vpop.f32.mrb[0].mxu0
      %5901 = vmatprep.mubr.bf16.mxu0 0
      %5902 = vmatmul.mubr.bf16.gmra.mrb[0].mxu0 %v5747
      %v5903 = vpop.f32.mrb[0].mxu0
      %v5904 = vadd.f32 0.0, %v5903
      %v5905 = vpop.f32.mrb[0].mxu0
      %v5906 = vpop.f32.mrb[0].mxu0
      %v5907 = vadd.f32 0.0, %v5906
      %v5908 = vpop.f32.mrb[0].mxu0
      %5909 = vdwg.mxu0
      %v5910 = vadd.f32 %v5695, %v5784
      %v5911 = vadd.f32 %v5696, %v5787
      %v5912 = vadd.f32 %v5697, %v5792
      %v5913 = vadd.f32 %v5698, %v5795
      %v5914 = vadd.f32 %v5699, %v5800
      %v5915 = vadd.f32 %v5700, %v5803
      %v5916 = vadd.f32 %v5701, %v5808
      %v5917 = vadd.f32 %v5702, %v5811
      %v5918 = vadd.f32 %v5703, %v5816
      %v5919 = vadd.f32 %v5704, %v5819
      %v5920 = vadd.f32 %v5705, %v5824
      %v5921 = vadd.f32 %v5706, %v5827
      %v5922 = vadd.f32 %v5707, %v5832
      %v5923 = vadd.f32 %v5708, %v5835
      %v5924 = vadd.f32 %v5709, %v5840
      %v5925 = vadd.f32 %v5710, %v5843
      %v5926 = vadd.f32 %v5711, %v5848
      %v5927 = vadd.f32 %v5712, %v5851
      %v5928 = vadd.f32 %v5713, %v5856
      %v5929 = vadd.f32 %v5714, %v5859
      %v5930 = vadd.f32 %v5715, %v5864
      %v5931 = vadd.f32 %v5716, %v5867
      %v5932 = vadd.f32 %v5717, %v5872
      %v5933 = vadd.f32 %v5718, %v5875
      %v5934 = vadd.f32 %v5719, %v5880
      %v5935 = vadd.f32 %v5720, %v5883
      %v5936 = vadd.f32 %v5721, %v5888
      %v5937 = vadd.f32 %v5722, %v5891
      %v5938 = vadd.f32 %v5723, %v5896
      %v5939 = vadd.f32 %v5724, %v5899
      %v5940 = vadd.f32 %v5725, %v5904
      %v5941 = vadd.f32 %v5726, %v5907
      %v5942 = vld [vmem:[%s2837] sm:$0xf]
      %v5943 = vld [vmem:[%s2837 + $0x4] sm:$0xf]
      %v5944 = vld [vmem:[%s2837 + $0x8] sm:$0xf]
      %v5945 = vld [vmem:[%s2837 + $0xc] sm:$0xf]
      %v5946 = vunpack.c.l.b16 %v5418
      %v5947 = vunpack.c.l.b16 %v5421
      %v5948 = vpack.c.b16 %v5947, %v5946
      %v5953 = vunpack.c.l.b16 %v5942
      %v5954 = vunpack.c.l.b16 %v5943
      %v5955 = vunpack.c.l.b16 %v5944
      %v5956 = vunpack.c.l.b16 %v5945
      %v5957 = vpack.c.b16 %v5954, %v5953
      %v5958 = vpack.c.b16 %v5956, %v5955
      %v5962 = vsel %vm386, %v5948, 0
      %5964 = vmatprep.subr.bf16.mxu0 0
      %5965 = vmatpush1.bf16.msra.mxu0 %v5957
      %5966 = vmatprep.subr.bf16.mxu0 0
      %5967 = vmatpush1.bf16.msra.mxu0 %v5958
      %5968 = vmatprep.subr.bf16.mxu0 0
      %5969 = vmatpush1.bf16.msra.mxu0 0
      %5970 = vmatprep.subr.bf16.mxu0 0
      %5971 = vmatpush1.bf16.msra.mxu0 0
      %5972 = vmatprep.subr.bf16.mxu0 0
      %5973 = vmatpush1.bf16.msra.mxu0 0
      %5974 = vmatprep.subr.bf16.mxu0 0
      %5975 = vmatpush1.bf16.msra.mxu0 0
      %5976 = vmatprep.subr.bf16.mxu0 0
      %5977 = vmatpush1.bf16.msra.mxu0 0
      %5978 = vmatprep.subr.bf16.mxu0 0
      %5979 = vmatpush1.bf16.msra.mxu0 0
      %5980 = vmatprep.subr.bf16.mxu0 0
      %5981 = vmatpush1.bf16.msra.mxu0 0
      %5982 = vmatprep.subr.bf16.mxu0 0
      %5983 = vmatpush1.bf16.msra.mxu0 0
      %5984 = vmatprep.subr.bf16.mxu0 0
      %5985 = vmatpush1.bf16.msra.mxu0 0
      %5986 = vmatprep.subr.bf16.mxu0 0
      %5987 = vmatpush1.bf16.msra.mxu0 0
      %5988 = vmatprep.subr.bf16.mxu0 0
      %5989 = vmatpush1.bf16.msra.mxu0 0
      %5990 = vmatprep.subr.bf16.mxu0 0
      %5991 = vmatpush1.bf16.msra.mxu0 0
      %5992 = vmatprep.subr.bf16.mxu0 0
      %5993 = vmatpush1.bf16.msra.mxu0 0
      %5994 = vmatprep.subr.bf16.mxu0 0
      %5995 = vmatpush1.bf16.msra.mxu0 0
      %5996 = vmatprep.mubr.bf16.mxu0 0
      %5997 = vmatmul.mubr.bf16.gmra.mrb[0].mxu0 %v5493
      %v5998 = vpop.f32.mrb[0].mxu0
      %v5999 = vadd.f32 0.0, %v5998
      %v6000 = vpop.f32.mrb[0].mxu0
      %v6001 = vpop.f32.mrb[0].mxu0
      %v6002 = vadd.f32 0.0, %v6001
      %v6003 = vpop.f32.mrb[0].mxu0
      %6004 = vmatprep.mubr.bf16.mxu0 0
      %6005 = vmatmul.mubr.bf16.gmra.mrb[0].mxu0 %v5496
      %v6006 = vpop.f32.mrb[0].mxu0
      %v6007 = vadd.f32 0.0, %v6006
      %v6008 = vpop.f32.mrb[0].mxu0
      %v6009 = vpop.f32.mrb[0].mxu0
      %v6010 = vadd.f32 0.0, %v6009
      %v6011 = vpop.f32.mrb[0].mxu0
      %6012 = vmatprep.mubr.bf16.mxu0 0
      %6013 = vmatmul.mubr.bf16.gmra.mrb[0].mxu0 %v5499
      %v6014 = vpop.f32.mrb[0].mxu0
      %v6015 = vadd.f32 0.0, %v6014
      %v6016 = vpop.f32.mrb[0].mxu0
      %v6017 = vpop.f32.mrb[0].mxu0
      %v6018 = vadd.f32 0.0, %v6017
      %v6019 = vpop.f32.mrb[0].mxu0
      %6020 = vmatprep.mubr.bf16.mxu0 0
      %6021 = vmatmul.mubr.bf16.gmra.mrb[0].mxu0 %v5502
      %v6022 = vpop.f32.mrb[0].mxu0
      %v6023 = vadd.f32 0.0, %v6022
      %v6024 = vpop.f32.mrb[0].mxu0
      %v6025 = vpop.f32.mrb[0].mxu0
      %v6026 = vadd.f32 0.0, %v6025
      %v6027 = vpop.f32.mrb[0].mxu0
      %6028 = vmatprep.mubr.bf16.mxu0 0
      %6029 = vmatmul.mubr.bf16.gmra.mrb[0].mxu0 %v5505
      %v6030 = vpop.f32.mrb[0].mxu0
      %v6031 = vadd.f32 0.0, %v6030
      %v6032 = vpop.f32.mrb[0].mxu0
      %v6033 = vpop.f32.mrb[0].mxu0
      %v6034 = vadd.f32 0.0, %v6033
      %v6035 = vpop.f32.mrb[0].mxu0
      %6036 = vmatprep.mubr.bf16.mxu0 0
      %6037 = vmatmul.mubr.bf16.gmra.mrb[0].mxu0 %v5508
      %v6038 = vpop.f32.mrb[0].mxu0
      %v6039 = vadd.f32 0.0, %v6038
      %v6040 = vpop.f32.mrb[0].mxu0
      %v6041 = vpop.f32.mrb[0].mxu0
      %v6042 = vadd.f32 0.0, %v6041
      %v6043 = vpop.f32.mrb[0].mxu0
      %6044 = vmatprep.mubr.bf16.mxu0 0
      %6045 = vmatmul.mubr.bf16.gmra.mrb[0].mxu0 %v5511
      %v6046 = vpop.f32.mrb[0].mxu0
      %v6047 = vadd.f32 0.0, %v6046
      %v6048 = vpop.f32.mrb[0].mxu0
      %v6049 = vpop.f32.mrb[0].mxu0
      %v6050 = vadd.f32 0.0, %v6049
      %v6051 = vpop.f32.mrb[0].mxu0
      %6052 = vmatprep.mubr.bf16.mxu0 0
      %6053 = vmatmul.mubr.bf16.gmra.mrb[0].mxu0 %v5514
      %v6054 = vpop.f32.mrb[0].mxu0
      %v6055 = vadd.f32 0.0, %v6054
      %v6056 = vpop.f32.mrb[0].mxu0
      %v6057 = vpop.f32.mrb[0].mxu0
      %v6058 = vadd.f32 0.0, %v6057
      %v6059 = vpop.f32.mrb[0].mxu0
      %6060 = vmatprep.mubr.bf16.mxu0 0
      %6061 = vmatmul.mubr.bf16.gmra.mrb[0].mxu0 %v5517
      %v6062 = vpop.f32.mrb[0].mxu0
      %v6063 = vadd.f32 0.0, %v6062
      %v6064 = vpop.f32.mrb[0].mxu0
      %v6065 = vpop.f32.mrb[0].mxu0
      %v6066 = vadd.f32 0.0, %v6065
      %v6067 = vpop.f32.mrb[0].mxu0
      %6068 = vmatprep.mubr.bf16.mxu0 0
      %6069 = vmatmul.mubr.bf16.gmra.mrb[0].mxu0 %v5520
      %v6070 = vpop.f32.mrb[0].mxu0
      %v6071 = vadd.f32 0.0, %v6070
      %v6072 = vpop.f32.mrb[0].mxu0
      %v6073 = vpop.f32.mrb[0].mxu0
      %v6074 = vadd.f32 0.0, %v6073
      %v6075 = vpop.f32.mrb[0].mxu0
      %6076 = vmatprep.mubr.bf16.mxu0 0
      %6077 = vmatmul.mubr.bf16.gmra.mrb[0].mxu0 %v5523
      %v6078 = vpop.f32.mrb[0].mxu0
      %v6079 = vadd.f32 0.0, %v6078
      %v6080 = vpop.f32.mrb[0].mxu0
      %v6081 = vpop.f32.mrb[0].mxu0
      %v6082 = vadd.f32 0.0, %v6081
      %v6083 = vpop.f32.mrb[0].mxu0
      %6084 = vmatprep.mubr.bf16.mxu0 0
      %6085 = vmatmul.mubr.bf16.gmra.mrb[0].mxu0 %v5526
      %v6086 = vpop.f32.mrb[0].mxu0
      %v6087 = vadd.f32 0.0, %v6086
      %v6088 = vpop.f32.mrb[0].mxu0
      %v6089 = vpop.f32.mrb[0].mxu0
      %v6090 = vadd.f32 0.0, %v6089
      %v6091 = vpop.f32.mrb[0].mxu0
      %6092 = vmatprep.mubr.bf16.mxu0 0
      %6093 = vmatmul.mubr.bf16.gmra.mrb[0].mxu0 %v5529
      %v6094 = vpop.f32.mrb[0].mxu0
      %v6095 = vadd.f32 0.0, %v6094
      %v6096 = vpop.f32.mrb[0].mxu0
      %v6097 = vpop.f32.mrb[0].mxu0
      %v6098 = vadd.f32 0.0, %v6097
      %v6099 = vpop.f32.mrb[0].mxu0
      %6100 = vmatprep.mubr.bf16.mxu0 0
      %6101 = vmatmul.mubr.bf16.gmra.mrb[0].mxu0 %v5532
      %v6102 = vpop.f32.mrb[0].mxu0
      %v6103 = vadd.f32 0.0, %v6102
      %v6104 = vpop.f32.mrb[0].mxu0
      %v6105 = vpop.f32.mrb[0].mxu0
      %v6106 = vadd.f32 0.0, %v6105
      %v6107 = vpop.f32.mrb[0].mxu0
      %6108 = vmatprep.mubr.bf16.mxu0 0
      %6109 = vmatmul.mubr.bf16.gmra.mrb[0].mxu0 %v5747
      %v6110 = vpop.f32.mrb[0].mxu0
      %v6111 = vadd.f32 0.0, %v6110
      %v6112 = vpop.f32.mrb[0].mxu0
      %v6113 = vpop.f32.mrb[0].mxu0
      %v6114 = vadd.f32 0.0, %v6113
      %v6115 = vpop.f32.mrb[0].mxu0
      %6116 = vmatprep.mubr.bf16.mxu0 0
      %6117 = vmatmul.mubr.bf16.gmra.mrb[0].mxu0 %v5962
      %v6118 = vpop.f32.mrb[0].mxu0
      %v6119 = vadd.f32 0.0, %v6118
      %v6120 = vpop.f32.mrb[0].mxu0
      %v6121 = vpop.f32.mrb[0].mxu0
      %v6122 = vadd.f32 0.0, %v6121
      %v6123 = vpop.f32.mrb[0].mxu0
      %6124 = vdwg.mxu0
      %v6125 = vadd.f32 %v5910, %v5999
      %v6126 = vadd.f32 %v5911, %v6002
      %v6127 = vadd.f32 %v5912, %v6007
      %v6128 = vadd.f32 %v5913, %v6010
      %v6129 = vadd.f32 %v5914, %v6015
      %v6130 = vadd.f32 %v5915, %v6018
      %v6131 = vadd.f32 %v5916, %v6023
      %v6132 = vadd.f32 %v5917, %v6026
      %v6133 = vadd.f32 %v5918, %v6031
      %v6134 = vadd.f32 %v5919, %v6034
      %v6135 = vadd.f32 %v5920, %v6039
      %v6136 = vadd.f32 %v5921, %v6042
      %v6137 = vadd.f32 %v5922, %v6047
      %v6138 = vadd.f32 %v5923, %v6050
      %v6139 = vadd.f32 %v5924, %v6055
      %v6140 = vadd.f32 %v5925, %v6058
      %v6141 = vadd.f32 %v5926, %v6063
      %v6142 = vadd.f32 %v5927, %v6066
      %v6143 = vadd.f32 %v5928, %v6071
      %v6144 = vadd.f32 %v5929, %v6074
      %v6145 = vadd.f32 %v5930, %v6079
      %v6146 = vadd.f32 %v5931, %v6082
      %v6147 = vadd.f32 %v5932, %v6087
      %v6148 = vadd.f32 %v5933, %v6090
      %v6149 = vadd.f32 %v5934, %v6095
      %v6150 = vadd.f32 %v5935, %v6098
      %v6151 = vadd.f32 %v5936, %v6103
      %v6152 = vadd.f32 %v5937, %v6106
      %v6153 = vadd.f32 %v5938, %v6111
      %v6154 = vadd.f32 %v5939, %v6114
      %v6155 = vadd.f32 %v5940, %v6119
      %v6156 = vadd.f32 %v5941, %v6122
      %v6157 = vld [vmem:[%s219] sm:$0x1]
      %v6159 = vlaneseq
      %v6160 = vshrl.u32 %v6159, 7
      %v6161 = vsub.s32 0, %v6160
      %v6162 = vrot.slane %v6157, %v6161
      %v6164 = vadd.f32 %v6125, %v6162
      %v6165 = vadd.f32 %v6126, %v6162
      %v6166 = vadd.f32 %v6127, %v6162
      %v6167 = vadd.f32 %v6128, %v6162
      %v6168 = vadd.f32 %v6129, %v6162
      %v6169 = vadd.f32 %v6130, %v6162
      %v6170 = vadd.f32 %v6131, %v6162
      %v6171 = vadd.f32 %v6132, %v6162
      %v6172 = vadd.f32 %v6133, %v6162
      %v6173 = vadd.f32 %v6134, %v6162
      %v6174 = vadd.f32 %v6135, %v6162
      %v6175 = vadd.f32 %v6136, %v6162
      %v6176 = vadd.f32 %v6137, %v6162
      %v6177 = vadd.f32 %v6138, %v6162
      %v6178 = vadd.f32 %v6139, %v6162
      %v6179 = vadd.f32 %v6140, %v6162
      %v6180 = vadd.f32 %v6141, %v6162
      %v6181 = vadd.f32 %v6142, %v6162
      %v6182 = vadd.f32 %v6143, %v6162
      %v6183 = vadd.f32 %v6144, %v6162
      %v6184 = vadd.f32 %v6145, %v6162
      %v6185 = vadd.f32 %v6146, %v6162
      %v6186 = vadd.f32 %v6147, %v6162
      %v6187 = vadd.f32 %v6148, %v6162
      %v6188 = vadd.f32 %v6149, %v6162
      %v6189 = vadd.f32 %v6150, %v6162
      %v6190 = vadd.f32 %v6151, %v6162
      %v6191 = vadd.f32 %v6152, %v6162
      %v6192 = vadd.f32 %v6153, %v6162
      %v6193 = vadd.f32 %v6154, %v6162
      %v6194 = vadd.f32 %v6155, %v6162
      %v6195 = vadd.f32 %v6156, %v6162
      %vm6196 = vcmp.ge.f32.partialorder %v6164, 0.0
      %vm6197 = vcmp.ge.f32.partialorder %v6165, 0.0
      %vm6198 = vcmp.ge.f32.partialorder %v6166, 0.0
      %vm6199 = vcmp.ge.f32.partialorder %v6167, 0.0
      %vm6200 = vcmp.ge.f32.partialorder %v6168, 0.0
      %vm6201 = vcmp.ge.f32.partialorder %v6169, 0.0
      %vm6202 = vcmp.ge.f32.partialorder %v6170, 0.0
      %vm6203 = vcmp.ge.f32.partialorder %v6171, 0.0
      %vm6204 = vcmp.ge.f32.partialorder %v6172, 0.0
      %vm6205 = vcmp.ge.f32.partialorder %v6173, 0.0
      %vm6206 = vcmp.ge.f32.partialorder %v6174, 0.0
      %vm6207 = vcmp.ge.f32.partialorder %v6175, 0.0
      %vm6208 = vcmp.ge.f32.partialorder %v6176, 0.0
      %vm6209 = vcmp.ge.f32.partialorder %v6177, 0.0
      %vm6210 = vcmp.ge.f32.partialorder %v6178, 0.0
      %vm6211 = vcmp.ge.f32.partialorder %v6179, 0.0
      %vm6212 = vcmp.ge.f32.partialorder %v6180, 0.0
      %vm6213 = vcmp.ge.f32.partialorder %v6181, 0.0
      %vm6214 = vcmp.ge.f32.partialorder %v6182, 0.0
      %vm6215 = vcmp.ge.f32.partialorder %v6183, 0.0
      %vm6216 = vcmp.ge.f32.partialorder %v6184, 0.0
      %vm6217 = vcmp.ge.f32.partialorder %v6185, 0.0
      %vm6218 = vcmp.ge.f32.partialorder %v6186, 0.0
      %vm6219 = vcmp.ge.f32.partialorder %v6187, 0.0
      %vm6220 = vcmp.ge.f32.partialorder %v6188, 0.0
      %vm6221 = vcmp.ge.f32.partialorder %v6189, 0.0
      %vm6222 = vcmp.ge.f32.partialorder %v6190, 0.0
      %vm6223 = vcmp.ge.f32.partialorder %v6191, 0.0
      %vm6224 = vcmp.ge.f32.partialorder %v6192, 0.0
      %vm6225 = vcmp.ge.f32.partialorder %v6193, 0.0
      %vm6226 = vcmp.ge.f32.partialorder %v6194, 0.0
      %vm6227 = vcmp.ge.f32.partialorder %v6195, 0.0
      %v6228 = vmul.f32 %v6164, 0.2
      %v6229 = vmul.f32 %v6165, 0.2
      %v6230 = vmul.f32 %v6166, 0.2
      %v6231 = vmul.f32 %v6167, 0.2
      %v6232 = vmul.f32 %v6168, 0.2
      %v6233 = vmul.f32 %v6169, 0.2
      %v6234 = vmul.f32 %v6170, 0.2
      %v6235 = vmul.f32 %v6171, 0.2
      %v6236 = vmul.f32 %v6172, 0.2
      %v6237 = vmul.f32 %v6173, 0.2
      %v6238 = vmul.f32 %v6174, 0.2
      %v6239 = vmul.f32 %v6175, 0.2
      %v6240 = vmul.f32 %v6176, 0.2
      %v6241 = vmul.f32 %v6177, 0.2
      %v6242 = vmul.f32 %v6178, 0.2
      %v6243 = vmul.f32 %v6179, 0.2
      %v6244 = vmul.f32 %v6180, 0.2
      %v6245 = vmul.f32 %v6181, 0.2
      %v6246 = vmul.f32 %v6182, 0.2
      %v6247 = vmul.f32 %v6183, 0.2
      %v6248 = vmul.f32 %v6184, 0.2
      %v6249 = vmul.f32 %v6185, 0.2
      %v6250 = vmul.f32 %v6186, 0.2
      %v6251 = vmul.f32 %v6187, 0.2
      %v6252 = vmul.f32 %v6188, 0.2
      %v6253 = vmul.f32 %v6189, 0.2
      %v6254 = vmul.f32 %v6190, 0.2
      %v6255 = vmul.f32 %v6191, 0.2
      %v6256 = vmul.f32 %v6192, 0.2
      %v6257 = vmul.f32 %v6193, 0.2
      %v6258 = vmul.f32 %v6194, 0.2
      %v6259 = vmul.f32 %v6195, 0.2
      %v6260 = vsel %vm6196, %v6164, %v6228
      %v6261 = vsel %vm6197, %v6165, %v6229
      %v6262 = vsel %vm6198, %v6166, %v6230
      %v6263 = vsel %vm6199, %v6167, %v6231
      %v6264 = vsel %vm6200, %v6168, %v6232
      %v6265 = vsel %vm6201, %v6169, %v6233
      %v6266 = vsel %vm6202, %v6170, %v6234
      %v6267 = vsel %vm6203, %v6171, %v6235
      %v6268 = vsel %vm6204, %v6172, %v6236
      %v6269 = vsel %vm6205, %v6173, %v6237
      %v6270 = vsel %vm6206, %v6174, %v6238
      %v6271 = vsel %vm6207, %v6175, %v6239
      %v6272 = vsel %vm6208, %v6176, %v6240
      %v6273 = vsel %vm6209, %v6177, %v6241
      %v6274 = vsel %vm6210, %v6178, %v6242
      %v6275 = vsel %vm6211, %v6179, %v6243
      %v6276 = vsel %vm6212, %v6180, %v6244
      %v6277 = vsel %vm6213, %v6181, %v6245
      %v6278 = vsel %vm6214, %v6182, %v6246
      %v6279 = vsel %vm6215, %v6183, %v6247
      %v6280 = vsel %vm6216, %v6184, %v6248
      %v6281 = vsel %vm6217, %v6185, %v6249
      %v6282 = vsel %vm6218, %v6186, %v6250
      %v6283 = vsel %vm6219, %v6187, %v6251
      %v6284 = vsel %vm6220, %v6188, %v6252
      %v6285 = vsel %vm6221, %v6189, %v6253
      %v6286 = vsel %vm6222, %v6190, %v6254
      %v6287 = vsel %vm6223, %v6191, %v6255
      %v6288 = vsel %vm6224, %v6192, %v6256
      %v6289 = vsel %vm6225, %v6193, %v6257
      %v6290 = vsel %vm6226, %v6194, %v6258
      %v6291 = vsel %vm6227, %v6195, %v6259
      %v6292 = vpack.c.bf16 %v6261, %v6260
      %v6293 = vpack.c.bf16 %v6263, %v6262
      %v6294 = vpack.c.bf16 %v6265, %v6264
      %v6295 = vpack.c.bf16 %v6267, %v6266
      %v6296 = vpack.c.bf16 %v6269, %v6268
      %v6297 = vpack.c.bf16 %v6271, %v6270
      %v6298 = vpack.c.bf16 %v6273, %v6272
      %v6299 = vpack.c.bf16 %v6275, %v6274
      %v6300 = vpack.c.bf16 %v6277, %v6276
      %v6301 = vpack.c.bf16 %v6279, %v6278
      %v6302 = vpack.c.bf16 %v6281, %v6280
      %v6303 = vpack.c.bf16 %v6283, %v6282
      %v6304 = vpack.c.bf16 %v6285, %v6284
      %v6305 = vpack.c.bf16 %v6287, %v6286
      %v6306 = vpack.c.bf16 %v6289, %v6288
      %v6307 = vpack.c.bf16 %v6291, %v6290
      %v6324 = vunpack.c.l.b16 %v6292
      %v6325 = vunpack.c.h.b16 %v6292
      %v6326 = vunpack.c.l.b16 %v6293
      %v6327 = vunpack.c.h.b16 %v6293
      %v6328 = vunpack.c.l.b16 %v6294
      %v6329 = vunpack.c.h.b16 %v6294
      %v6330 = vunpack.c.l.b16 %v6295
      %v6331 = vunpack.c.h.b16 %v6295
      %v6332 = vunpack.c.l.b16 %v6296
      %v6333 = vunpack.c.h.b16 %v6296
      %v6334 = vunpack.c.l.b16 %v6297
      %v6335 = vunpack.c.h.b16 %v6297
      %v6336 = vunpack.c.l.b16 %v6298
      %v6337 = vunpack.c.h.b16 %v6298
      %v6338 = vunpack.c.l.b16 %v6299
      %v6339 = vunpack.c.h.b16 %v6299
      %v6340 = vunpack.c.l.b16 %v6300
      %v6341 = vunpack.c.h.b16 %v6300
      %v6342 = vunpack.c.l.b16 %v6301
      %v6343 = vunpack.c.h.b16 %v6301
      %v6344 = vunpack.c.l.b16 %v6302
      %v6345 = vunpack.c.h.b16 %v6302
      %v6346 = vunpack.c.l.b16 %v6303
      %v6347 = vunpack.c.h.b16 %v6303
      %v6348 = vunpack.c.l.b16 %v6304
      %v6349 = vunpack.c.h.b16 %v6304
      %v6350 = vunpack.c.l.b16 %v6305
      %v6351 = vunpack.c.h.b16 %v6305
      %v6352 = vunpack.c.l.b16 %v6306
      %v6353 = vunpack.c.h.b16 %v6306
      %v6354 = vunpack.c.l.b16 %v6307
      %v6355 = vunpack.c.h.b16 %v6307
      %v6356 = vpack.c.b16 %v6324, %v6324
      %v6357 = vpack.c.b16 %v6325, %v6325
      %v6358 = vpack.c.b16 %v6326, %v6326
      %v6359 = vpack.c.b16 %v6327, %v6327
      %v6360 = vpack.c.b16 %v6328, %v6328
      %v6361 = vpack.c.b16 %v6329, %v6329
      %v6362 = vpack.c.b16 %v6330, %v6330
      %v6363 = vpack.c.b16 %v6331, %v6331
      %v6364 = vpack.c.b16 %v6332, %v6332
      %v6365 = vpack.c.b16 %v6333, %v6333
      %v6366 = vpack.c.b16 %v6334, %v6334
      %v6367 = vpack.c.b16 %v6335, %v6335
      %v6368 = vpack.c.b16 %v6336, %v6336
      %v6369 = vpack.c.b16 %v6337, %v6337
      %v6370 = vpack.c.b16 %v6338, %v6338
      %v6371 = vpack.c.b16 %v6339, %v6339
      %v6372 = vpack.c.b16 %v6340, %v6340
      %v6373 = vpack.c.b16 %v6341, %v6341
      %v6374 = vpack.c.b16 %v6342, %v6342
      %v6375 = vpack.c.b16 %v6343, %v6343
      %v6376 = vpack.c.b16 %v6344, %v6344
      %v6377 = vpack.c.b16 %v6345, %v6345
      %v6378 = vpack.c.b16 %v6346, %v6346
      %v6379 = vpack.c.b16 %v6347, %v6347
      %v6380 = vpack.c.b16 %v6348, %v6348
      %v6381 = vpack.c.b16 %v6349, %v6349
      %v6382 = vpack.c.b16 %v6350, %v6350
      %v6383 = vpack.c.b16 %v6351, %v6351
      %v6384 = vpack.c.b16 %v6352, %v6352
      %v6385 = vpack.c.b16 %v6353, %v6353
      %v6386 = vpack.c.b16 %v6354, %v6354
      %v6387 = vpack.c.b16 %v6355, %v6355
      %s6420 = scalar_lea.vmem %s228, 128
      %6421 = vst.msk [vmem:[%s6420] sm:$0xf] %vm3316, %v6356
      %6422 = vst.msk [vmem:[%s6420 + $0x4] sm:$0xf] %vm3316, %v6357
      %6423 = vst.msk [vmem:[%s6420 + $0x8] sm:$0xf] %vm3316, %v6358
      %6424 = vst.msk [vmem:[%s6420 + $0xc] sm:$0xf] %vm3316, %v6359
      %6425 = vst.msk [vmem:[%s6420 + $0x10] sm:$0xf] %vm3316, %v6360
      %6426 = vst.msk [vmem:[%s6420 + $0x14] sm:$0xf] %vm3316, %v6361
      %6427 = vst.msk [vmem:[%s6420 + $0x18] sm:$0xf] %vm3316, %v6362
      %6428 = vst.msk [vmem:[%s6420 + $0x1c] sm:$0xf] %vm3316, %v6363
      %6429 = vst.msk [vmem:[%s6420 + $0x20] sm:$0xf] %vm3316, %v6364
      %6430 = vst.msk [vmem:[%s6420 + $0x24] sm:$0xf] %vm3316, %v6365
      %6431 = vst.msk [vmem:[%s6420 + $0x28] sm:$0xf] %vm3316, %v6366
      %6432 = vst.msk [vmem:[%s6420 + $0x2c] sm:$0xf] %vm3316, %v6367
      %6433 = vst.msk [vmem:[%s6420 + $0x30] sm:$0xf] %vm3316, %v6368
      %6434 = vst.msk [vmem:[%s6420 + $0x34] sm:$0xf] %vm3316, %v6369
      %6435 = vst.msk [vmem:[%s6420 + $0x38] sm:$0xf] %vm3316, %v6370
      %6436 = vst.msk [vmem:[%s6420 + $0x3c] sm:$0xf] %vm3316, %v6371
      %6437 = vst.msk [vmem:[%s6420 + $0x40] sm:$0xf] %vm3316, %v6372
      %6438 = vst.msk [vmem:[%s6420 + $0x44] sm:$0xf] %vm3316, %v6373
      %6439 = vst.msk [vmem:[%s6420 + $0x48] sm:$0xf] %vm3316, %v6374
      %6440 = vst.msk [vmem:[%s6420 + $0x4c] sm:$0xf] %vm3316, %v6375
      %6441 = vst.msk [vmem:[%s6420 + $0x50] sm:$0xf] %vm3316, %v6376
      %6442 = vst.msk [vmem:[%s6420 + $0x54] sm:$0xf] %vm3316, %v6377
      %6443 = vst.msk [vmem:[%s6420 + $0x58] sm:$0xf] %vm3316, %v6378
      %6444 = vst.msk [vmem:[%s6420 + $0x5c] sm:$0xf] %vm3316, %v6379
      %6445 = vst.msk [vmem:[%s6420 + $0x60] sm:$0xf] %vm3316, %v6380
      %6446 = vst.msk [vmem:[%s6420 + $0x64] sm:$0xf] %vm3316, %v6381
      %6447 = vst.msk [vmem:[%s6420 + $0x68] sm:$0xf] %vm3316, %v6382
      %6448 = vst.msk [vmem:[%s6420 + $0x6c] sm:$0xf] %vm3316, %v6383
      %6449 = vst.msk [vmem:[%s6420 + $0x70] sm:$0xf] %vm3316, %v6384
      %6450 = vst.msk [vmem:[%s6420 + $0x74] sm:$0xf] %vm3316, %v6385
      %6451 = vst.msk [vmem:[%s6420 + $0x78] sm:$0xf] %vm3316, %v6386
      %6452 = vst.msk [vmem:[%s6420 + $0x7c] sm:$0xf] %vm3316, %v6387
      %s6453 = smul.u32 2, %s19
      %p6454 = scmp.lt.s32.totalorder %s6453, 3
      %s6455 = scalar_select %p6454, %s6453, 3
      %p6456 = scmp.lt.s32.totalorder %s18, 0
      %s6457 = scalar_select %p6456, %s18, 0
      %s6458 = smul.addr %s6455, 32
      %s6459 = sadd.s32 %s6457, %s6458
      %s6460 = smul.addr %s6459, 4
      %s6461 = scalar_lea.vmem %s3, %s6460
      // Predicated region
      $region33: #{tpu_custom_call.1} parent=31 // pred_check
        %p6462 = pneg %p124
      $region34: #{tpu_custom_call.1} parent=31 // pred_check_branch
        %6464 = sbr.rel (%p6462) target = $region36
      $region35: #{tpu_custom_call.1} parent=31 // pred_region
        %s6465 = smul.u32 2, %s19
      $region36: #{tpu_custom_call.1} parent=31 // pred_fallthru
        _
    $region32: #{tpu_custom_call.1} parent=5 // pred_fallthru
      _
    %p6466 = scmp.le.s32.totalorder 2, %s9
    // Predicated region
    $region37: #{tpu_custom_call.1} parent=5 // pred_check
      %p6467 = pneg %p6466
    $region38: #{tpu_custom_call.1} parent=5 // pred_check_branch
      %6469 = sbr.rel (%p6467) target = $region40
    $region39: #{tpu_custom_call.1} parent=5 // pred_region
      %s6470 = ssub.s32 %s9, 2
      // Predicated region
      $region41: #{tpu_custom_call.1} parent=39 // pred_check
        %p6471 = pneg %p130
      $region42: #{tpu_custom_call.1} parent=39 // pred_check_branch
        %6473 = sbr.rel (%p6471) target = $region44
      $region43: #{tpu_custom_call.1} parent=39 // pred_region
        %s6474 = smul.u32 2, %s21
        %p6475 = scmp.lt.s32.totalorder %s6474, 3
        %s6476 = scalar_select %p6475, %s6474, 3
        %p6477 = scmp.lt.s32.totalorder %s20, 0
        %s6478 = scalar_select %p6477, %s20, 0
        %s6479 = smul.addr %s6476, 32
        %s6480 = sadd.s32 %s6478, %s6479
        %s6481 = smul.addr %s6480, 4
        %s6482 = scalar_lea.vmem %s3, %s6481
      $region44: #{tpu_custom_call.1} parent=39 // pred_fallthru
        _
    $region40: #{tpu_custom_call.1} parent=5 // pred_fallthru
      _
  $region6: #{tpu_custom_call.1} parent=0 // loop_footer
    %s13 = sadd.s32 1, %s9
  $region7: #{tpu_custom_call.1} parent=0 // loop_footer_branch
    %8 = sbr.rel target = $region3
  $region8: #{tpu_custom_call.1} parent=0 // loop_exit
    _

</llo_original>
